<compile_context>
chip_gen: v5e
topology: v5e:2x2
jax: 0.10.0
libtpu: 0.0.40
codegen_flags: <defaults>
</compile_context>

<pallas_src>
import functools

import numpy as np
import jax
import jax.numpy as jnp
from jax.experimental import pallas as pl
from jax.experimental.pallas import tpu as pltpu

TB = 512       # max batch tile (adaptive; see baseline_sh_predictor)
IN_PAD = 32    # concatenated [ear(12) | head(13)] input padded to 32 lanes
OUT_PAD = 128  # SH output (64) padded to 128 lanes for dense stores


def _round_up(x, m):
    return ((x + m - 1) // m) * m


def _predictor_kernel(eh_ref, idx_ref,
                      w_enc, b_enc, wf_eh, emb_tab, b_fuse,
                      m1, c1, m2, c2, m3, c3, m4, c4, m5, c5,
                      out_ref):
    dot = functools.partial(jnp.dot, preferred_element_type=jnp.float32)

    def relu_bf16(x):
        return jnp.maximum(x, 0.0).astype(jnp.bfloat16)

    tb = eh_ref.shape[0]
    emb_rows = emb_tab.shape[0]

    # merged ear/head encoders: block-diagonal Linear + ReLU
    eh = relu_bf16(dot(eh_ref[...], w_enc[...]) + b_enc[...])

    # nn.Embedding gathers (freq + left/right), pre-multiplied by the fc_fuse
    # weight slices, done in-kernel as a one-hot matmul (no HBM round trip).
    idx = idx_ref[...]                                          # [tb, 2] int32
    lane = jax.lax.broadcasted_iota(jnp.int32, (tb, emb_rows), 1)
    onehot = jnp.logical_or(lane == idx[:, 0:1],
                            lane == idx[:, 1:2]).astype(jnp.bfloat16)
    pre = dot(onehot, emb_tab[...])                             # [tb, 256] f32

    # fc_fuse: encoder half as a matmul, embedding half via `pre`, + bias, ReLU
    z = relu_bf16(dot(eh, wf_eh[...]) + pre + b_fuse[...])

    # conv stack (Conv1d -> BN(eval) -> ReLU) as folded dense matmuls;
    # lane widths are padded to multiples of 128 at init time.
    z = relu_bf16(dot(z, m1[...]) + c1[...])
    z = relu_bf16(dot(z, m2[...]) + c2[...])
    z = relu_bf16(dot(z, m3[...]) + c3[...])
    z = relu_bf16(dot(z, m4[...]) + c4[...])
    # last conv layer: no norm / no ReLU (output lanes padded 64 -> 128)
    out_ref[...] = dot(z, m5[...]) + c5[...]


def init_params(key, num_freq_bins=64, ear_emb=32, head_emb=32,
                freq_emb=16, lr_emb=16):
    ks = list(jax.random.split(key, 16))
    ki = iter(ks)

    def linear(k, fan_in, fan_out):
        bound = 1.0 / np.sqrt(fan_in)
        k1, k2 = jax.random.split(k)
        w = np.asarray(jax.random.uniform(k1, (fan_in, fan_out), jnp.float32, -bound, bound))
        b = np.asarray(jax.random.uniform(k2, (1, fan_out), jnp.float32, -bound, bound))
        return w, b

    w_ear, b_ear = linear(next(ki), 12, ear_emb)
    w_head, b_head = linear(next(ki), 13, head_emb)
    freq_table = np.asarray(jax.random.normal(next(ki), (num_freq_bins, freq_emb), jnp.float32))
    lr_table = np.asarray(jax.random.normal(next(ki), (2, lr_emb), jnp.float32))

    cond = ear_emb + head_emb + freq_emb + lr_emb
    wf, b_fuse = linear(next(ki), cond, 256)
    wf_e = wf[:ear_emb]
    wf_h = wf[ear_emb:ear_emb + head_emb]
    wf_f = wf[ear_emb + head_emb:ear_emb + head_emb + freq_emb]
    wf_l = wf[ear_emb + head_emb + freq_emb:]

    # merged block-diagonal encoder: [ear(12) | head(13) | zero-pad(7)] -> 64
    w_enc = np.zeros((IN_PAD, ear_emb + head_emb), np.float32)
    w_enc[:12, :ear_emb] = w_ear
    w_enc[12:25, ear_emb:] = w_head
    b_enc = np.concatenate([b_ear, b_head], axis=1)             # [1, 64]
    wf_eh = np.concatenate([wf_e, wf_h], axis=0)                # [64, 256]

    # embedding halves of fc_fuse pre-multiplied into one gatherable table:
    # rows [0, nfb) = freq_table @ wf_f, rows [nfb, nfb+2) = lr_table @ wf_l,
    # padded to a multiple of 128 rows for a dense one-hot lane layout.
    emb_rows = _round_up(num_freq_bins + 2, 128)
    emb_tab = np.zeros((emb_rows, 256), np.float32)
    emb_tab[:num_freq_bins] = freq_table @ wf_f
    emb_tab[num_freq_bins:num_freq_bins + 2] = lr_table @ wf_l

    p = {
        'w_enc': jnp.asarray(w_enc, jnp.bfloat16),
        'b_enc': jnp.asarray(b_enc, jnp.float32),
        'wf_eh': jnp.asarray(wf_eh, jnp.bfloat16),
        'emb_tab': jnp.asarray(emb_tab, jnp.bfloat16),
        'b_fuse': jnp.asarray(b_fuse, jnp.float32),
        'lr_offset': num_freq_bins,   # python int, used only in the wrapper
    }

    # conv stack: (in_ch, out_ch, kernel, stride)
    conv_cfg = [(1, 4, 7, 3), (4, 16, 5, 2), (16, 32, 5, 2),
                (32, 32, 5, 3), (32, 64, 5, 2)]
    eps = 1e-5
    L = 256
    in_pad = 256   # fc_fuse output width == rows of m1 (already 128-aligned)
    for li, (ci, co, k, s) in enumerate(conv_cfg, start=1):
        kk = jax.random.split(next(ki), 6)
        bound = 1.0 / np.sqrt(ci * k)
        W = np.asarray(jax.random.uniform(kk[0], (co, ci, k), jnp.float32, -bound, bound))
        bias = np.asarray(jax.random.uniform(kk[1], (co,), jnp.float32, -bound, bound))
        L_out = (L - k) // s + 1

        # unrolled conv: M[ci*L + l*s + t, co*L_out + l] = W[co, ci, t]
        M = np.zeros((ci * L, co * L_out), dtype=np.float32)
        for l in range(L_out):
            for t in range(k):
                rows = np.arange(ci) * L + l * s + t
                cols = np.arange(co) * L_out + l
                M[np.ix_(rows, cols)] = W[:, :, t].T
        cvec = np.repeat(bias, L_out)  # channel-major flatten of per-channel bias

        if li < len(conv_cfg):
            # eval-mode BatchNorm1d: y = a*x + b per channel, folded into M / bias
            # TODO(synk): train-mode BatchNorm (batch statistics) is not modeled.
            gamma = 1.0 + 0.1 * np.asarray(jax.random.normal(kk[2], (co,), jnp.float32))
            beta = 0.1 * np.asarray(jax.random.normal(kk[3], (co,), jnp.float32))
            rmean = 0.1 * np.asarray(jax.random.normal(kk[4], (co,), jnp.float32))
            rvar = 1.0 + 0.1 * np.asarray(jax.random.uniform(kk[5], (co,), jnp.float32))
            a = gamma / np.sqrt(rvar + eps)
            bsh = beta - rmean * a
            a_e = np.repeat(a, L_out)
            b_e = np.repeat(bsh, L_out)
            M = M * a_e[None, :]
            cvec = cvec * a_e + b_e

        # pad rows to the previous layer's padded width and cols to a multiple
        # of 128 (336->384, 576->640, 160->256, final 64->128) so activations
        # get dense lane layouts / unmasked stores; padded lanes stay exactly 0.
        out_pad = _round_up(M.shape[1], 128)
        Mp = np.zeros((in_pad, out_pad), np.float32)
        Mp[:M.shape[0], :M.shape[1]] = M
        cp = np.zeros((out_pad,), np.float32)
        cp[:cvec.shape[0]] = cvec

        p[f'm{li}'] = jnp.asarray(Mp, jnp.bfloat16)
        p[f'c{li}'] = jnp.asarray(cp, jnp.float32)[None, :]
        L = L_out
        in_pad = out_pad
    assert L == 1  # final Conv1d collapses length to 1 -> [B, 64]
    return p


def baseline_sh_predictor(head, ear, freq_idx, ear_idx, params, tb_max=TB):
    B = head.shape[0]

    # adaptive batch tile: don't pad a tiny inference batch up to a full tile,
    # and keep >=2 grid steps for large batches so v7x's two TensorCores both
    # get work (batch axis is marked "parallel").
    b8 = _round_up(B, 8)
    tb = min(tb_max, b8)
    if b8 >= 512:
        tb = min(tb, max(256, _round_up(b8 // 2, 8)))
    B_pad = _round_up(B, tb)
    pad = B_pad - B

    # merged encoder input: [ear(12) | head(13)] zero-padded to 32 bf16 lanes
    eh = jnp.concatenate([ear.astype(jnp.bfloat16), head.astype(jnp.bfloat16)], axis=1)
    eh = jnp.pad(eh, ((0, pad), (0, IN_PAD - eh.shape[1])))

    # embedding indices: [freq_idx | ear_idx + num_freq_bins] -> rows of emb_tab.
    # Padded batch rows stay 0 (they select table row 0 twice); harmless since
    # those rows are sliced off below -- do not "fix" into a real gather.
    idx = jnp.stack([freq_idx.astype(jnp.int32),
                     ear_idx.astype(jnp.int32) + params['lr_offset']], axis=1)
    idx = jnp.pad(idx, ((0, pad), (0, 0)))

    batch_args = [eh, idx]
    weight_names = ['w_enc', 'b_enc', 'wf_eh', 'emb_tab', 'b_fuse',
                    'm1', 'c1', 'm2', 'c2', 'm3', 'c3', 'm4', 'c4', 'm5', 'c5']
    weight_args = [params[n] for n in weight_names]

    # NOTE: constant-index weight operands are double-buffered by default
    # (~2 MB extra); VMEM headroom is ample on v5e/v6e/v7x even at tb=512, so
    # we keep the default rather than pinning pipeline_mode=pl.Buffered(1).
    in_specs = (
        [pl.BlockSpec((tb, a.shape[1]), lambda i: (i, 0)) for a in batch_args] +
        [pl.BlockSpec(w.shape, lambda i: (0, 0)) for w in weight_args])

    out = pl.pallas_call(
        _predictor_kernel,
        out_shape=jax.ShapeDtypeStruct((B_pad, OUT_PAD), jnp.float32),
        grid=(B_pad // tb,),
        in_specs=in_specs,
        out_specs=pl.BlockSpec((tb, OUT_PAD), lambda i: (i, 0)),
        compiler_params=pltpu.CompilerParams(
            dimension_semantics=("parallel",),
            vmem_limit_bytes=48 * 1024 * 1024),
    )(*batch_args, *weight_args)
    return out[:B, :64]


if __name__ == "__main__":
    key = jax.random.PRNGKey(0)
    k1, k2, k3, k4, kp = jax.random.split(key, 5)
    B = 2
    num_freq_bins = 64
    head = jax.random.normal(k1, (B, 13), jnp.float32)
    ear = jax.random.normal(k2, (B, 12), jnp.float32)
    freq_idx = jax.random.randint(k3, (B,), 0, num_freq_bins, jnp.int32)
    ear_idx = jax.random.randint(k4, (B,), 0, 2, jnp.int32)

    params = init_params(kp, num_freq_bins=num_freq_bins)
    out = baseline_sh_predictor(head, ear, freq_idx, ear_idx, params)
    out = jax.block_until_ready(out)
    assert out.shape == (B, 64) and out.dtype == jnp.float32
    assert bool(jnp.all(jnp.isfinite(out)))
    print("KERNEL_OK")
</pallas_src>

<mosaic_0001>
module attributes {stable_mosaic.version = 11 : i64} {
  func.func @_predictor_kernel(%arg0: i32, %arg1: memref<8x32xbf16, #tpu.memory_space<vmem>>, %arg2: memref<8x2xi32, #tpu.memory_space<vmem>>, %arg3: memref<32x64xbf16, #tpu.memory_space<vmem>>, %arg4: memref<1x64xf32, #tpu.memory_space<vmem>>, %arg5: memref<64x256xbf16, #tpu.memory_space<vmem>>, %arg6: memref<128x256xbf16, #tpu.memory_space<vmem>>, %arg7: memref<1x256xf32, #tpu.memory_space<vmem>>, %arg8: memref<256x384xbf16, #tpu.memory_space<vmem>>, %arg9: memref<1x384xf32, #tpu.memory_space<vmem>>, %arg10: memref<384x640xbf16, #tpu.memory_space<vmem>>, %arg11: memref<1x640xf32, #tpu.memory_space<vmem>>, %arg12: memref<640x640xbf16, #tpu.memory_space<vmem>>, %arg13: memref<1x640xf32, #tpu.memory_space<vmem>>, %arg14: memref<640x256xbf16, #tpu.memory_space<vmem>>, %arg15: memref<1x256xf32, #tpu.memory_space<vmem>>, %arg16: memref<256x128xbf16, #tpu.memory_space<vmem>>, %arg17: memref<1x128xf32, #tpu.memory_space<vmem>>, %arg18: memref<8x128xf32, #tpu.memory_space<vmem>>) attributes {dimension_semantics = [#tpu.dimension_semantics<parallel>], iteration_bounds = array<i64: 1>, scalar_prefetch = 0 : i64, scratch_operands = 0 : i64, tpu.core_type = #tpu.core_type<tc>, window_params = [{transform_indices = @transform_0, window_bounds = array<i64: 8, 32>}, {transform_indices = @transform_1, window_bounds = array<i64: 8, 2>}, {pipeline_mode = #tpu.pipeline_mode<synchronous>, transform_indices = @transform_2, window_bounds = array<i64: 32, 64>}, {pipeline_mode = #tpu.pipeline_mode<synchronous>, transform_indices = @transform_3, window_bounds = array<i64: 1, 64>}, {pipeline_mode = #tpu.pipeline_mode<synchronous>, transform_indices = @transform_4, window_bounds = array<i64: 64, 256>}, {pipeline_mode = #tpu.pipeline_mode<synchronous>, transform_indices = @transform_5, window_bounds = array<i64: 128, 256>}, {pipeline_mode = #tpu.pipeline_mode<synchronous>, transform_indices = @transform_6, window_bounds = array<i64: 1, 256>}, {pipeline_mode = #tpu.pipeline_mode<synchronous>, transform_indices = @transform_7, window_bounds = array<i64: 256, 384>}, {pipeline_mode = #tpu.pipeline_mode<synchronous>, transform_indices = @transform_8, window_bounds = array<i64: 1, 384>}, {pipeline_mode = #tpu.pipeline_mode<synchronous>, transform_indices = @transform_9, window_bounds = array<i64: 384, 640>}, {pipeline_mode = #tpu.pipeline_mode<synchronous>, transform_indices = @transform_10, window_bounds = array<i64: 1, 640>}, {pipeline_mode = #tpu.pipeline_mode<synchronous>, transform_indices = @transform_11, window_bounds = array<i64: 640, 640>}, {pipeline_mode = #tpu.pipeline_mode<synchronous>, transform_indices = @transform_12, window_bounds = array<i64: 1, 640>}, {pipeline_mode = #tpu.pipeline_mode<synchronous>, transform_indices = @transform_13, window_bounds = array<i64: 640, 256>}, {pipeline_mode = #tpu.pipeline_mode<synchronous>, transform_indices = @transform_14, window_bounds = array<i64: 1, 256>}, {pipeline_mode = #tpu.pipeline_mode<synchronous>, transform_indices = @transform_15, window_bounds = array<i64: 256, 128>}, {pipeline_mode = #tpu.pipeline_mode<synchronous>, transform_indices = @transform_16, window_bounds = array<i64: 1, 128>}, {transform_indices = @transform_17, window_bounds = array<i64: 8, 128>}]} {
    %c0 = arith.constant 0 : index
    %c0_0 = arith.constant 0 : index
    %0 = vector.load %arg1[%c0, %c0_0] : memref<8x32xbf16, #tpu.memory_space<vmem>>, vector<8x32xbf16>
    %c0_1 = arith.constant 0 : index
    %c0_2 = arith.constant 0 : index
    %1 = vector.load %arg3[%c0_1, %c0_2] : memref<32x64xbf16, #tpu.memory_space<vmem>>, vector<32x64xbf16>
    %cst = arith.constant dense<0.000000e+00> : vector<8x64xf32>
    %2 = tpu.matmul %0, %1, %cst {dimension_numbers = #tpu.dot_dimension_numbers<[1], [0], [0], [1], [0, 0, 1, 1], [], []>} : vector<8x32xbf16>, vector<32x64xbf16>, vector<8x64xf32> -> vector<8x64xf32>
    %c0_3 = arith.constant 0 : index
    %c0_4 = arith.constant 0 : index
    %3 = vector.load %arg4[%c0_3, %c0_4] : memref<1x64xf32, #tpu.memory_space<vmem>>, vector<1x64xf32>
    %4 = vector.broadcast %3 : vector<1x64xf32> to vector<8x64xf32>
    %5 = arith.addf %2, %4 : vector<8x64xf32>
    %cst_5 = arith.constant 0.000000e+00 : f32
    %6 = vector.broadcast %cst_5 : f32 to vector<8x64xf32>
    %7 = arith.maximumf %5, %6 : vector<8x64xf32>
    %8 = arith.truncf %7 : vector<8x64xf32> to vector<8x64xbf16>
    %c0_6 = arith.constant 0 : index
    %c0_7 = arith.constant 0 : index
    %9 = vector.load %arg2[%c0_6, %c0_7] : memref<8x2xi32, #tpu.memory_space<vmem>>, vector<8x2xi32>
    %10 = tpu.iota {dimensions = array<i32: 1>} : vector<8x128xi32>
    %11 = vector.extract_strided_slice %9 {offsets = [0, 0], sizes = [8, 1], strides = [1, 1]} : vector<8x2xi32> to vector<8x1xi32>
    %12 = vector.broadcast %11 : vector<8x1xi32> to vector<8x128xi32>
    %13 = arith.cmpi eq, %10, %12 : vector<8x128xi32>
    %14 = vector.extract_strided_slice %9 {offsets = [0, 1], sizes = [8, 1], strides = [1, 1]} : vector<8x2xi32> to vector<8x1xi32>
    %15 = vector.broadcast %14 : vector<8x1xi32> to vector<8x128xi32>
    %16 = arith.cmpi eq, %10, %15 : vector<8x128xi32>
    %17 = arith.ori %13, %16 : vector<8x128xi1>
    %18 = arith.extui %17 : vector<8x128xi1> to vector<8x128xi32>
    %19 = arith.sitofp %18 : vector<8x128xi32> to vector<8x128xf32>
    %20 = arith.truncf %19 : vector<8x128xf32> to vector<8x128xbf16>
    %c0_8 = arith.constant 0 : index
    %c0_9 = arith.constant 0 : index
    %21 = vector.load %arg6[%c0_8, %c0_9] : memref<128x256xbf16, #tpu.memory_space<vmem>>, vector<128x256xbf16>
    %cst_10 = arith.constant dense<0.000000e+00> : vector<8x256xf32>
    %22 = tpu.matmul %20, %21, %cst_10 {dimension_numbers = #tpu.dot_dimension_numbers<[1], [0], [0], [1], [0, 0, 1, 1], [], []>} : vector<8x128xbf16>, vector<128x256xbf16>, vector<8x256xf32> -> vector<8x256xf32>
    %c0_11 = arith.constant 0 : index
    %c0_12 = arith.constant 0 : index
    %23 = vector.load %arg5[%c0_11, %c0_12] : memref<64x256xbf16, #tpu.memory_space<vmem>>, vector<64x256xbf16>
    %cst_13 = arith.constant dense<0.000000e+00> : vector<8x256xf32>
    %24 = tpu.matmul %8, %23, %cst_13 {dimension_numbers = #tpu.dot_dimension_numbers<[1], [0], [0], [1], [0, 0, 1, 1], [], []>} : vector<8x64xbf16>, vector<64x256xbf16>, vector<8x256xf32> -> vector<8x256xf32>
    %25 = arith.addf %24, %22 : vector<8x256xf32>
    %c0_14 = arith.constant 0 : index
    %c0_15 = arith.constant 0 : index
    %26 = vector.load %arg7[%c0_14, %c0_15] : memref<1x256xf32, #tpu.memory_space<vmem>>, vector<1x256xf32>
    %27 = vector.broadcast %26 : vector<1x256xf32> to vector<8x256xf32>
    %28 = arith.addf %25, %27 : vector<8x256xf32>
    %cst_16 = arith.constant 0.000000e+00 : f32
    %29 = vector.broadcast %cst_16 : f32 to vector<8x256xf32>
    %30 = arith.maximumf %28, %29 : vector<8x256xf32>
    %31 = arith.truncf %30 : vector<8x256xf32> to vector<8x256xbf16>
    %c0_17 = arith.constant 0 : index
    %c0_18 = arith.constant 0 : index
    %32 = vector.load %arg8[%c0_17, %c0_18] : memref<256x384xbf16, #tpu.memory_space<vmem>>, vector<256x384xbf16>
    %cst_19 = arith.constant dense<0.000000e+00> : vector<8x384xf32>
    %33 = tpu.matmul %31, %32, %cst_19 {dimension_numbers = #tpu.dot_dimension_numbers<[1], [0], [0], [1], [0, 0, 1, 1], [], []>} : vector<8x256xbf16>, vector<256x384xbf16>, vector<8x384xf32> -> vector<8x384xf32>
    %c0_20 = arith.constant 0 : index
    %c0_21 = arith.constant 0 : index
    %34 = vector.load %arg9[%c0_20, %c0_21] : memref<1x384xf32, #tpu.memory_space<vmem>>, vector<1x384xf32>
    %35 = vector.broadcast %34 : vector<1x384xf32> to vector<8x384xf32>
    %36 = arith.addf %33, %35 : vector<8x384xf32>
    %cst_22 = arith.constant 0.000000e+00 : f32
    %37 = vector.broadcast %cst_22 : f32 to vector<8x384xf32>
    %38 = arith.maximumf %36, %37 : vector<8x384xf32>
    %39 = arith.truncf %38 : vector<8x384xf32> to vector<8x384xbf16>
    %c0_23 = arith.constant 0 : index
    %c0_24 = arith.constant 0 : index
    %40 = vector.load %arg10[%c0_23, %c0_24] : memref<384x640xbf16, #tpu.memory_space<vmem>>, vector<384x640xbf16>
    %cst_25 = arith.constant dense<0.000000e+00> : vector<8x640xf32>
    %41 = tpu.matmul %39, %40, %cst_25 {dimension_numbers = #tpu.dot_dimension_numbers<[1], [0], [0], [1], [0, 0, 1, 1], [], []>} : vector<8x384xbf16>, vector<384x640xbf16>, vector<8x640xf32> -> vector<8x640xf32>
    %c0_26 = arith.constant 0 : index
    %c0_27 = arith.constant 0 : index
    %42 = vector.load %arg11[%c0_26, %c0_27] : memref<1x640xf32, #tpu.memory_space<vmem>>, vector<1x640xf32>
    %43 = vector.broadcast %42 : vector<1x640xf32> to vector<8x640xf32>
    %44 = arith.addf %41, %43 : vector<8x640xf32>
    %cst_28 = arith.constant 0.000000e+00 : f32
    %45 = vector.broadcast %cst_28 : f32 to vector<8x640xf32>
    %46 = arith.maximumf %44, %45 : vector<8x640xf32>
    %47 = arith.truncf %46 : vector<8x640xf32> to vector<8x640xbf16>
    %c0_29 = arith.constant 0 : index
    %c0_30 = arith.constant 0 : index
    %48 = vector.load %arg12[%c0_29, %c0_30] : memref<640x640xbf16, #tpu.memory_space<vmem>>, vector<640x640xbf16>
    %cst_31 = arith.constant dense<0.000000e+00> : vector<8x640xf32>
    %49 = tpu.matmul %47, %48, %cst_31 {dimension_numbers = #tpu.dot_dimension_numbers<[1], [0], [0], [1], [0, 0, 1, 1], [], []>} : vector<8x640xbf16>, vector<640x640xbf16>, vector<8x640xf32> -> vector<8x640xf32>
    %c0_32 = arith.constant 0 : index
    %c0_33 = arith.constant 0 : index
    %50 = vector.load %arg13[%c0_32, %c0_33] : memref<1x640xf32, #tpu.memory_space<vmem>>, vector<1x640xf32>
    %51 = vector.broadcast %50 : vector<1x640xf32> to vector<8x640xf32>
    %52 = arith.addf %49, %51 : vector<8x640xf32>
    %cst_34 = arith.constant 0.000000e+00 : f32
    %53 = vector.broadcast %cst_34 : f32 to vector<8x640xf32>
    %54 = arith.maximumf %52, %53 : vector<8x640xf32>
    %55 = arith.truncf %54 : vector<8x640xf32> to vector<8x640xbf16>
    %c0_35 = arith.constant 0 : index
    %c0_36 = arith.constant 0 : index
    %56 = vector.load %arg14[%c0_35, %c0_36] : memref<640x256xbf16, #tpu.memory_space<vmem>>, vector<640x256xbf16>
    %cst_37 = arith.constant dense<0.000000e+00> : vector<8x256xf32>
    %57 = tpu.matmul %55, %56, %cst_37 {dimension_numbers = #tpu.dot_dimension_numbers<[1], [0], [0], [1], [0, 0, 1, 1], [], []>} : vector<8x640xbf16>, vector<640x256xbf16>, vector<8x256xf32> -> vector<8x256xf32>
    %c0_38 = arith.constant 0 : index
    %c0_39 = arith.constant 0 : index
    %58 = vector.load %arg15[%c0_38, %c0_39] : memref<1x256xf32, #tpu.memory_space<vmem>>, vector<1x256xf32>
    %59 = vector.broadcast %58 : vector<1x256xf32> to vector<8x256xf32>
    %60 = arith.addf %57, %59 : vector<8x256xf32>
    %cst_40 = arith.constant 0.000000e+00 : f32
    %61 = vector.broadcast %cst_40 : f32 to vector<8x256xf32>
    %62 = arith.maximumf %60, %61 : vector<8x256xf32>
    %63 = arith.truncf %62 : vector<8x256xf32> to vector<8x256xbf16>
    %c0_41 = arith.constant 0 : index
    %c0_42 = arith.constant 0 : index
    %64 = vector.load %arg16[%c0_41, %c0_42] : memref<256x128xbf16, #tpu.memory_space<vmem>>, vector<256x128xbf16>
    %cst_43 = arith.constant dense<0.000000e+00> : vector<8x128xf32>
    %65 = tpu.matmul %63, %64, %cst_43 {dimension_numbers = #tpu.dot_dimension_numbers<[1], [0], [0], [1], [0, 0, 1, 1], [], []>} : vector<8x256xbf16>, vector<256x128xbf16>, vector<8x128xf32> -> vector<8x128xf32>
    %c0_44 = arith.constant 0 : index
    %c0_45 = arith.constant 0 : index
    %66 = vector.load %arg17[%c0_44, %c0_45] : memref<1x128xf32, #tpu.memory_space<vmem>>, vector<1x128xf32>
    %67 = vector.broadcast %66 : vector<1x128xf32> to vector<8x128xf32>
    %68 = arith.addf %65, %67 : vector<8x128xf32>
    %c0_46 = arith.constant 0 : index
    %c0_47 = arith.constant 0 : index
    %69 = vector.load %arg18[%c0_46, %c0_47] : memref<8x128xf32, #tpu.memory_space<vmem>>, vector<8x128xf32>
    tpu.vector_store %arg18[%c0_46, %c0_47], %68 {strides = array<i32>} : memref<8x128xf32, #tpu.memory_space<vmem>>, vector<8x128xf32>,
    return
  }
  func.func @transform_0(%arg0: i32) -> (i32, i32) {
    %c0_i32 = arith.constant 0 : i32
    %c0_i32_0 = arith.constant 0 : i32
    return %arg0, %c0_i32 : i32, i32
  }
  func.func @transform_1(%arg0: i32) -> (i32, i32) {
    %c0_i32 = arith.constant 0 : i32
    %c0_i32_0 = arith.constant 0 : i32
    return %arg0, %c0_i32 : i32, i32
  }
  func.func @transform_2(%arg0: i32) -> (i32, i32) {
    %c0_i32 = arith.constant 0 : i32
    %c0_i32_0 = arith.constant 0 : i32
    %c0_i32_1 = arith.constant 0 : i32
    return %c0_i32, %c0_i32_0 : i32, i32
  }
  func.func @transform_3(%arg0: i32) -> (i32, i32) {
    %c0_i32 = arith.constant 0 : i32
    %c0_i32_0 = arith.constant 0 : i32
    %c0_i32_1 = arith.constant 0 : i32
    return %c0_i32, %c0_i32_0 : i32, i32
  }
  func.func @transform_4(%arg0: i32) -> (i32, i32) {
    %c0_i32 = arith.constant 0 : i32
    %c0_i32_0 = arith.constant 0 : i32
    %c0_i32_1 = arith.constant 0 : i32
    return %c0_i32, %c0_i32_0 : i32, i32
  }
  func.func @transform_5(%arg0: i32) -> (i32, i32) {
    %c0_i32 = arith.constant 0 : i32
    %c0_i32_0 = arith.constant 0 : i32
    %c0_i32_1 = arith.constant 0 : i32
    return %c0_i32, %c0_i32_0 : i32, i32
  }
  func.func @transform_6(%arg0: i32) -> (i32, i32) {
    %c0_i32 = arith.constant 0 : i32
    %c0_i32_0 = arith.constant 0 : i32
    %c0_i32_1 = arith.constant 0 : i32
    return %c0_i32, %c0_i32_0 : i32, i32
  }
  func.func @transform_7(%arg0: i32) -> (i32, i32) {
    %c0_i32 = arith.constant 0 : i32
    %c0_i32_0 = arith.constant 0 : i32
    %c0_i32_1 = arith.constant 0 : i32
    return %c0_i32, %c0_i32_0 : i32, i32
  }
  func.func @transform_8(%arg0: i32) -> (i32, i32) {
    %c0_i32 = arith.constant 0 : i32
    %c0_i32_0 = arith.constant 0 : i32
    %c0_i32_1 = arith.constant 0 : i32
    return %c0_i32, %c0_i32_0 : i32, i32
  }
  func.func @transform_9(%arg0: i32) -> (i32, i32) {
    %c0_i32 = arith.constant 0 : i32
    %c0_i32_0 = arith.constant 0 : i32
    %c0_i32_1 = arith.constant 0 : i32
    return %c0_i32, %c0_i32_0 : i32, i32
  }
  func.func @transform_10(%arg0: i32) -> (i32, i32) {
    %c0_i32 = arith.constant 0 : i32
    %c0_i32_0 = arith.constant 0 : i32
    %c0_i32_1 = arith.constant 0 : i32
    return %c0_i32, %c0_i32_0 : i32, i32
  }
  func.func @transform_11(%arg0: i32) -> (i32, i32) {
    %c0_i32 = arith.constant 0 : i32
    %c0_i32_0 = arith.constant 0 : i32
    %c0_i32_1 = arith.constant 0 : i32
    return %c0_i32, %c0_i32_0 : i32, i32
  }
  func.func @transform_12(%arg0: i32) -> (i32, i32) {
    %c0_i32 = arith.constant 0 : i32
    %c0_i32_0 = arith.constant 0 : i32
    %c0_i32_1 = arith.constant 0 : i32
    return %c0_i32, %c0_i32_0 : i32, i32
  }
  func.func @transform_13(%arg0: i32) -> (i32, i32) {
    %c0_i32 = arith.constant 0 : i32
    %c0_i32_0 = arith.constant 0 : i32
    %c0_i32_1 = arith.constant 0 : i32
    return %c0_i32, %c0_i32_0 : i32, i32
  }
  func.func @transform_14(%arg0: i32) -> (i32, i32) {
    %c0_i32 = arith.constant 0 : i32
    %c0_i32_0 = arith.constant 0 : i32
    %c0_i32_1 = arith.constant 0 : i32
    return %c0_i32, %c0_i32_0 : i32, i32
  }
  func.func @transform_15(%arg0: i32) -> (i32, i32) {
    %c0_i32 = arith.constant 0 : i32
    %c0_i32_0 = arith.constant 0 : i32
    %c0_i32_1 = arith.constant 0 : i32
    return %c0_i32, %c0_i32_0 : i32, i32
  }
  func.func @transform_16(%arg0: i32) -> (i32, i32) {
    %c0_i32 = arith.constant 0 : i32
    %c0_i32_0 = arith.constant 0 : i32
    %c0_i32_1 = arith.constant 0 : i32
    return %c0_i32, %c0_i32_0 : i32, i32
  }
  func.func @transform_17(%arg0: i32) -> (i32, i32) {
    %c0_i32 = arith.constant 0 : i32
    %c0_i32_0 = arith.constant 0 : i32
    return %arg0, %c0_i32 : i32, i32
  }
}

</mosaic_0001>

<llo_original>
// kernel: tpu_custom_call.1
$region0: #{tpu_custom_call.1}
  #allocation0 [shape = 'u32[]', space=smem, size = 0x4, offset = 0x4, fixed_abs, tag = 'smem constant byte address 0x4 - core index']
  #allocation1 [shape = 'u32[72,128]{1,0:T(1,128)}', space=vmem, size = 0x9000, scoped, tag = 'internal scratch']
  %s0 = inlined_call_operand.hbm [shape: bf16[8,32], index: 0, kind: input, shape index: {}]
  %s1 = inlined_call_operand.vmem [shape: s32[8,2], index: 1, kind: input, shape index: {}]
  %s2 = inlined_call_operand.hbm [shape: bf16[32,64], index: 2, kind: input, shape index: {}]
  %s3 = inlined_call_operand.hbm [shape: f32[1,64], index: 3, kind: input, shape index: {}]
  %s4 = inlined_call_operand.hbm [shape: bf16[64,256], index: 4, kind: input, shape index: {}]
  %s5 = inlined_call_operand.hbm [shape: bf16[128,256], index: 5, kind: input, shape index: {}]
  %s6 = inlined_call_operand.vmem [shape: f32[1,256], index: 6, kind: input, shape index: {}]
  %s7 = inlined_call_operand.hbm [shape: bf16[256,384], index: 7, kind: input, shape index: {}]
  %s8 = inlined_call_operand.vmem [shape: f32[1,384], index: 8, kind: input, shape index: {}]
  %s9 = inlined_call_operand.hbm [shape: bf16[384,640], index: 9, kind: input, shape index: {}]
  %s10 = inlined_call_operand.vmem [shape: f32[1,640], index: 10, kind: input, shape index: {}]
  %s11 = inlined_call_operand.hbm [shape: bf16[640,640], index: 11, kind: input, shape index: {}]
  %s12 = inlined_call_operand.vmem [shape: f32[1,640], index: 12, kind: input, shape index: {}]
  %s13 = inlined_call_operand.hbm [shape: bf16[640,256], index: 13, kind: input, shape index: {}]
  %s14 = inlined_call_operand.vmem [shape: f32[1,256], index: 14, kind: input, shape index: {}]
  %s15 = inlined_call_operand.hbm [shape: bf16[256,128], index: 15, kind: input, shape index: {}]
  %s16 = inlined_call_operand.vmem [shape: f32[1,128], index: 16, kind: input, shape index: {}]
  %s17 = inlined_call_operand.hbm [shape: f32[8,128], index: 17, kind: output, shape index: {}]
  %s18 = sld [smem:[#allocation0]]
  $region118: #{tpu_custom_call.1} parent=0
    _
  %s20 = ssub.s32 1, %s18
  %s21 = scalar_select 0, %s20, %s18
  $region1: #{tpu_custom_call.1} parent=0
    #allocation2 [shape = 'u8[2048]{0}', space=vmem, size = 0x800, scoped, tag = 'input window, operand 0, single buffered']
    #allocation3 [shape = 's32[1]{0}', space=sflag, size = 0x4, scoped, tag = 'scoped memory for tpu_custom_call.1']
    #allocation4 [shape = 's32[1]{0}', space=sflag, size = 0x4, scoped, tag = 'scoped memory for tpu_custom_call.1']
    #allocation5 [shape = 'u8[8192]{0}', space=vmem, size = 0x2000, scoped, tag = 'input window, operand 2, single buffered']
    #allocation6 [shape = 's32[1]{0}', space=sflag, size = 0x4, scoped, tag = 'scoped memory for tpu_custom_call.1']
    #allocation7 [shape = 'u8[512]{0}', space=vmem, size = 0x400, scoped, tag = 'input window, operand 3, single buffered']
    #allocation8 [shape = 'u8[32768]{0}', space=vmem, size = 0x8000, scoped, tag = 'input window, operand 4, single buffered']
    #allocation9 [shape = 's32[1]{0}', space=sflag, size = 0x4, scoped, tag = 'scoped memory for tpu_custom_call.1']
    #allocation10 [shape = 'u8[65536]{0}', space=vmem, size = 0x10000, scoped, tag = 'input window, operand 5, single buffered']
    #allocation11 [shape = 'u8[196608]{0}', space=vmem, size = 0x30000, scoped, tag = 'input window, operand 7, single buffered']
    #allocation12 [shape = 's32[1]{0}', space=sflag, size = 0x4, scoped, tag = 'scoped memory for tpu_custom_call.1']
    #allocation13 [shape = 'u8[491520]{0}', space=vmem, size = 0x78000, scoped, tag = 'input window, operand 9, single buffered']
    #allocation14 [shape = 'u8[819200]{0}', space=vmem, size = 0xc8000, scoped, tag = 'input window, operand 11, single buffered']
    #allocation15 [shape = 's32[1]{0}', space=sflag, size = 0x4, scoped, tag = 'scoped memory for tpu_custom_call.1']
    #allocation16 [shape = 'u8[327680]{0}', space=vmem, size = 0x50000, scoped, tag = 'input window, operand 13, single buffered']
    #allocation17 [shape = 'u8[65536]{0}', space=vmem, size = 0x10000, scoped, tag = 'input window, operand 15, single buffered']
    #allocation18 [shape = 's32[1]{0}', space=sflag, size = 0x4, scoped, tag = 'scoped memory for tpu_custom_call.1']
    #allocation19 [shape = 'u8[4096]{0}', space=vmem, size = 0x1000, scoped, tag = 'output window, operand 0, single buffered']
    %22 = vsyncpa [#allocation3], 0
    %23 = vsyncpa [#allocation6], 0
    %24 = vsyncpa [#allocation9], 0
    %25 = vsyncpa [#allocation12], 0
    %26 = vsyncpa [#allocation15], 0
    %27 = vsyncpa [#allocation18], 0
    %28 = vsyncpa [#allocation4], 0
    // Predicated region
    $region2: #{tpu_custom_call.1} parent=1 // pred_check
      _
    $region3: #{tpu_custom_call.1} parent=1 // pred_check_branch
      %30 = sbr.rel (0) target = $region5
    $region4: #{tpu_custom_call.1} parent=1 // pred_region
      %32 = vsyncadd [#allocation3], 0
      %s34 = sshll.u32 %s0, 4
      %s35 = int_to_ptr.hbm [resolvable:$true] %s34
      %s36 = sshll.u32 [#allocation2], 4
      %s37 = int_to_ptr.vmem [resolvable:$true] %s36
      %39 = dma.hbm_to_vmem [thread:$0]  %s35, 64, %s37, [#allocation3]
    $region5: #{tpu_custom_call.1} parent=1 // pred_fallthru
      _
    // Predicated region
    $region6: #{tpu_custom_call.1} parent=1 // pred_check
      _
    $region7: #{tpu_custom_call.1} parent=1 // pred_check_branch
      %41 = sbr.rel (0) target = $region9
    $region8: #{tpu_custom_call.1} parent=1 // pred_region
      _
    $region9: #{tpu_custom_call.1} parent=1 // pred_fallthru
      _
    // Predicated region
    $region10: #{tpu_custom_call.1} parent=1 // pred_check
      _
    $region11: #{tpu_custom_call.1} parent=1 // pred_check_branch
      %43 = sbr.rel (0) target = $region13
    $region12: #{tpu_custom_call.1} parent=1 // pred_region
      %45 = vsyncadd [#allocation6], 0
      %s46 = sshll.u32 %s2, 4
      %s47 = int_to_ptr.hbm [resolvable:$true] %s46
      %s48 = sshll.u32 [#allocation5], 4
      %s49 = int_to_ptr.vmem [resolvable:$true] %s48
      %54 = dma.hbm_to_vmem [thread:$0]  %s47, 256, %s49, [#allocation6], 64, 64, 4
    $region13: #{tpu_custom_call.1} parent=1 // pred_fallthru
      _
    // Predicated region
    $region14: #{tpu_custom_call.1} parent=1 // pred_check
      _
    $region15: #{tpu_custom_call.1} parent=1 // pred_check_branch
      %56 = sbr.rel (0) target = $region17
    $region16: #{tpu_custom_call.1} parent=1 // pred_region
      %58 = vsyncadd [#allocation6], 0
      %s60 = sshll.u32 %s3, 4
      %s61 = int_to_ptr.hbm [resolvable:$true] %s60
      %s62 = sshll.u32 [#allocation7], 4
      %s63 = int_to_ptr.vmem [resolvable:$true] %s62
      %65 = dma.hbm_to_vmem [thread:$0]  %s61, 16, %s63, [#allocation6]
    $region17: #{tpu_custom_call.1} parent=1 // pred_fallthru
      _
    // Predicated region
    $region18: #{tpu_custom_call.1} parent=1 // pred_check
      _
    $region19: #{tpu_custom_call.1} parent=1 // pred_check_branch
      %67 = sbr.rel (0) target = $region21
    $region20: #{tpu_custom_call.1} parent=1 // pred_region
      %69 = vsyncadd [#allocation9], 0
      %s70 = sshll.u32 %s4, 4
      %s71 = int_to_ptr.hbm [resolvable:$true] %s70
      %s72 = sshll.u32 [#allocation8], 4
      %s73 = int_to_ptr.vmem [resolvable:$true] %s72
      %78 = dma.hbm_to_vmem [thread:$0]  %s71, 1024, %s73, [#allocation9], 128, 128, 8
    $region21: #{tpu_custom_call.1} parent=1 // pred_fallthru
      _
    // Predicated region
    $region22: #{tpu_custom_call.1} parent=1 // pred_check
      _
    $region23: #{tpu_custom_call.1} parent=1 // pred_check_branch
      %80 = sbr.rel (0) target = $region25
    $region24: #{tpu_custom_call.1} parent=1 // pred_region
      %82 = vsyncadd [#allocation9], 0
      %s83 = sshll.u32 %s5, 4
      %s84 = int_to_ptr.hbm [resolvable:$true] %s83
      %s85 = sshll.u32 [#allocation10], 4
      %s86 = int_to_ptr.vmem [resolvable:$true] %s85
      %91 = dma.hbm_to_vmem [thread:$0]  %s84, 2048, %s86, [#allocation9], 128, 128, 8
    $region25: #{tpu_custom_call.1} parent=1 // pred_fallthru
      _
    // Predicated region
    $region26: #{tpu_custom_call.1} parent=1 // pred_check
      _
    $region27: #{tpu_custom_call.1} parent=1 // pred_check_branch
      %93 = sbr.rel (0) target = $region29
    $region28: #{tpu_custom_call.1} parent=1 // pred_region
      _
    $region29: #{tpu_custom_call.1} parent=1 // pred_fallthru
      _
    // Predicated region
    $region30: #{tpu_custom_call.1} parent=1 // pred_check
      _
    $region31: #{tpu_custom_call.1} parent=1 // pred_check_branch
      %95 = sbr.rel (0) target = $region33
    $region32: #{tpu_custom_call.1} parent=1 // pred_region
      %97 = vsyncadd [#allocation12], 0
      %s98 = sshll.u32 %s7, 4
      %s99 = int_to_ptr.hbm [resolvable:$true] %s98
      %s100 = sshll.u32 [#allocation11], 4
      %s101 = int_to_ptr.vmem [resolvable:$true] %s100
      %106 = dma.hbm_to_vmem [thread:$0]  %s99, 6144, %s101, [#allocation12], 192, 192, 12
    $region33: #{tpu_custom_call.1} parent=1 // pred_fallthru
      _
    // Predicated region
    $region34: #{tpu_custom_call.1} parent=1 // pred_check
      _
    $region35: #{tpu_custom_call.1} parent=1 // pred_check_branch
      %108 = sbr.rel (0) target = $region37
    $region36: #{tpu_custom_call.1} parent=1 // pred_region
      _
    $region37: #{tpu_custom_call.1} parent=1 // pred_fallthru
      _
    // Predicated region
    $region38: #{tpu_custom_call.1} parent=1 // pred_check
      _
    $region39: #{tpu_custom_call.1} parent=1 // pred_check_branch
      %110 = sbr.rel (0) target = $region41
    $region40: #{tpu_custom_call.1} parent=1 // pred_region
      %112 = vsyncadd [#allocation12], 0
      %s113 = sshll.u32 %s9, 4
      %s114 = int_to_ptr.hbm [resolvable:$true] %s113
      %s115 = sshll.u32 [#allocation13], 4
      %s116 = int_to_ptr.vmem [resolvable:$true] %s115
      %121 = dma.hbm_to_vmem [thread:$0]  %s114, 15360, %s116, [#allocation12], 320, 320, 20
    $region41: #{tpu_custom_call.1} parent=1 // pred_fallthru
      _
    // Predicated region
    $region42: #{tpu_custom_call.1} parent=1 // pred_check
      _
    $region43: #{tpu_custom_call.1} parent=1 // pred_check_branch
      %123 = sbr.rel (0) target = $region45
    $region44: #{tpu_custom_call.1} parent=1 // pred_region
      _
    $region45: #{tpu_custom_call.1} parent=1 // pred_fallthru
      _
    // Predicated region
    $region46: #{tpu_custom_call.1} parent=1 // pred_check
      _
    $region47: #{tpu_custom_call.1} parent=1 // pred_check_branch
      %125 = sbr.rel (0) target = $region49
    $region48: #{tpu_custom_call.1} parent=1 // pred_region
      %127 = vsyncadd [#allocation15], 0
      %s128 = sshll.u32 %s11, 4
      %s129 = int_to_ptr.hbm [resolvable:$true] %s128
      %s130 = sshll.u32 [#allocation14], 4
      %s131 = int_to_ptr.vmem [resolvable:$true] %s130
      %136 = dma.hbm_to_vmem [thread:$0]  %s129, 25600, %s131, [#allocation15], 320, 320, 20
    $region49: #{tpu_custom_call.1} parent=1 // pred_fallthru
      _
    // Predicated region
    $region50: #{tpu_custom_call.1} parent=1 // pred_check
      _
    $region51: #{tpu_custom_call.1} parent=1 // pred_check_branch
      %138 = sbr.rel (0) target = $region53
    $region52: #{tpu_custom_call.1} parent=1 // pred_region
      _
    $region53: #{tpu_custom_call.1} parent=1 // pred_fallthru
      _
    // Predicated region
    $region54: #{tpu_custom_call.1} parent=1 // pred_check
      _
    $region55: #{tpu_custom_call.1} parent=1 // pred_check_branch
      %140 = sbr.rel (0) target = $region57
    $region56: #{tpu_custom_call.1} parent=1 // pred_region
      %142 = vsyncadd [#allocation15], 0
      %s143 = sshll.u32 %s13, 4
      %s144 = int_to_ptr.hbm [resolvable:$true] %s143
      %s145 = sshll.u32 [#allocation16], 4
      %s146 = int_to_ptr.vmem [resolvable:$true] %s145
      %151 = dma.hbm_to_vmem [thread:$0]  %s144, 10240, %s146, [#allocation15], 128, 128, 8
    $region57: #{tpu_custom_call.1} parent=1 // pred_fallthru
      _
    // Predicated region
    $region58: #{tpu_custom_call.1} parent=1 // pred_check
      _
    $region59: #{tpu_custom_call.1} parent=1 // pred_check_branch
      %153 = sbr.rel (0) target = $region61
    $region60: #{tpu_custom_call.1} parent=1 // pred_region
      _
    $region61: #{tpu_custom_call.1} parent=1 // pred_fallthru
      _
    // Predicated region
    $region62: #{tpu_custom_call.1} parent=1 // pred_check
      _
    $region63: #{tpu_custom_call.1} parent=1 // pred_check_branch
      %155 = sbr.rel (0) target = $region65
    $region64: #{tpu_custom_call.1} parent=1 // pred_region
      %157 = vsyncadd [#allocation18], 0
      %s158 = sshll.u32 %s15, 4
      %s159 = int_to_ptr.hbm [resolvable:$true] %s158
      %s160 = sshll.u32 [#allocation17], 4
      %s161 = int_to_ptr.vmem [resolvable:$true] %s160
      %166 = dma.hbm_to_vmem [thread:$0]  %s159, 2048, %s161, [#allocation18], 64, 64, 4
    $region65: #{tpu_custom_call.1} parent=1 // pred_fallthru
      _
    // Predicated region
    $region66: #{tpu_custom_call.1} parent=1 // pred_check
      _
    $region67: #{tpu_custom_call.1} parent=1 // pred_check_branch
      %168 = sbr.rel (0) target = $region69
    $region68: #{tpu_custom_call.1} parent=1 // pred_region
      _
    $region69: #{tpu_custom_call.1} parent=1 // pred_fallthru
      _
    // Predicated region
    $region70: #{tpu_custom_call.1} parent=1 // pred_check
      _
    $region71: #{tpu_custom_call.1} parent=1 // pred_check_branch
      %170 = sbr.rel (0) target = $region73
    $region72: #{tpu_custom_call.1} parent=1 // pred_region
      %172 = dma.done [#allocation3], 64
    $region73: #{tpu_custom_call.1} parent=1 // pred_fallthru
      _
    // Predicated region
    $region74: #{tpu_custom_call.1} parent=1 // pred_check
      _
    $region75: #{tpu_custom_call.1} parent=1 // pred_check_branch
      %174 = sbr.rel (0) target = $region77
    $region76: #{tpu_custom_call.1} parent=1 // pred_region
      %176 = dma.done [#allocation6], 256
    $region77: #{tpu_custom_call.1} parent=1 // pred_fallthru
      _
    // Predicated region
    $region78: #{tpu_custom_call.1} parent=1 // pred_check
      _
    $region79: #{tpu_custom_call.1} parent=1 // pred_check_branch
      %178 = sbr.rel (0) target = $region81
    $region80: #{tpu_custom_call.1} parent=1 // pred_region
      %180 = dma.done [#allocation6], 16
    $region81: #{tpu_custom_call.1} parent=1 // pred_fallthru
      _
    // Predicated region
    $region82: #{tpu_custom_call.1} parent=1 // pred_check
      _
    $region83: #{tpu_custom_call.1} parent=1 // pred_check_branch
      %182 = sbr.rel (0) target = $region85
    $region84: #{tpu_custom_call.1} parent=1 // pred_region
      %184 = dma.done [#allocation9], 1024
    $region85: #{tpu_custom_call.1} parent=1 // pred_fallthru
      _
    // Predicated region
    $region86: #{tpu_custom_call.1} parent=1 // pred_check
      _
    $region87: #{tpu_custom_call.1} parent=1 // pred_check_branch
      %186 = sbr.rel (0) target = $region89
    $region88: #{tpu_custom_call.1} parent=1 // pred_region
      %188 = dma.done [#allocation9], 2048
    $region89: #{tpu_custom_call.1} parent=1 // pred_fallthru
      _
    // Predicated region
    $region90: #{tpu_custom_call.1} parent=1 // pred_check
      _
    $region91: #{tpu_custom_call.1} parent=1 // pred_check_branch
      %190 = sbr.rel (0) target = $region93
    $region92: #{tpu_custom_call.1} parent=1 // pred_region
      %192 = dma.done [#allocation12], 6144
    $region93: #{tpu_custom_call.1} parent=1 // pred_fallthru
      _
    // Predicated region
    $region94: #{tpu_custom_call.1} parent=1 // pred_check
      _
    $region95: #{tpu_custom_call.1} parent=1 // pred_check_branch
      %194 = sbr.rel (0) target = $region97
    $region96: #{tpu_custom_call.1} parent=1 // pred_region
      %196 = dma.done [#allocation12], 15360
    $region97: #{tpu_custom_call.1} parent=1 // pred_fallthru
      _
    // Predicated region
    $region98: #{tpu_custom_call.1} parent=1 // pred_check
      _
    $region99: #{tpu_custom_call.1} parent=1 // pred_check_branch
      %198 = sbr.rel (0) target = $region101
    $region100: #{tpu_custom_call.1} parent=1 // pred_region
      %200 = dma.done [#allocation15], 25600
    $region101: #{tpu_custom_call.1} parent=1 // pred_fallthru
      _
    // Predicated region
    $region102: #{tpu_custom_call.1} parent=1 // pred_check
      _
    $region103: #{tpu_custom_call.1} parent=1 // pred_check_branch
      %202 = sbr.rel (0) target = $region105
    $region104: #{tpu_custom_call.1} parent=1 // pred_region
      %204 = dma.done [#allocation15], 10240
    $region105: #{tpu_custom_call.1} parent=1 // pred_fallthru
      _
    // Predicated region
    $region106: #{tpu_custom_call.1} parent=1 // pred_check
      _
    $region107: #{tpu_custom_call.1} parent=1 // pred_check_branch
      %206 = sbr.rel (0) target = $region109
    $region108: #{tpu_custom_call.1} parent=1 // pred_region
      %208 = dma.done [#allocation18], 2048
    $region109: #{tpu_custom_call.1} parent=1 // pred_fallthru
      _
    %v210 = vld [vmem:[#allocation2] sm:$0xf]
    %v211 = vld [vmem:[#allocation5] sm:$0xf]
    %v212 = vld [vmem:[#allocation5 + $0x4] sm:$0xf]
    %v213 = vld [vmem:[#allocation5 + $0x8] sm:$0xf]
    %v214 = vld [vmem:[#allocation5 + $0xc] sm:$0xf]
    %v215 = vld [vmem:[#allocation7] sm:$0x1]
    %v217 = vperm.slane %v215, 0
    %v223 = vunpack.c.l.b16 %v211
    %v224 = vunpack.c.l.b16 %v212
    %v225 = vunpack.c.l.b16 %v213
    %v226 = vunpack.c.l.b16 %v214
    %v227 = vpack.c.b16 %v224, %v223
    %v228 = vpack.c.b16 %v226, %v225
    %vm231 = vcmask 261120
    %v233 = vsel %vm231, %v210, 0
    %235 = vmatpush.bf16.msra.mxu0 0
    %236 = vmatpush.bf16.msra.mxu0 0
    %237 = vmatpush.bf16.msra.mxu0 0
    %238 = vmatpush.bf16.msra.mxu0 0
    %239 = vmatpush.bf16.msra.mxu0 0
    %240 = vmatpush.bf16.msra.mxu0 0
    %241 = vmatpush.bf16.msra.mxu0 %v228
    %242 = vmatpush.bf16.msra.mxu0 %v227
    %243 = vmatmul.bf16.gmra.mxu0 %v233
    %v244 = vpop.f32.mrf.mxu0
    %v245 = vadd.f32 %v217, %v244
    %v246 = vpop.f32.mrf.mxu0
    %247 = vdwg.mxu0
    %v248 = vmax.f32 %v245, 0.0
    %v249 = vpack.c.bf16 %v248, %v248
    %v250 = vld [vmem:[%s1] sm:$0xff]
    %v251 = vlaneseq
    %v252 = vand.u32 %v251, 127
    %253 = vset.pattern.permute.xlu0 0
    %254 = vperm.xlu0 %253, %v250
    %v255 = vpop.permute.xlu0 %254
    %vm256 = vcmp.eq.s32.totalorder %v252, %v255
    %257 = vset.pattern.permute.xlu0 1
    %258 = vperm.xlu0 %257, %v250
    %v259 = vpop.permute.xlu0 %258
    %vm260 = vcmp.eq.s32.totalorder %v252, %v259
    %vm261 = vmor %vm256, %vm260
    %v262 = vsel %vm261, 1, 0
    %v263 = vcvt.s32.f32 %v262
    %v264 = vpack.c.bf16 %v263, %v263
    %v265 = vld [vmem:[#allocation10] sm:$0xff]
    %v266 = vld [vmem:[#allocation10 + $0x8] sm:$0xff]
    %v267 = vld [vmem:[#allocation10 + $0x10] sm:$0xff]
    %v268 = vld [vmem:[#allocation10 + $0x18] sm:$0xff]
    %v269 = vld [vmem:[#allocation10 + $0x20] sm:$0xff]
    %v270 = vld [vmem:[#allocation10 + $0x28] sm:$0xff]
    %v271 = vld [vmem:[#allocation10 + $0x30] sm:$0xff]
    %v272 = vld [vmem:[#allocation10 + $0x38] sm:$0xff]
    %v273 = vld [vmem:[#allocation10 + $0x40] sm:$0xff]
    %v274 = vld [vmem:[#allocation10 + $0x48] sm:$0xff]
    %v275 = vld [vmem:[#allocation10 + $0x50] sm:$0xff]
    %v276 = vld [vmem:[#allocation10 + $0x58] sm:$0xff]
    %v277 = vld [vmem:[#allocation10 + $0x60] sm:$0xff]
    %v278 = vld [vmem:[#allocation10 + $0x68] sm:$0xff]
    %v279 = vld [vmem:[#allocation10 + $0x70] sm:$0xff]
    %v280 = vld [vmem:[#allocation10 + $0x78] sm:$0xff]
    %v297 = vunpack.c.l.b16 %v265
    %v298 = vunpack.c.h.b16 %v265
    %v299 = vunpack.c.l.b16 %v266
    %v300 = vunpack.c.h.b16 %v266
    %v301 = vunpack.c.l.b16 %v267
    %v302 = vunpack.c.h.b16 %v267
    %v303 = vunpack.c.l.b16 %v268
    %v304 = vunpack.c.h.b16 %v268
    %v305 = vunpack.c.l.b16 %v269
    %v306 = vunpack.c.h.b16 %v269
    %v307 = vunpack.c.l.b16 %v270
    %v308 = vunpack.c.h.b16 %v270
    %v309 = vunpack.c.l.b16 %v271
    %v310 = vunpack.c.h.b16 %v271
    %v311 = vunpack.c.l.b16 %v272
    %v312 = vunpack.c.h.b16 %v272
    %v313 = vunpack.c.l.b16 %v273
    %v314 = vunpack.c.h.b16 %v273
    %v315 = vunpack.c.l.b16 %v274
    %v316 = vunpack.c.h.b16 %v274
    %v317 = vunpack.c.l.b16 %v275
    %v318 = vunpack.c.h.b16 %v275
    %v319 = vunpack.c.l.b16 %v276
    %v320 = vunpack.c.h.b16 %v276
    %v321 = vunpack.c.l.b16 %v277
    %v322 = vunpack.c.h.b16 %v277
    %v323 = vunpack.c.l.b16 %v278
    %v324 = vunpack.c.h.b16 %v278
    %v325 = vunpack.c.l.b16 %v279
    %v326 = vunpack.c.h.b16 %v279
    %v327 = vunpack.c.l.b16 %v280
    %v328 = vunpack.c.h.b16 %v280
    %v329 = vpack.c.b16 %v299, %v297
    %v330 = vpack.c.b16 %v300, %v298
    %v331 = vpack.c.b16 %v303, %v301
    %v332 = vpack.c.b16 %v304, %v302
    %v333 = vpack.c.b16 %v307, %v305
    %v334 = vpack.c.b16 %v308, %v306
    %v335 = vpack.c.b16 %v311, %v309
    %v336 = vpack.c.b16 %v312, %v310
    %v337 = vpack.c.b16 %v315, %v313
    %v338 = vpack.c.b16 %v316, %v314
    %v339 = vpack.c.b16 %v319, %v317
    %v340 = vpack.c.b16 %v320, %v318
    %v341 = vpack.c.b16 %v323, %v321
    %v342 = vpack.c.b16 %v324, %v322
    %v343 = vpack.c.b16 %v327, %v325
    %v344 = vpack.c.b16 %v328, %v326
    %361 = vmatpush.bf16.msra.mxu0 %v343
    %362 = vmatpush.bf16.msra.mxu0 %v341
    %363 = vmatpush.bf16.msra.mxu0 %v339
    %364 = vmatpush.bf16.msra.mxu0 %v337
    %365 = vmatpush.bf16.msra.mxu0 %v335
    %366 = vmatpush.bf16.msra.mxu0 %v333
    %367 = vmatpush.bf16.msra.mxu0 %v331
    %368 = vmatpush.bf16.msra.mxu0 %v329
    %369 = vmatmul.bf16.gmra.mxu0 %v264
    %v370 = vpop.f32.mrf.mxu0
    %v371 = vadd.f32 0.0, %v370
    %v372 = vpop.f32.mrf.mxu0
    %373 = vdwg.mxu0
    %374 = vmatpush.bf16.msra.mxu0 %v344
    %375 = vmatpush.bf16.msra.mxu0 %v342
    %376 = vmatpush.bf16.msra.mxu0 %v340
    %377 = vmatpush.bf16.msra.mxu0 %v338
    %378 = vmatpush.bf16.msra.mxu0 %v336
    %379 = vmatpush.bf16.msra.mxu0 %v334
    %380 = vmatpush.bf16.msra.mxu0 %v332
    %381 = vmatpush.bf16.msra.mxu0 %v330
    %382 = vmatmul.bf16.gmra.mxu0 %v264
    %v383 = vpop.f32.mrf.mxu0
    %v384 = vadd.f32 0.0, %v383
    %v385 = vpop.f32.mrf.mxu0
    %386 = vdwg.mxu0
    %v387 = vld [vmem:[#allocation8] sm:$0xff]
    %v388 = vld [vmem:[#allocation8 + $0x8] sm:$0xff]
    %v389 = vld [vmem:[#allocation8 + $0x10] sm:$0xff]
    %v390 = vld [vmem:[#allocation8 + $0x18] sm:$0xff]
    %v391 = vld [vmem:[#allocation8 + $0x20] sm:$0xff]
    %v392 = vld [vmem:[#allocation8 + $0x28] sm:$0xff]
    %v393 = vld [vmem:[#allocation8 + $0x30] sm:$0xff]
    %v394 = vld [vmem:[#allocation8 + $0x38] sm:$0xff]
    %v403 = vunpack.c.l.b16 %v387
    %v404 = vunpack.c.h.b16 %v387
    %v405 = vunpack.c.l.b16 %v388
    %v406 = vunpack.c.h.b16 %v388
    %v407 = vunpack.c.l.b16 %v389
    %v408 = vunpack.c.h.b16 %v389
    %v409 = vunpack.c.l.b16 %v390
    %v410 = vunpack.c.h.b16 %v390
    %v411 = vunpack.c.l.b16 %v391
    %v412 = vunpack.c.h.b16 %v391
    %v413 = vunpack.c.l.b16 %v392
    %v414 = vunpack.c.h.b16 %v392
    %v415 = vunpack.c.l.b16 %v393
    %v416 = vunpack.c.h.b16 %v393
    %v417 = vunpack.c.l.b16 %v394
    %v418 = vunpack.c.h.b16 %v394
    %v419 = vpack.c.b16 %v405, %v403
    %v420 = vpack.c.b16 %v406, %v404
    %v421 = vpack.c.b16 %v409, %v407
    %v422 = vpack.c.b16 %v410, %v408
    %v423 = vpack.c.b16 %v413, %v411
    %v424 = vpack.c.b16 %v414, %v412
    %v425 = vpack.c.b16 %v417, %v415
    %v426 = vpack.c.b16 %v418, %v416
    %vm435 = vcmask 523264
    %v437 = vsel %vm435, %v249, 0
    %439 = vmatpush.bf16.msra.mxu0 0
    %440 = vmatpush.bf16.msra.mxu0 0
    %441 = vmatpush.bf16.msra.mxu0 0
    %442 = vmatpush.bf16.msra.mxu0 0
    %443 = vmatpush.bf16.msra.mxu0 %v425
    %444 = vmatpush.bf16.msra.mxu0 %v423
    %445 = vmatpush.bf16.msra.mxu0 %v421
    %446 = vmatpush.bf16.msra.mxu0 %v419
    %447 = vmatmul.bf16.gmra.mxu0 %v437
    %v448 = vpop.f32.mrf.mxu0
    %v449 = vadd.f32 %v371, %v448
    %v450 = vpop.f32.mrf.mxu0
    %451 = vdwg.mxu0
    %452 = vmatpush.bf16.msra.mxu0 0
    %453 = vmatpush.bf16.msra.mxu0 0
    %454 = vmatpush.bf16.msra.mxu0 0
    %455 = vmatpush.bf16.msra.mxu0 0
    %456 = vmatpush.bf16.msra.mxu0 %v426
    %457 = vmatpush.bf16.msra.mxu0 %v424
    %458 = vmatpush.bf16.msra.mxu0 %v422
    %459 = vmatpush.bf16.msra.mxu0 %v420
    %460 = vmatmul.bf16.gmra.mxu0 %v437
    %v461 = vpop.f32.mrf.mxu0
    %v462 = vadd.f32 %v384, %v461
    %v463 = vpop.f32.mrf.mxu0
    %464 = vdwg.mxu0
    %v465 = vld [vmem:[%s6] sm:$0x3]
    %v467 = vperm.slane %v465, 0
    %v468 = vperm.slane %v465, 1
    %v471 = vadd.f32 %v449, %v467
    %v472 = vadd.f32 %v462, %v468
    %v473 = vmax.f32 %v471, 0.0
    %v474 = vmax.f32 %v472, 0.0
    %v475 = vpack.c.bf16 %v473, %v473
    %v476 = vpack.c.bf16 %v474, %v474
    %v477 = vld [vmem:[#allocation11] sm:$0xff]
    %v478 = vld [vmem:[#allocation11 + $0x8] sm:$0xf]
    %v479 = vld [vmem:[#allocation11 + $0xc] sm:$0xff]
    %v480 = vld [vmem:[#allocation11 + $0x14] sm:$0xf]
    %v481 = vld [vmem:[#allocation11 + $0x18] sm:$0xff]
    %v482 = vld [vmem:[#allocation11 + $0x20] sm:$0xf]
    %v483 = vld [vmem:[#allocation11 + $0x24] sm:$0xff]
    %v484 = vld [vmem:[#allocation11 + $0x2c] sm:$0xf]
    %v485 = vld [vmem:[#allocation11 + $0x30] sm:$0xff]
    %v486 = vld [vmem:[#allocation11 + $0x38] sm:$0xf]
    %v487 = vld [vmem:[#allocation11 + $0x3c] sm:$0xff]
    %v488 = vld [vmem:[#allocation11 + $0x44] sm:$0xf]
    %v489 = vld [vmem:[#allocation11 + $0x48] sm:$0xff]
    %v490 = vld [vmem:[#allocation11 + $0x50] sm:$0xf]
    %v491 = vld [vmem:[#allocation11 + $0x54] sm:$0xff]
    %v492 = vld [vmem:[#allocation11 + $0x5c] sm:$0xf]
    %v493 = vld [vmem:[#allocation11 + $0x60] sm:$0xff]
    %v494 = vld [vmem:[#allocation11 + $0x68] sm:$0xf]
    %v495 = vld [vmem:[#allocation11 + $0x6c] sm:$0xff]
    %v496 = vld [vmem:[#allocation11 + $0x74] sm:$0xf]
    %v497 = vld [vmem:[#allocation11 + $0x78] sm:$0xff]
    %v498 = vld [vmem:[#allocation11 + $0x80] sm:$0xf]
    %v499 = vld [vmem:[#allocation11 + $0x84] sm:$0xff]
    %v500 = vld [vmem:[#allocation11 + $0x8c] sm:$0xf]
    %v501 = vld [vmem:[#allocation11 + $0x90] sm:$0xff]
    %v502 = vld [vmem:[#allocation11 + $0x98] sm:$0xf]
    %v503 = vld [vmem:[#allocation11 + $0x9c] sm:$0xff]
    %v504 = vld [vmem:[#allocation11 + $0xa4] sm:$0xf]
    %v505 = vld [vmem:[#allocation11 + $0xa8] sm:$0xff]
    %v506 = vld [vmem:[#allocation11 + $0xb0] sm:$0xf]
    %v507 = vld [vmem:[#allocation11 + $0xb4] sm:$0xff]
    %v508 = vld [vmem:[#allocation11 + $0xbc] sm:$0xf]
    %v509 = vld [vmem:[#allocation11 + $0xc0] sm:$0xff]
    %v510 = vld [vmem:[#allocation11 + $0xc8] sm:$0xf]
    %v511 = vld [vmem:[#allocation11 + $0xcc] sm:$0xff]
    %v512 = vld [vmem:[#allocation11 + $0xd4] sm:$0xf]
    %v513 = vld [vmem:[#allocation11 + $0xd8] sm:$0xff]
    %v514 = vld [vmem:[#allocation11 + $0xe0] sm:$0xf]
    %v515 = vld [vmem:[#allocation11 + $0xe4] sm:$0xff]
    %v516 = vld [vmem:[#allocation11 + $0xec] sm:$0xf]
    %v517 = vld [vmem:[#allocation11 + $0xf0] sm:$0xff]
    %v518 = vld [vmem:[#allocation11 + $0xf8] sm:$0xf]
    %v519 = vld [vmem:[#allocation11 + $0xfc] sm:$0xff]
    %v520 = vld [vmem:[#allocation11 + $0x104] sm:$0xf]
    %v521 = vld [vmem:[#allocation11 + $0x108] sm:$0xff]
    %v522 = vld [vmem:[#allocation11 + $0x110] sm:$0xf]
    %v523 = vld [vmem:[#allocation11 + $0x114] sm:$0xff]
    %v524 = vld [vmem:[#allocation11 + $0x11c] sm:$0xf]
    %v525 = vld [vmem:[#allocation11 + $0x120] sm:$0xff]
    %v526 = vld [vmem:[#allocation11 + $0x128] sm:$0xf]
    %v527 = vld [vmem:[#allocation11 + $0x12c] sm:$0xff]
    %v528 = vld [vmem:[#allocation11 + $0x134] sm:$0xf]
    %v529 = vld [vmem:[#allocation11 + $0x138] sm:$0xff]
    %v530 = vld [vmem:[#allocation11 + $0x140] sm:$0xf]
    %v531 = vld [vmem:[#allocation11 + $0x144] sm:$0xff]
    %v532 = vld [vmem:[#allocation11 + $0x14c] sm:$0xf]
    %v533 = vld [vmem:[#allocation11 + $0x150] sm:$0xff]
    %v534 = vld [vmem:[#allocation11 + $0x158] sm:$0xf]
    %v535 = vld [vmem:[#allocation11 + $0x15c] sm:$0xff]
    %v536 = vld [vmem:[#allocation11 + $0x164] sm:$0xf]
    %v537 = vld [vmem:[#allocation11 + $0x168] sm:$0xff]
    %v538 = vld [vmem:[#allocation11 + $0x170] sm:$0xf]
    %v539 = vld [vmem:[#allocation11 + $0x174] sm:$0xff]
    %v540 = vld [vmem:[#allocation11 + $0x17c] sm:$0xf]
    %v541 = vld [vmem:[%s8] sm:$0x7]
    %v543 = vperm.slane %v541, 0
    %v544 = vperm.slane %v541, 1
    %v545 = vperm.slane %v541, 2
    %v613 = vunpack.c.l.b16 %v477
    %v614 = vunpack.c.h.b16 %v477
    %v615 = vunpack.c.l.b16 %v478
    %v616 = vunpack.c.l.b16 %v479
    %v617 = vunpack.c.h.b16 %v479
    %v618 = vunpack.c.l.b16 %v480
    %v619 = vunpack.c.l.b16 %v481
    %v620 = vunpack.c.h.b16 %v481
    %v621 = vunpack.c.l.b16 %v482
    %v622 = vunpack.c.l.b16 %v483
    %v623 = vunpack.c.h.b16 %v483
    %v624 = vunpack.c.l.b16 %v484
    %v625 = vunpack.c.l.b16 %v485
    %v626 = vunpack.c.h.b16 %v485
    %v627 = vunpack.c.l.b16 %v486
    %v628 = vunpack.c.l.b16 %v487
    %v629 = vunpack.c.h.b16 %v487
    %v630 = vunpack.c.l.b16 %v488
    %v631 = vunpack.c.l.b16 %v489
    %v632 = vunpack.c.h.b16 %v489
    %v633 = vunpack.c.l.b16 %v490
    %v634 = vunpack.c.l.b16 %v491
    %v635 = vunpack.c.h.b16 %v491
    %v636 = vunpack.c.l.b16 %v492
    %v637 = vunpack.c.l.b16 %v493
    %v638 = vunpack.c.h.b16 %v493
    %v639 = vunpack.c.l.b16 %v494
    %v640 = vunpack.c.l.b16 %v495
    %v641 = vunpack.c.h.b16 %v495
    %v642 = vunpack.c.l.b16 %v496
    %v643 = vunpack.c.l.b16 %v497
    %v644 = vunpack.c.h.b16 %v497
    %v645 = vunpack.c.l.b16 %v498
    %v646 = vunpack.c.l.b16 %v499
    %v647 = vunpack.c.h.b16 %v499
    %v648 = vunpack.c.l.b16 %v500
    %v649 = vunpack.c.l.b16 %v501
    %v650 = vunpack.c.h.b16 %v501
    %v651 = vunpack.c.l.b16 %v502
    %v652 = vunpack.c.l.b16 %v503
    %v653 = vunpack.c.h.b16 %v503
    %v654 = vunpack.c.l.b16 %v504
    %v655 = vunpack.c.l.b16 %v505
    %v656 = vunpack.c.h.b16 %v505
    %v657 = vunpack.c.l.b16 %v506
    %v658 = vunpack.c.l.b16 %v507
    %v659 = vunpack.c.h.b16 %v507
    %v660 = vunpack.c.l.b16 %v508
    %v661 = vunpack.c.l.b16 %v509
    %v662 = vunpack.c.h.b16 %v509
    %v663 = vunpack.c.l.b16 %v510
    %v664 = vunpack.c.l.b16 %v511
    %v665 = vunpack.c.h.b16 %v511
    %v666 = vunpack.c.l.b16 %v512
    %v667 = vunpack.c.l.b16 %v513
    %v668 = vunpack.c.h.b16 %v513
    %v669 = vunpack.c.l.b16 %v514
    %v670 = vunpack.c.l.b16 %v515
    %v671 = vunpack.c.h.b16 %v515
    %v672 = vunpack.c.l.b16 %v516
    %v673 = vunpack.c.l.b16 %v517
    %v674 = vunpack.c.h.b16 %v517
    %v675 = vunpack.c.l.b16 %v518
    %v676 = vunpack.c.l.b16 %v519
    %v677 = vunpack.c.h.b16 %v519
    %v678 = vunpack.c.l.b16 %v520
    %v679 = vunpack.c.l.b16 %v521
    %v680 = vunpack.c.h.b16 %v521
    %v681 = vunpack.c.l.b16 %v522
    %v682 = vunpack.c.l.b16 %v523
    %v683 = vunpack.c.h.b16 %v523
    %v684 = vunpack.c.l.b16 %v524
    %v685 = vunpack.c.l.b16 %v525
    %v686 = vunpack.c.h.b16 %v525
    %v687 = vunpack.c.l.b16 %v526
    %v688 = vunpack.c.l.b16 %v527
    %v689 = vunpack.c.h.b16 %v527
    %v690 = vunpack.c.l.b16 %v528
    %v691 = vunpack.c.l.b16 %v529
    %v692 = vunpack.c.h.b16 %v529
    %v693 = vunpack.c.l.b16 %v530
    %v694 = vunpack.c.l.b16 %v531
    %v695 = vunpack.c.h.b16 %v531
    %v696 = vunpack.c.l.b16 %v532
    %v697 = vunpack.c.l.b16 %v533
    %v698 = vunpack.c.h.b16 %v533
    %v699 = vunpack.c.l.b16 %v534
    %v700 = vunpack.c.l.b16 %v535
    %v701 = vunpack.c.h.b16 %v535
    %v702 = vunpack.c.l.b16 %v536
    %v703 = vunpack.c.l.b16 %v537
    %v704 = vunpack.c.h.b16 %v537
    %v705 = vunpack.c.l.b16 %v538
    %v706 = vunpack.c.l.b16 %v539
    %v707 = vunpack.c.h.b16 %v539
    %v708 = vunpack.c.l.b16 %v540
    %v709 = vpack.c.b16 %v616, %v613
    %v710 = vpack.c.b16 %v617, %v614
    %v711 = vpack.c.b16 %v618, %v615
    %v712 = vpack.c.b16 %v622, %v619
    %v713 = vpack.c.b16 %v623, %v620
    %v714 = vpack.c.b16 %v624, %v621
    %v715 = vpack.c.b16 %v628, %v625
    %v716 = vpack.c.b16 %v629, %v626
    %v717 = vpack.c.b16 %v630, %v627
    %v718 = vpack.c.b16 %v634, %v631
    %v719 = vpack.c.b16 %v635, %v632
    %v720 = vpack.c.b16 %v636, %v633
    %v721 = vpack.c.b16 %v640, %v637
    %v722 = vpack.c.b16 %v641, %v638
    %v723 = vpack.c.b16 %v642, %v639
    %v724 = vpack.c.b16 %v646, %v643
    %v725 = vpack.c.b16 %v647, %v644
    %v726 = vpack.c.b16 %v648, %v645
    %v727 = vpack.c.b16 %v652, %v649
    %v728 = vpack.c.b16 %v653, %v650
    %v729 = vpack.c.b16 %v654, %v651
    %v730 = vpack.c.b16 %v658, %v655
    %v731 = vpack.c.b16 %v659, %v656
    %v732 = vpack.c.b16 %v660, %v657
    %v733 = vpack.c.b16 %v664, %v661
    %v734 = vpack.c.b16 %v665, %v662
    %v735 = vpack.c.b16 %v666, %v663
    %v736 = vpack.c.b16 %v670, %v667
    %v737 = vpack.c.b16 %v671, %v668
    %v738 = vpack.c.b16 %v672, %v669
    %v739 = vpack.c.b16 %v676, %v673
    %v740 = vpack.c.b16 %v677, %v674
    %v741 = vpack.c.b16 %v678, %v675
    %v742 = vpack.c.b16 %v682, %v679
    %v743 = vpack.c.b16 %v683, %v680
    %v744 = vpack.c.b16 %v684, %v681
    %v745 = vpack.c.b16 %v688, %v685
    %v746 = vpack.c.b16 %v689, %v686
    %v747 = vpack.c.b16 %v690, %v687
    %v748 = vpack.c.b16 %v694, %v691
    %v749 = vpack.c.b16 %v695, %v692
    %v750 = vpack.c.b16 %v696, %v693
    %v751 = vpack.c.b16 %v700, %v697
    %v752 = vpack.c.b16 %v701, %v698
    %v753 = vpack.c.b16 %v702, %v699
    %v754 = vpack.c.b16 %v706, %v703
    %v755 = vpack.c.b16 %v707, %v704
    %v756 = vpack.c.b16 %v708, %v705
    %805 = vmatpush.bf16.msra.mxu0 %v730
    %806 = vmatpush.bf16.msra.mxu0 %v727
    %807 = vmatpush.bf16.msra.mxu0 %v724
    %808 = vmatpush.bf16.msra.mxu0 %v721
    %809 = vmatpush.bf16.msra.mxu0 %v718
    %810 = vmatpush.bf16.msra.mxu0 %v715
    %811 = vmatpush.bf16.msra.mxu0 %v712
    %812 = vmatpush.bf16.msra.mxu0 %v709
    %813 = vmatmul.bf16.gmra.mxu0 %v475
    %v814 = vpop.f32.mrf.mxu0
    %v815 = vadd.f32 %v543, %v814
    %v816 = vpop.f32.mrf.mxu0
    %817 = vdwg.mxu0
    %818 = vmatpush.bf16.msra.mxu0 %v754
    %819 = vmatpush.bf16.msra.mxu0 %v751
    %820 = vmatpush.bf16.msra.mxu0 %v748
    %821 = vmatpush.bf16.msra.mxu0 %v745
    %822 = vmatpush.bf16.msra.mxu0 %v742
    %823 = vmatpush.bf16.msra.mxu0 %v739
    %824 = vmatpush.bf16.msra.mxu0 %v736
    %825 = vmatpush.bf16.msra.mxu0 %v733
    %826 = vmatmul.bf16.gmra.mxu0 %v476
    %v827 = vpop.f32.mrf.mxu0
    %v828 = vadd.f32 %v815, %v827
    %v829 = vpop.f32.mrf.mxu0
    %830 = vdwg.mxu0
    %831 = vmatpush.bf16.msra.mxu0 %v731
    %832 = vmatpush.bf16.msra.mxu0 %v728
    %833 = vmatpush.bf16.msra.mxu0 %v725
    %834 = vmatpush.bf16.msra.mxu0 %v722
    %835 = vmatpush.bf16.msra.mxu0 %v719
    %836 = vmatpush.bf16.msra.mxu0 %v716
    %837 = vmatpush.bf16.msra.mxu0 %v713
    %838 = vmatpush.bf16.msra.mxu0 %v710
    %839 = vmatmul.bf16.gmra.mxu0 %v475
    %v840 = vpop.f32.mrf.mxu0
    %v841 = vadd.f32 %v544, %v840
    %v842 = vpop.f32.mrf.mxu0
    %843 = vdwg.mxu0
    %844 = vmatpush.bf16.msra.mxu0 %v755
    %845 = vmatpush.bf16.msra.mxu0 %v752
    %846 = vmatpush.bf16.msra.mxu0 %v749
    %847 = vmatpush.bf16.msra.mxu0 %v746
    %848 = vmatpush.bf16.msra.mxu0 %v743
    %849 = vmatpush.bf16.msra.mxu0 %v740
    %850 = vmatpush.bf16.msra.mxu0 %v737
    %851 = vmatpush.bf16.msra.mxu0 %v734
    %852 = vmatmul.bf16.gmra.mxu0 %v476
    %v853 = vpop.f32.mrf.mxu0
    %v854 = vadd.f32 %v841, %v853
    %v855 = vpop.f32.mrf.mxu0
    %856 = vdwg.mxu0
    %857 = vmatpush.bf16.msra.mxu0 %v732
    %858 = vmatpush.bf16.msra.mxu0 %v729
    %859 = vmatpush.bf16.msra.mxu0 %v726
    %860 = vmatpush.bf16.msra.mxu0 %v723
    %861 = vmatpush.bf16.msra.mxu0 %v720
    %862 = vmatpush.bf16.msra.mxu0 %v717
    %863 = vmatpush.bf16.msra.mxu0 %v714
    %864 = vmatpush.bf16.msra.mxu0 %v711
    %865 = vmatmul.bf16.gmra.mxu0 %v475
    %v866 = vpop.f32.mrf.mxu0
    %v867 = vadd.f32 %v545, %v866
    %v868 = vpop.f32.mrf.mxu0
    %869 = vdwg.mxu0
    %870 = vmatpush.bf16.msra.mxu0 %v756
    %871 = vmatpush.bf16.msra.mxu0 %v753
    %872 = vmatpush.bf16.msra.mxu0 %v750
    %873 = vmatpush.bf16.msra.mxu0 %v747
    %874 = vmatpush.bf16.msra.mxu0 %v744
    %875 = vmatpush.bf16.msra.mxu0 %v741
    %876 = vmatpush.bf16.msra.mxu0 %v738
    %877 = vmatpush.bf16.msra.mxu0 %v735
    %878 = vmatmul.bf16.gmra.mxu0 %v476
    %v879 = vpop.f32.mrf.mxu0
    %v880 = vadd.f32 %v867, %v879
    %v881 = vpop.f32.mrf.mxu0
    %882 = vdwg.mxu0
    %v883 = vmax.f32 %v828, 0.0
    %v884 = vmax.f32 %v854, 0.0
    %v885 = vmax.f32 %v880, 0.0
    %v886 = vpack.c.bf16 %v883, %v883
    %v887 = vpack.c.bf16 %v884, %v884
    %v888 = vpack.c.bf16 %v885, %v885
    %v889 = vld [vmem:[#allocation13] sm:$0xff]
    %v890 = vld [vmem:[#allocation13 + $0x8] sm:$0xff]
    %v891 = vld [vmem:[#allocation13 + $0x10] sm:$0xf]
    %v892 = vld [vmem:[#allocation13 + $0x14] sm:$0xff]
    %v893 = vld [vmem:[#allocation13 + $0x1c] sm:$0xff]
    %v894 = vld [vmem:[#allocation13 + $0x24] sm:$0xf]
    %v895 = vld [vmem:[#allocation13 + $0x28] sm:$0xff]
    %v896 = vld [vmem:[#allocation13 + $0x30] sm:$0xff]
    %v897 = vld [vmem:[#allocation13 + $0x38] sm:$0xf]
    %v898 = vld [vmem:[#allocation13 + $0x3c] sm:$0xff]
    %v899 = vld [vmem:[#allocation13 + $0x44] sm:$0xff]
    %v900 = vld [vmem:[#allocation13 + $0x4c] sm:$0xf]
    %v901 = vld [vmem:[#allocation13 + $0x50] sm:$0xff]
    %v902 = vld [vmem:[#allocation13 + $0x58] sm:$0xff]
    %v903 = vld [vmem:[#allocation13 + $0x60] sm:$0xf]
    %v904 = vld [vmem:[#allocation13 + $0x64] sm:$0xff]
    %v905 = vld [vmem:[#allocation13 + $0x6c] sm:$0xff]
    %v906 = vld [vmem:[#allocation13 + $0x74] sm:$0xf]
    %v907 = vld [vmem:[#allocation13 + $0x78] sm:$0xff]
    %v908 = vld [vmem:[#allocation13 + $0x80] sm:$0xff]
    %v909 = vld [vmem:[#allocation13 + $0x88] sm:$0xf]
    %v910 = vld [vmem:[#allocation13 + $0x8c] sm:$0xff]
    %v911 = vld [vmem:[#allocation13 + $0x94] sm:$0xff]
    %v912 = vld [vmem:[#allocation13 + $0x9c] sm:$0xf]
    %v913 = vld [vmem:[#allocation13 + $0xa0] sm:$0xff]
    %v914 = vld [vmem:[#allocation13 + $0xa8] sm:$0xff]
    %v915 = vld [vmem:[#allocation13 + $0xb0] sm:$0xf]
    %v916 = vld [vmem:[#allocation13 + $0xb4] sm:$0xff]
    %v917 = vld [vmem:[#allocation13 + $0xbc] sm:$0xff]
    %v918 = vld [vmem:[#allocation13 + $0xc4] sm:$0xf]
    %v919 = vld [vmem:[#allocation13 + $0xc8] sm:$0xff]
    %v920 = vld [vmem:[#allocation13 + $0xd0] sm:$0xff]
    %v921 = vld [vmem:[#allocation13 + $0xd8] sm:$0xf]
    %v922 = vld [vmem:[#allocation13 + $0xdc] sm:$0xff]
    %v923 = vld [vmem:[#allocation13 + $0xe4] sm:$0xff]
    %v924 = vld [vmem:[#allocation13 + $0xec] sm:$0xf]
    %v925 = vld [vmem:[#allocation13 + $0xf0] sm:$0xff]
    %v926 = vld [vmem:[#allocation13 + $0xf8] sm:$0xff]
    %v927 = vld [vmem:[#allocation13 + $0x100] sm:$0xf]
    %v928 = vld [vmem:[#allocation13 + $0x104] sm:$0xff]
    %v929 = vld [vmem:[#allocation13 + $0x10c] sm:$0xff]
    %v930 = vld [vmem:[#allocation13 + $0x114] sm:$0xf]
    %v931 = vld [vmem:[#allocation13 + $0x118] sm:$0xff]
    %v932 = vld [vmem:[#allocation13 + $0x120] sm:$0xff]
    %v933 = vld [vmem:[#allocation13 + $0x128] sm:$0xf]
    %v934 = vld [vmem:[#allocation13 + $0x12c] sm:$0xff]
    %v935 = vld [vmem:[#allocation13 + $0x134] sm:$0xff]
    %v936 = vld [vmem:[#allocation13 + $0x13c] sm:$0xf]
    %v937 = vld [vmem:[#allocation13 + $0x140] sm:$0xff]
    %v938 = vld [vmem:[#allocation13 + $0x148] sm:$0xff]
    %v939 = vld [vmem:[#allocation13 + $0x150] sm:$0xf]
    %v940 = vld [vmem:[#allocation13 + $0x154] sm:$0xff]
    %v941 = vld [vmem:[#allocation13 + $0x15c] sm:$0xff]
    %v942 = vld [vmem:[#allocation13 + $0x164] sm:$0xf]
    %v943 = vld [vmem:[#allocation13 + $0x168] sm:$0xff]
    %v944 = vld [vmem:[#allocation13 + $0x170] sm:$0xff]
    %v945 = vld [vmem:[#allocation13 + $0x178] sm:$0xf]
    %v946 = vld [vmem:[#allocation13 + $0x17c] sm:$0xff]
    %v947 = vld [vmem:[#allocation13 + $0x184] sm:$0xff]
    %v948 = vld [vmem:[#allocation13 + $0x18c] sm:$0xf]
    %v949 = vld [vmem:[#allocation13 + $0x190] sm:$0xff]
    %v950 = vld [vmem:[#allocation13 + $0x198] sm:$0xff]
    %v951 = vld [vmem:[#allocation13 + $0x1a0] sm:$0xf]
    %v952 = vld [vmem:[#allocation13 + $0x1a4] sm:$0xff]
    %v953 = vld [vmem:[#allocation13 + $0x1ac] sm:$0xff]
    %v954 = vld [vmem:[#allocation13 + $0x1b4] sm:$0xf]
    %v955 = vld [vmem:[#allocation13 + $0x1b8] sm:$0xff]
    %v956 = vld [vmem:[#allocation13 + $0x1c0] sm:$0xff]
    %v957 = vld [vmem:[#allocation13 + $0x1c8] sm:$0xf]
    %v958 = vld [vmem:[#allocation13 + $0x1cc] sm:$0xff]
    %v959 = vld [vmem:[#allocation13 + $0x1d4] sm:$0xff]
    %v960 = vld [vmem:[#allocation13 + $0x1dc] sm:$0xf]
    %v961 = vld [vmem:[#allocation13 + $0x1e0] sm:$0xff]
    %v962 = vld [vmem:[#allocation13 + $0x1e8] sm:$0xff]
    %v963 = vld [vmem:[#allocation13 + $0x1f0] sm:$0xf]
    %v964 = vld [vmem:[#allocation13 + $0x1f4] sm:$0xff]
    %v965 = vld [vmem:[#allocation13 + $0x1fc] sm:$0xff]
    %v966 = vld [vmem:[#allocation13 + $0x204] sm:$0xf]
    %v967 = vld [vmem:[#allocation13 + $0x208] sm:$0xff]
    %v968 = vld [vmem:[#allocation13 + $0x210] sm:$0xff]
    %v969 = vld [vmem:[#allocation13 + $0x218] sm:$0xf]
    %v970 = vld [vmem:[#allocation13 + $0x21c] sm:$0xff]
    %v971 = vld [vmem:[#allocation13 + $0x224] sm:$0xff]
    %v972 = vld [vmem:[#allocation13 + $0x22c] sm:$0xf]
    %v973 = vld [vmem:[#allocation13 + $0x230] sm:$0xff]
    %v974 = vld [vmem:[#allocation13 + $0x238] sm:$0xff]
    %v975 = vld [vmem:[#allocation13 + $0x240] sm:$0xf]
    %v976 = vld [vmem:[#allocation13 + $0x244] sm:$0xff]
    %v977 = vld [vmem:[#allocation13 + $0x24c] sm:$0xff]
    %v978 = vld [vmem:[#allocation13 + $0x254] sm:$0xf]
    %v979 = vld [vmem:[#allocation13 + $0x258] sm:$0xff]
    %v980 = vld [vmem:[#allocation13 + $0x260] sm:$0xff]
    %v981 = vld [vmem:[#allocation13 + $0x268] sm:$0xf]
    %v982 = vld [vmem:[#allocation13 + $0x26c] sm:$0xff]
    %v983 = vld [vmem:[#allocation13 + $0x274] sm:$0xff]
    %v984 = vld [vmem:[#allocation13 + $0x27c] sm:$0xf]
    %v985 = vld [vmem:[#allocation13 + $0x280] sm:$0xff]
    %v986 = vld [vmem:[#allocation13 + $0x288] sm:$0xff]
    %v987 = vld [vmem:[#allocation13 + $0x290] sm:$0xf]
    %v988 = vld [vmem:[#allocation13 + $0x294] sm:$0xff]
    %v989 = vld [vmem:[#allocation13 + $0x29c] sm:$0xff]
    %v990 = vld [vmem:[#allocation13 + $0x2a4] sm:$0xf]
    %v991 = vld [vmem:[#allocation13 + $0x2a8] sm:$0xff]
    %v992 = vld [vmem:[#allocation13 + $0x2b0] sm:$0xff]
    %v993 = vld [vmem:[#allocation13 + $0x2b8] sm:$0xf]
    %v994 = vld [vmem:[#allocation13 + $0x2bc] sm:$0xff]
    %v995 = vld [vmem:[#allocation13 + $0x2c4] sm:$0xff]
    %v996 = vld [vmem:[#allocation13 + $0x2cc] sm:$0xf]
    %v997 = vld [vmem:[#allocation13 + $0x2d0] sm:$0xff]
    %v998 = vld [vmem:[#allocation13 + $0x2d8] sm:$0xff]
    %v999 = vld [vmem:[#allocation13 + $0x2e0] sm:$0xf]
    %v1000 = vld [vmem:[#allocation13 + $0x2e4] sm:$0xff]
    %v1001 = vld [vmem:[#allocation13 + $0x2ec] sm:$0xff]
    %v1002 = vld [vmem:[#allocation13 + $0x2f4] sm:$0xf]
    %v1003 = vld [vmem:[#allocation13 + $0x2f8] sm:$0xff]
    %v1004 = vld [vmem:[#allocation13 + $0x300] sm:$0xff]
    %v1005 = vld [vmem:[#allocation13 + $0x308] sm:$0xf]
    %v1006 = vld [vmem:[#allocation13 + $0x30c] sm:$0xff]
    %v1007 = vld [vmem:[#allocation13 + $0x314] sm:$0xff]
    %v1008 = vld [vmem:[#allocation13 + $0x31c] sm:$0xf]
    %v1009 = vld [vmem:[#allocation13 + $0x320] sm:$0xff]
    %v1010 = vld [vmem:[#allocation13 + $0x328] sm:$0xff]
    %v1011 = vld [vmem:[#allocation13 + $0x330] sm:$0xf]
    %v1012 = vld [vmem:[#allocation13 + $0x334] sm:$0xff]
    %v1013 = vld [vmem:[#allocation13 + $0x33c] sm:$0xff]
    %v1014 = vld [vmem:[#allocation13 + $0x344] sm:$0xf]
    %v1015 = vld [vmem:[#allocation13 + $0x348] sm:$0xff]
    %v1016 = vld [vmem:[#allocation13 + $0x350] sm:$0xff]
    %v1017 = vld [vmem:[#allocation13 + $0x358] sm:$0xf]
    %v1018 = vld [vmem:[#allocation13 + $0x35c] sm:$0xff]
    %v1019 = vld [vmem:[#allocation13 + $0x364] sm:$0xff]
    %v1020 = vld [vmem:[#allocation13 + $0x36c] sm:$0xf]
    %v1021 = vld [vmem:[#allocation13 + $0x370] sm:$0xff]
    %v1022 = vld [vmem:[#allocation13 + $0x378] sm:$0xff]
    %v1023 = vld [vmem:[#allocation13 + $0x380] sm:$0xf]
    %v1024 = vld [vmem:[#allocation13 + $0x384] sm:$0xff]
    %v1025 = vld [vmem:[#allocation13 + $0x38c] sm:$0xff]
    %v1026 = vld [vmem:[#allocation13 + $0x394] sm:$0xf]
    %v1027 = vld [vmem:[#allocation13 + $0x398] sm:$0xff]
    %v1028 = vld [vmem:[#allocation13 + $0x3a0] sm:$0xff]
    %v1029 = vld [vmem:[#allocation13 + $0x3a8] sm:$0xf]
    %v1030 = vld [vmem:[#allocation13 + $0x3ac] sm:$0xff]
    %v1031 = vld [vmem:[#allocation13 + $0x3b4] sm:$0xff]
    %v1032 = vld [vmem:[#allocation13 + $0x3bc] sm:$0xf]
    %v1033 = vld [vmem:[%s10] sm:$0x1f]
    %v1035 = vperm.slane %v1033, 0
    %v1036 = vperm.slane %v1033, 1
    %v1037 = vperm.slane %v1033, 2
    %v1038 = vperm.slane %v1033, 3
    %v1039 = vperm.slane %v1033, 4
    %v1189 = vunpack.c.l.b16 %v889
    %v1190 = vunpack.c.h.b16 %v889
    %v1191 = vunpack.c.l.b16 %v890
    %v1192 = vunpack.c.h.b16 %v890
    %v1193 = vunpack.c.l.b16 %v891
    %v1194 = vunpack.c.l.b16 %v892
    %v1195 = vunpack.c.h.b16 %v892
    %v1196 = vunpack.c.l.b16 %v893
    %v1197 = vunpack.c.h.b16 %v893
    %v1198 = vunpack.c.l.b16 %v894
    %v1199 = vunpack.c.l.b16 %v895
    %v1200 = vunpack.c.h.b16 %v895
    %v1201 = vunpack.c.l.b16 %v896
    %v1202 = vunpack.c.h.b16 %v896
    %v1203 = vunpack.c.l.b16 %v897
    %v1204 = vunpack.c.l.b16 %v898
    %v1205 = vunpack.c.h.b16 %v898
    %v1206 = vunpack.c.l.b16 %v899
    %v1207 = vunpack.c.h.b16 %v899
    %v1208 = vunpack.c.l.b16 %v900
    %v1209 = vunpack.c.l.b16 %v901
    %v1210 = vunpack.c.h.b16 %v901
    %v1211 = vunpack.c.l.b16 %v902
    %v1212 = vunpack.c.h.b16 %v902
    %v1213 = vunpack.c.l.b16 %v903
    %v1214 = vunpack.c.l.b16 %v904
    %v1215 = vunpack.c.h.b16 %v904
    %v1216 = vunpack.c.l.b16 %v905
    %v1217 = vunpack.c.h.b16 %v905
    %v1218 = vunpack.c.l.b16 %v906
    %v1219 = vunpack.c.l.b16 %v907
    %v1220 = vunpack.c.h.b16 %v907
    %v1221 = vunpack.c.l.b16 %v908
    %v1222 = vunpack.c.h.b16 %v908
    %v1223 = vunpack.c.l.b16 %v909
    %v1224 = vunpack.c.l.b16 %v910
    %v1225 = vunpack.c.h.b16 %v910
    %v1226 = vunpack.c.l.b16 %v911
    %v1227 = vunpack.c.h.b16 %v911
    %v1228 = vunpack.c.l.b16 %v912
    %v1229 = vunpack.c.l.b16 %v913
    %v1230 = vunpack.c.h.b16 %v913
    %v1231 = vunpack.c.l.b16 %v914
    %v1232 = vunpack.c.h.b16 %v914
    %v1233 = vunpack.c.l.b16 %v915
    %v1234 = vunpack.c.l.b16 %v916
    %v1235 = vunpack.c.h.b16 %v916
    %v1236 = vunpack.c.l.b16 %v917
    %v1237 = vunpack.c.h.b16 %v917
    %v1238 = vunpack.c.l.b16 %v918
    %v1239 = vunpack.c.l.b16 %v919
    %v1240 = vunpack.c.h.b16 %v919
    %v1241 = vunpack.c.l.b16 %v920
    %v1242 = vunpack.c.h.b16 %v920
    %v1243 = vunpack.c.l.b16 %v921
    %v1244 = vunpack.c.l.b16 %v922
    %v1245 = vunpack.c.h.b16 %v922
    %v1246 = vunpack.c.l.b16 %v923
    %v1247 = vunpack.c.h.b16 %v923
    %v1248 = vunpack.c.l.b16 %v924
    %v1249 = vunpack.c.l.b16 %v925
    %v1250 = vunpack.c.h.b16 %v925
    %v1251 = vunpack.c.l.b16 %v926
    %v1252 = vunpack.c.h.b16 %v926
    %v1253 = vunpack.c.l.b16 %v927
    %v1254 = vunpack.c.l.b16 %v928
    %v1255 = vunpack.c.h.b16 %v928
    %v1256 = vunpack.c.l.b16 %v929
    %v1257 = vunpack.c.h.b16 %v929
    %v1258 = vunpack.c.l.b16 %v930
    %v1259 = vunpack.c.l.b16 %v931
    %v1260 = vunpack.c.h.b16 %v931
    %v1261 = vunpack.c.l.b16 %v932
    %v1262 = vunpack.c.h.b16 %v932
    %v1263 = vunpack.c.l.b16 %v933
    %v1264 = vunpack.c.l.b16 %v934
    %v1265 = vunpack.c.h.b16 %v934
    %v1266 = vunpack.c.l.b16 %v935
    %v1267 = vunpack.c.h.b16 %v935
    %v1268 = vunpack.c.l.b16 %v936
    %v1269 = vunpack.c.l.b16 %v937
    %v1270 = vunpack.c.h.b16 %v937
    %v1271 = vunpack.c.l.b16 %v938
    %v1272 = vunpack.c.h.b16 %v938
    %v1273 = vunpack.c.l.b16 %v939
    %v1274 = vunpack.c.l.b16 %v940
    %v1275 = vunpack.c.h.b16 %v940
    %v1276 = vunpack.c.l.b16 %v941
    %v1277 = vunpack.c.h.b16 %v941
    %v1278 = vunpack.c.l.b16 %v942
    %v1279 = vunpack.c.l.b16 %v943
    %v1280 = vunpack.c.h.b16 %v943
    %v1281 = vunpack.c.l.b16 %v944
    %v1282 = vunpack.c.h.b16 %v944
    %v1283 = vunpack.c.l.b16 %v945
    %v1284 = vunpack.c.l.b16 %v946
    %v1285 = vunpack.c.h.b16 %v946
    %v1286 = vunpack.c.l.b16 %v947
    %v1287 = vunpack.c.h.b16 %v947
    %v1288 = vunpack.c.l.b16 %v948
    %v1289 = vunpack.c.l.b16 %v949
    %v1290 = vunpack.c.h.b16 %v949
    %v1291 = vunpack.c.l.b16 %v950
    %v1292 = vunpack.c.h.b16 %v950
    %v1293 = vunpack.c.l.b16 %v951
    %v1294 = vunpack.c.l.b16 %v952
    %v1295 = vunpack.c.h.b16 %v952
    %v1296 = vunpack.c.l.b16 %v953
    %v1297 = vunpack.c.h.b16 %v953
    %v1298 = vunpack.c.l.b16 %v954
    %v1299 = vunpack.c.l.b16 %v955
    %v1300 = vunpack.c.h.b16 %v955
    %v1301 = vunpack.c.l.b16 %v956
    %v1302 = vunpack.c.h.b16 %v956
    %v1303 = vunpack.c.l.b16 %v957
    %v1304 = vunpack.c.l.b16 %v958
    %v1305 = vunpack.c.h.b16 %v958
    %v1306 = vunpack.c.l.b16 %v959
    %v1307 = vunpack.c.h.b16 %v959
    %v1308 = vunpack.c.l.b16 %v960
    %v1309 = vunpack.c.l.b16 %v961
    %v1310 = vunpack.c.h.b16 %v961
    %v1311 = vunpack.c.l.b16 %v962
    %v1312 = vunpack.c.h.b16 %v962
    %v1313 = vunpack.c.l.b16 %v963
    %v1314 = vunpack.c.l.b16 %v964
    %v1315 = vunpack.c.h.b16 %v964
    %v1316 = vunpack.c.l.b16 %v965
    %v1317 = vunpack.c.h.b16 %v965
    %v1318 = vunpack.c.l.b16 %v966
    %v1319 = vunpack.c.l.b16 %v967
    %v1320 = vunpack.c.h.b16 %v967
    %v1321 = vunpack.c.l.b16 %v968
    %v1322 = vunpack.c.h.b16 %v968
    %v1323 = vunpack.c.l.b16 %v969
    %v1324 = vunpack.c.l.b16 %v970
    %v1325 = vunpack.c.h.b16 %v970
    %v1326 = vunpack.c.l.b16 %v971
    %v1327 = vunpack.c.h.b16 %v971
    %v1328 = vunpack.c.l.b16 %v972
    %v1329 = vunpack.c.l.b16 %v973
    %v1330 = vunpack.c.h.b16 %v973
    %v1331 = vunpack.c.l.b16 %v974
    %v1332 = vunpack.c.h.b16 %v974
    %v1333 = vunpack.c.l.b16 %v975
    %v1334 = vunpack.c.l.b16 %v976
    %v1335 = vunpack.c.h.b16 %v976
    %v1336 = vunpack.c.l.b16 %v977
    %v1337 = vunpack.c.h.b16 %v977
    %v1338 = vunpack.c.l.b16 %v978
    %v1339 = vunpack.c.l.b16 %v979
    %v1340 = vunpack.c.h.b16 %v979
    %v1341 = vunpack.c.l.b16 %v980
    %v1342 = vunpack.c.h.b16 %v980
    %v1343 = vunpack.c.l.b16 %v981
    %v1344 = vunpack.c.l.b16 %v982
    %v1345 = vunpack.c.h.b16 %v982
    %v1346 = vunpack.c.l.b16 %v983
    %v1347 = vunpack.c.h.b16 %v983
    %v1348 = vunpack.c.l.b16 %v984
    %v1349 = vunpack.c.l.b16 %v985
    %v1350 = vunpack.c.h.b16 %v985
    %v1351 = vunpack.c.l.b16 %v986
    %v1352 = vunpack.c.h.b16 %v986
    %v1353 = vunpack.c.l.b16 %v987
    %v1354 = vunpack.c.l.b16 %v988
    %v1355 = vunpack.c.h.b16 %v988
    %v1356 = vunpack.c.l.b16 %v989
    %v1357 = vunpack.c.h.b16 %v989
    %v1358 = vunpack.c.l.b16 %v990
    %v1359 = vunpack.c.l.b16 %v991
    %v1360 = vunpack.c.h.b16 %v991
    %v1361 = vunpack.c.l.b16 %v992
    %v1362 = vunpack.c.h.b16 %v992
    %v1363 = vunpack.c.l.b16 %v993
    %v1364 = vunpack.c.l.b16 %v994
    %v1365 = vunpack.c.h.b16 %v994
    %v1366 = vunpack.c.l.b16 %v995
    %v1367 = vunpack.c.h.b16 %v995
    %v1368 = vunpack.c.l.b16 %v996
    %v1369 = vunpack.c.l.b16 %v997
    %v1370 = vunpack.c.h.b16 %v997
    %v1371 = vunpack.c.l.b16 %v998
    %v1372 = vunpack.c.h.b16 %v998
    %v1373 = vunpack.c.l.b16 %v999
    %v1374 = vunpack.c.l.b16 %v1000
    %v1375 = vunpack.c.h.b16 %v1000
    %v1376 = vunpack.c.l.b16 %v1001
    %v1377 = vunpack.c.h.b16 %v1001
    %v1378 = vunpack.c.l.b16 %v1002
    %v1379 = vunpack.c.l.b16 %v1003
    %v1380 = vunpack.c.h.b16 %v1003
    %v1381 = vunpack.c.l.b16 %v1004
    %v1382 = vunpack.c.h.b16 %v1004
    %v1383 = vunpack.c.l.b16 %v1005
    %v1384 = vunpack.c.l.b16 %v1006
    %v1385 = vunpack.c.h.b16 %v1006
    %v1386 = vunpack.c.l.b16 %v1007
    %v1387 = vunpack.c.h.b16 %v1007
    %v1388 = vunpack.c.l.b16 %v1008
    %v1389 = vunpack.c.l.b16 %v1009
    %v1390 = vunpack.c.h.b16 %v1009
    %v1391 = vunpack.c.l.b16 %v1010
    %v1392 = vunpack.c.h.b16 %v1010
    %v1393 = vunpack.c.l.b16 %v1011
    %v1394 = vunpack.c.l.b16 %v1012
    %v1395 = vunpack.c.h.b16 %v1012
    %v1396 = vunpack.c.l.b16 %v1013
    %v1397 = vunpack.c.h.b16 %v1013
    %v1398 = vunpack.c.l.b16 %v1014
    %v1399 = vunpack.c.l.b16 %v1015
    %v1400 = vunpack.c.h.b16 %v1015
    %v1401 = vunpack.c.l.b16 %v1016
    %v1402 = vunpack.c.h.b16 %v1016
    %v1403 = vunpack.c.l.b16 %v1017
    %v1404 = vunpack.c.l.b16 %v1018
    %v1405 = vunpack.c.h.b16 %v1018
    %v1406 = vunpack.c.l.b16 %v1019
    %v1407 = vunpack.c.h.b16 %v1019
    %v1408 = vunpack.c.l.b16 %v1020
    %v1409 = vunpack.c.l.b16 %v1021
    %v1410 = vunpack.c.h.b16 %v1021
    %v1411 = vunpack.c.l.b16 %v1022
    %v1412 = vunpack.c.h.b16 %v1022
    %v1413 = vunpack.c.l.b16 %v1023
    %v1414 = vunpack.c.l.b16 %v1024
    %v1415 = vunpack.c.h.b16 %v1024
    %v1416 = vunpack.c.l.b16 %v1025
    %v1417 = vunpack.c.h.b16 %v1025
    %v1418 = vunpack.c.l.b16 %v1026
    %v1419 = vunpack.c.l.b16 %v1027
    %v1420 = vunpack.c.h.b16 %v1027
    %v1421 = vunpack.c.l.b16 %v1028
    %v1422 = vunpack.c.h.b16 %v1028
    %v1423 = vunpack.c.l.b16 %v1029
    %v1424 = vunpack.c.l.b16 %v1030
    %v1425 = vunpack.c.h.b16 %v1030
    %v1426 = vunpack.c.l.b16 %v1031
    %v1427 = vunpack.c.h.b16 %v1031
    %v1428 = vunpack.c.l.b16 %v1032
    %v1429 = vpack.c.b16 %v1194, %v1189
    %v1430 = vpack.c.b16 %v1195, %v1190
    %v1431 = vpack.c.b16 %v1196, %v1191
    %v1432 = vpack.c.b16 %v1197, %v1192
    %v1433 = vpack.c.b16 %v1198, %v1193
    %v1434 = vpack.c.b16 %v1204, %v1199
    %v1435 = vpack.c.b16 %v1205, %v1200
    %v1436 = vpack.c.b16 %v1206, %v1201
    %v1437 = vpack.c.b16 %v1207, %v1202
    %v1438 = vpack.c.b16 %v1208, %v1203
    %v1439 = vpack.c.b16 %v1214, %v1209
    %v1440 = vpack.c.b16 %v1215, %v1210
    %v1441 = vpack.c.b16 %v1216, %v1211
    %v1442 = vpack.c.b16 %v1217, %v1212
    %v1443 = vpack.c.b16 %v1218, %v1213
    %v1444 = vpack.c.b16 %v1224, %v1219
    %v1445 = vpack.c.b16 %v1225, %v1220
    %v1446 = vpack.c.b16 %v1226, %v1221
    %v1447 = vpack.c.b16 %v1227, %v1222
    %v1448 = vpack.c.b16 %v1228, %v1223
    %v1449 = vpack.c.b16 %v1234, %v1229
    %v1450 = vpack.c.b16 %v1235, %v1230
    %v1451 = vpack.c.b16 %v1236, %v1231
    %v1452 = vpack.c.b16 %v1237, %v1232
    %v1453 = vpack.c.b16 %v1238, %v1233
    %v1454 = vpack.c.b16 %v1244, %v1239
    %v1455 = vpack.c.b16 %v1245, %v1240
    %v1456 = vpack.c.b16 %v1246, %v1241
    %v1457 = vpack.c.b16 %v1247, %v1242
    %v1458 = vpack.c.b16 %v1248, %v1243
    %v1459 = vpack.c.b16 %v1254, %v1249
    %v1460 = vpack.c.b16 %v1255, %v1250
    %v1461 = vpack.c.b16 %v1256, %v1251
    %v1462 = vpack.c.b16 %v1257, %v1252
    %v1463 = vpack.c.b16 %v1258, %v1253
    %v1464 = vpack.c.b16 %v1264, %v1259
    %v1465 = vpack.c.b16 %v1265, %v1260
    %v1466 = vpack.c.b16 %v1266, %v1261
    %v1467 = vpack.c.b16 %v1267, %v1262
    %v1468 = vpack.c.b16 %v1268, %v1263
    %v1469 = vpack.c.b16 %v1274, %v1269
    %v1470 = vpack.c.b16 %v1275, %v1270
    %v1471 = vpack.c.b16 %v1276, %v1271
    %v1472 = vpack.c.b16 %v1277, %v1272
    %v1473 = vpack.c.b16 %v1278, %v1273
    %v1474 = vpack.c.b16 %v1284, %v1279
    %v1475 = vpack.c.b16 %v1285, %v1280
    %v1476 = vpack.c.b16 %v1286, %v1281
    %v1477 = vpack.c.b16 %v1287, %v1282
    %v1478 = vpack.c.b16 %v1288, %v1283
    %v1479 = vpack.c.b16 %v1294, %v1289
    %v1480 = vpack.c.b16 %v1295, %v1290
    %v1481 = vpack.c.b16 %v1296, %v1291
    %v1482 = vpack.c.b16 %v1297, %v1292
    %v1483 = vpack.c.b16 %v1298, %v1293
    %v1484 = vpack.c.b16 %v1304, %v1299
    %v1485 = vpack.c.b16 %v1305, %v1300
    %v1486 = vpack.c.b16 %v1306, %v1301
    %v1487 = vpack.c.b16 %v1307, %v1302
    %v1488 = vpack.c.b16 %v1308, %v1303
    %v1489 = vpack.c.b16 %v1314, %v1309
    %v1490 = vpack.c.b16 %v1315, %v1310
    %v1491 = vpack.c.b16 %v1316, %v1311
    %v1492 = vpack.c.b16 %v1317, %v1312
    %v1493 = vpack.c.b16 %v1318, %v1313
    %v1494 = vpack.c.b16 %v1324, %v1319
    %v1495 = vpack.c.b16 %v1325, %v1320
    %v1496 = vpack.c.b16 %v1326, %v1321
    %v1497 = vpack.c.b16 %v1327, %v1322
    %v1498 = vpack.c.b16 %v1328, %v1323
    %v1499 = vpack.c.b16 %v1334, %v1329
    %v1500 = vpack.c.b16 %v1335, %v1330
    %v1501 = vpack.c.b16 %v1336, %v1331
    %v1502 = vpack.c.b16 %v1337, %v1332
    %v1503 = vpack.c.b16 %v1338, %v1333
    %v1504 = vpack.c.b16 %v1344, %v1339
    %v1505 = vpack.c.b16 %v1345, %v1340
    %v1506 = vpack.c.b16 %v1346, %v1341
    %v1507 = vpack.c.b16 %v1347, %v1342
    %v1508 = vpack.c.b16 %v1348, %v1343
    %v1509 = vpack.c.b16 %v1354, %v1349
    %v1510 = vpack.c.b16 %v1355, %v1350
    %v1511 = vpack.c.b16 %v1356, %v1351
    %v1512 = vpack.c.b16 %v1357, %v1352
    %v1513 = vpack.c.b16 %v1358, %v1353
    %v1514 = vpack.c.b16 %v1364, %v1359
    %v1515 = vpack.c.b16 %v1365, %v1360
    %v1516 = vpack.c.b16 %v1366, %v1361
    %v1517 = vpack.c.b16 %v1367, %v1362
    %v1518 = vpack.c.b16 %v1368, %v1363
    %v1519 = vpack.c.b16 %v1374, %v1369
    %v1520 = vpack.c.b16 %v1375, %v1370
    %v1521 = vpack.c.b16 %v1376, %v1371
    %v1522 = vpack.c.b16 %v1377, %v1372
    %v1523 = vpack.c.b16 %v1378, %v1373
    %v1524 = vpack.c.b16 %v1384, %v1379
    %v1525 = vpack.c.b16 %v1385, %v1380
    %v1526 = vpack.c.b16 %v1386, %v1381
    %v1527 = vpack.c.b16 %v1387, %v1382
    %v1528 = vpack.c.b16 %v1388, %v1383
    %v1529 = vpack.c.b16 %v1394, %v1389
    %v1530 = vpack.c.b16 %v1395, %v1390
    %v1531 = vpack.c.b16 %v1396, %v1391
    %v1532 = vpack.c.b16 %v1397, %v1392
    %v1533 = vpack.c.b16 %v1398, %v1393
    %v1534 = vpack.c.b16 %v1404, %v1399
    %v1535 = vpack.c.b16 %v1405, %v1400
    %v1536 = vpack.c.b16 %v1406, %v1401
    %v1537 = vpack.c.b16 %v1407, %v1402
    %v1538 = vpack.c.b16 %v1408, %v1403
    %v1539 = vpack.c.b16 %v1414, %v1409
    %v1540 = vpack.c.b16 %v1415, %v1410
    %v1541 = vpack.c.b16 %v1416, %v1411
    %v1542 = vpack.c.b16 %v1417, %v1412
    %v1543 = vpack.c.b16 %v1418, %v1413
    %v1544 = vpack.c.b16 %v1424, %v1419
    %v1545 = vpack.c.b16 %v1425, %v1420
    %v1546 = vpack.c.b16 %v1426, %v1421
    %v1547 = vpack.c.b16 %v1427, %v1422
    %v1548 = vpack.c.b16 %v1428, %v1423
    %1669 = vmatpush.bf16.msra.mxu0 %v1464
    %1670 = vmatpush.bf16.msra.mxu0 %v1459
    %1671 = vmatpush.bf16.msra.mxu0 %v1454
    %1672 = vmatpush.bf16.msra.mxu0 %v1449
    %1673 = vmatpush.bf16.msra.mxu0 %v1444
    %1674 = vmatpush.bf16.msra.mxu0 %v1439
    %1675 = vmatpush.bf16.msra.mxu0 %v1434
    %1676 = vmatpush.bf16.msra.mxu0 %v1429
    %1677 = vmatmul.bf16.gmra.mxu0 %v886
    %v1678 = vpop.f32.mrf.mxu0
    %v1679 = vadd.f32 %v1035, %v1678
    %v1680 = vpop.f32.mrf.mxu0
    %1681 = vdwg.mxu0
    %1682 = vmatpush.bf16.msra.mxu0 %v1504
    %1683 = vmatpush.bf16.msra.mxu0 %v1499
    %1684 = vmatpush.bf16.msra.mxu0 %v1494
    %1685 = vmatpush.bf16.msra.mxu0 %v1489
    %1686 = vmatpush.bf16.msra.mxu0 %v1484
    %1687 = vmatpush.bf16.msra.mxu0 %v1479
    %1688 = vmatpush.bf16.msra.mxu0 %v1474
    %1689 = vmatpush.bf16.msra.mxu0 %v1469
    %1690 = vmatmul.bf16.gmra.mxu0 %v887
    %v1691 = vpop.f32.mrf.mxu0
    %v1692 = vadd.f32 %v1679, %v1691
    %v1693 = vpop.f32.mrf.mxu0
    %1694 = vdwg.mxu0
    %1695 = vmatpush.bf16.msra.mxu0 %v1544
    %1696 = vmatpush.bf16.msra.mxu0 %v1539
    %1697 = vmatpush.bf16.msra.mxu0 %v1534
    %1698 = vmatpush.bf16.msra.mxu0 %v1529
    %1699 = vmatpush.bf16.msra.mxu0 %v1524
    %1700 = vmatpush.bf16.msra.mxu0 %v1519
    %1701 = vmatpush.bf16.msra.mxu0 %v1514
    %1702 = vmatpush.bf16.msra.mxu0 %v1509
    %1703 = vmatmul.bf16.gmra.mxu0 %v888
    %v1704 = vpop.f32.mrf.mxu0
    %v1705 = vadd.f32 %v1692, %v1704
    %v1706 = vpop.f32.mrf.mxu0
    %1707 = vdwg.mxu0
    %1708 = vmatpush.bf16.msra.mxu0 %v1465
    %1709 = vmatpush.bf16.msra.mxu0 %v1460
    %1710 = vmatpush.bf16.msra.mxu0 %v1455
    %1711 = vmatpush.bf16.msra.mxu0 %v1450
    %1712 = vmatpush.bf16.msra.mxu0 %v1445
    %1713 = vmatpush.bf16.msra.mxu0 %v1440
    %1714 = vmatpush.bf16.msra.mxu0 %v1435
    %1715 = vmatpush.bf16.msra.mxu0 %v1430
    %1716 = vmatmul.bf16.gmra.mxu0 %v886
    %v1717 = vpop.f32.mrf.mxu0
    %v1718 = vadd.f32 %v1036, %v1717
    %v1719 = vpop.f32.mrf.mxu0
    %1720 = vdwg.mxu0
    %1721 = vmatpush.bf16.msra.mxu0 %v1505
    %1722 = vmatpush.bf16.msra.mxu0 %v1500
    %1723 = vmatpush.bf16.msra.mxu0 %v1495
    %1724 = vmatpush.bf16.msra.mxu0 %v1490
    %1725 = vmatpush.bf16.msra.mxu0 %v1485
    %1726 = vmatpush.bf16.msra.mxu0 %v1480
    %1727 = vmatpush.bf16.msra.mxu0 %v1475
    %1728 = vmatpush.bf16.msra.mxu0 %v1470
    %1729 = vmatmul.bf16.gmra.mxu0 %v887
    %v1730 = vpop.f32.mrf.mxu0
    %v1731 = vadd.f32 %v1718, %v1730
    %v1732 = vpop.f32.mrf.mxu0
    %1733 = vdwg.mxu0
    %1734 = vmatpush.bf16.msra.mxu0 %v1545
    %1735 = vmatpush.bf16.msra.mxu0 %v1540
    %1736 = vmatpush.bf16.msra.mxu0 %v1535
    %1737 = vmatpush.bf16.msra.mxu0 %v1530
    %1738 = vmatpush.bf16.msra.mxu0 %v1525
    %1739 = vmatpush.bf16.msra.mxu0 %v1520
    %1740 = vmatpush.bf16.msra.mxu0 %v1515
    %1741 = vmatpush.bf16.msra.mxu0 %v1510
    %1742 = vmatmul.bf16.gmra.mxu0 %v888
    %v1743 = vpop.f32.mrf.mxu0
    %v1744 = vadd.f32 %v1731, %v1743
    %v1745 = vpop.f32.mrf.mxu0
    %1746 = vdwg.mxu0
    %1747 = vmatpush.bf16.msra.mxu0 %v1466
    %1748 = vmatpush.bf16.msra.mxu0 %v1461
    %1749 = vmatpush.bf16.msra.mxu0 %v1456
    %1750 = vmatpush.bf16.msra.mxu0 %v1451
    %1751 = vmatpush.bf16.msra.mxu0 %v1446
    %1752 = vmatpush.bf16.msra.mxu0 %v1441
    %1753 = vmatpush.bf16.msra.mxu0 %v1436
    %1754 = vmatpush.bf16.msra.mxu0 %v1431
    %1755 = vmatmul.bf16.gmra.mxu0 %v886
    %v1756 = vpop.f32.mrf.mxu0
    %v1757 = vadd.f32 %v1037, %v1756
    %v1758 = vpop.f32.mrf.mxu0
    %1759 = vdwg.mxu0
    %1760 = vmatpush.bf16.msra.mxu0 %v1506
    %1761 = vmatpush.bf16.msra.mxu0 %v1501
    %1762 = vmatpush.bf16.msra.mxu0 %v1496
    %1763 = vmatpush.bf16.msra.mxu0 %v1491
    %1764 = vmatpush.bf16.msra.mxu0 %v1486
    %1765 = vmatpush.bf16.msra.mxu0 %v1481
    %1766 = vmatpush.bf16.msra.mxu0 %v1476
    %1767 = vmatpush.bf16.msra.mxu0 %v1471
    %1768 = vmatmul.bf16.gmra.mxu0 %v887
    %v1769 = vpop.f32.mrf.mxu0
    %v1770 = vadd.f32 %v1757, %v1769
    %v1771 = vpop.f32.mrf.mxu0
    %1772 = vdwg.mxu0
    %1773 = vmatpush.bf16.msra.mxu0 %v1546
    %1774 = vmatpush.bf16.msra.mxu0 %v1541
    %1775 = vmatpush.bf16.msra.mxu0 %v1536
    %1776 = vmatpush.bf16.msra.mxu0 %v1531
    %1777 = vmatpush.bf16.msra.mxu0 %v1526
    %1778 = vmatpush.bf16.msra.mxu0 %v1521
    %1779 = vmatpush.bf16.msra.mxu0 %v1516
    %1780 = vmatpush.bf16.msra.mxu0 %v1511
    %1781 = vmatmul.bf16.gmra.mxu0 %v888
    %v1782 = vpop.f32.mrf.mxu0
    %v1783 = vadd.f32 %v1770, %v1782
    %v1784 = vpop.f32.mrf.mxu0
    %1785 = vdwg.mxu0
    %1786 = vmatpush.bf16.msra.mxu0 %v1467
    %1787 = vmatpush.bf16.msra.mxu0 %v1462
    %1788 = vmatpush.bf16.msra.mxu0 %v1457
    %1789 = vmatpush.bf16.msra.mxu0 %v1452
    %1790 = vmatpush.bf16.msra.mxu0 %v1447
    %1791 = vmatpush.bf16.msra.mxu0 %v1442
    %1792 = vmatpush.bf16.msra.mxu0 %v1437
    %1793 = vmatpush.bf16.msra.mxu0 %v1432
    %1794 = vmatmul.bf16.gmra.mxu0 %v886
    %v1795 = vpop.f32.mrf.mxu0
    %v1796 = vadd.f32 %v1038, %v1795
    %v1797 = vpop.f32.mrf.mxu0
    %1798 = vdwg.mxu0
    %1799 = vmatpush.bf16.msra.mxu0 %v1507
    %1800 = vmatpush.bf16.msra.mxu0 %v1502
    %1801 = vmatpush.bf16.msra.mxu0 %v1497
    %1802 = vmatpush.bf16.msra.mxu0 %v1492
    %1803 = vmatpush.bf16.msra.mxu0 %v1487
    %1804 = vmatpush.bf16.msra.mxu0 %v1482
    %1805 = vmatpush.bf16.msra.mxu0 %v1477
    %1806 = vmatpush.bf16.msra.mxu0 %v1472
    %1807 = vmatmul.bf16.gmra.mxu0 %v887
    %v1808 = vpop.f32.mrf.mxu0
    %v1809 = vadd.f32 %v1796, %v1808
    %v1810 = vpop.f32.mrf.mxu0
    %1811 = vdwg.mxu0
    %1812 = vmatpush.bf16.msra.mxu0 %v1547
    %1813 = vmatpush.bf16.msra.mxu0 %v1542
    %1814 = vmatpush.bf16.msra.mxu0 %v1537
    %1815 = vmatpush.bf16.msra.mxu0 %v1532
    %1816 = vmatpush.bf16.msra.mxu0 %v1527
    %1817 = vmatpush.bf16.msra.mxu0 %v1522
    %1818 = vmatpush.bf16.msra.mxu0 %v1517
    %1819 = vmatpush.bf16.msra.mxu0 %v1512
    %1820 = vmatmul.bf16.gmra.mxu0 %v888
    %v1821 = vpop.f32.mrf.mxu0
    %v1822 = vadd.f32 %v1809, %v1821
    %v1823 = vpop.f32.mrf.mxu0
    %1824 = vdwg.mxu0
    %1825 = vmatpush.bf16.msra.mxu0 %v1468
    %1826 = vmatpush.bf16.msra.mxu0 %v1463
    %1827 = vmatpush.bf16.msra.mxu0 %v1458
    %1828 = vmatpush.bf16.msra.mxu0 %v1453
    %1829 = vmatpush.bf16.msra.mxu0 %v1448
    %1830 = vmatpush.bf16.msra.mxu0 %v1443
    %1831 = vmatpush.bf16.msra.mxu0 %v1438
    %1832 = vmatpush.bf16.msra.mxu0 %v1433
    %1833 = vmatmul.bf16.gmra.mxu0 %v886
    %v1834 = vpop.f32.mrf.mxu0
    %v1835 = vadd.f32 %v1039, %v1834
    %v1836 = vpop.f32.mrf.mxu0
    %1837 = vdwg.mxu0
    %1838 = vmatpush.bf16.msra.mxu0 %v1508
    %1839 = vmatpush.bf16.msra.mxu0 %v1503
    %1840 = vmatpush.bf16.msra.mxu0 %v1498
    %1841 = vmatpush.bf16.msra.mxu0 %v1493
    %1842 = vmatpush.bf16.msra.mxu0 %v1488
    %1843 = vmatpush.bf16.msra.mxu0 %v1483
    %1844 = vmatpush.bf16.msra.mxu0 %v1478
    %1845 = vmatpush.bf16.msra.mxu0 %v1473
    %1846 = vmatmul.bf16.gmra.mxu0 %v887
    %v1847 = vpop.f32.mrf.mxu0
    %v1848 = vadd.f32 %v1835, %v1847
    %v1849 = vpop.f32.mrf.mxu0
    %1850 = vdwg.mxu0
    %1851 = vmatpush.bf16.msra.mxu0 %v1548
    %1852 = vmatpush.bf16.msra.mxu0 %v1543
    %1853 = vmatpush.bf16.msra.mxu0 %v1538
    %1854 = vmatpush.bf16.msra.mxu0 %v1533
    %1855 = vmatpush.bf16.msra.mxu0 %v1528
    %1856 = vmatpush.bf16.msra.mxu0 %v1523
    %1857 = vmatpush.bf16.msra.mxu0 %v1518
    %1858 = vmatpush.bf16.msra.mxu0 %v1513
    %1859 = vmatmul.bf16.gmra.mxu0 %v888
    %v1860 = vpop.f32.mrf.mxu0
    %v1861 = vadd.f32 %v1848, %v1860
    %v1862 = vpop.f32.mrf.mxu0
    %1863 = vdwg.mxu0
    %v1864 = vmax.f32 %v1705, 0.0
    %v1865 = vmax.f32 %v1744, 0.0
    %v1866 = vmax.f32 %v1783, 0.0
    %v1867 = vmax.f32 %v1822, 0.0
    %v1868 = vmax.f32 %v1861, 0.0
    %v1869 = vpack.c.bf16 %v1864, %v1864
    %v1870 = vpack.c.bf16 %v1865, %v1865
    %v1871 = vpack.c.bf16 %v1866, %v1866
    %v1872 = vpack.c.bf16 %v1867, %v1867
    %v1873 = vpack.c.bf16 %v1868, %v1868
    %v1874 = vld [vmem:[#allocation14] sm:$0xff]
    %v1875 = vld [vmem:[#allocation14 + $0x8] sm:$0xff]
    %v1876 = vld [vmem:[#allocation14 + $0x10] sm:$0xf]
    %v1877 = vld [vmem:[#allocation14 + $0x14] sm:$0xff]
    %v1878 = vld [vmem:[#allocation14 + $0x1c] sm:$0xff]
    %v1879 = vld [vmem:[#allocation14 + $0x24] sm:$0xf]
    %v1880 = vld [vmem:[#allocation14 + $0x28] sm:$0xff]
    %v1881 = vld [vmem:[#allocation14 + $0x30] sm:$0xff]
    %v1882 = vld [vmem:[#allocation14 + $0x38] sm:$0xf]
    %v1883 = vld [vmem:[#allocation14 + $0x3c] sm:$0xff]
    %v1884 = vld [vmem:[#allocation14 + $0x44] sm:$0xff]
    %v1885 = vld [vmem:[#allocation14 + $0x4c] sm:$0xf]
    %v1886 = vld [vmem:[#allocation14 + $0x50] sm:$0xff]
    %v1887 = vld [vmem:[#allocation14 + $0x58] sm:$0xff]
    %v1888 = vld [vmem:[#allocation14 + $0x60] sm:$0xf]
    %v1889 = vld [vmem:[#allocation14 + $0x64] sm:$0xff]
    %v1890 = vld [vmem:[#allocation14 + $0x6c] sm:$0xff]
    %v1891 = vld [vmem:[#allocation14 + $0x74] sm:$0xf]
    %v1892 = vld [vmem:[#allocation14 + $0x78] sm:$0xff]
    %v1893 = vld [vmem:[#allocation14 + $0x80] sm:$0xff]
    %v1894 = vld [vmem:[#allocation14 + $0x88] sm:$0xf]
    %v1895 = vld [vmem:[#allocation14 + $0x8c] sm:$0xff]
    %v1896 = vld [vmem:[#allocation14 + $0x94] sm:$0xff]
    %v1897 = vld [vmem:[#allocation14 + $0x9c] sm:$0xf]
    %v1898 = vld [vmem:[#allocation14 + $0xa0] sm:$0xff]
    %v1899 = vld [vmem:[#allocation14 + $0xa8] sm:$0xff]
    %v1900 = vld [vmem:[#allocation14 + $0xb0] sm:$0xf]
    %v1901 = vld [vmem:[#allocation14 + $0xb4] sm:$0xff]
    %v1902 = vld [vmem:[#allocation14 + $0xbc] sm:$0xff]
    %v1903 = vld [vmem:[#allocation14 + $0xc4] sm:$0xf]
    %v1904 = vld [vmem:[#allocation14 + $0xc8] sm:$0xff]
    %v1905 = vld [vmem:[#allocation14 + $0xd0] sm:$0xff]
    %v1906 = vld [vmem:[#allocation14 + $0xd8] sm:$0xf]
    %v1907 = vld [vmem:[#allocation14 + $0xdc] sm:$0xff]
    %v1908 = vld [vmem:[#allocation14 + $0xe4] sm:$0xff]
    %v1909 = vld [vmem:[#allocation14 + $0xec] sm:$0xf]
    %v1910 = vld [vmem:[#allocation14 + $0xf0] sm:$0xff]
    %v1911 = vld [vmem:[#allocation14 + $0xf8] sm:$0xff]
    %v1912 = vld [vmem:[#allocation14 + $0x100] sm:$0xf]
    %v1913 = vld [vmem:[#allocation14 + $0x104] sm:$0xff]
    %v1914 = vld [vmem:[#allocation14 + $0x10c] sm:$0xff]
    %v1915 = vld [vmem:[#allocation14 + $0x114] sm:$0xf]
    %v1916 = vld [vmem:[#allocation14 + $0x118] sm:$0xff]
    %v1917 = vld [vmem:[#allocation14 + $0x120] sm:$0xff]
    %v1918 = vld [vmem:[#allocation14 + $0x128] sm:$0xf]
    %v1919 = vld [vmem:[#allocation14 + $0x12c] sm:$0xff]
    %v1920 = vld [vmem:[#allocation14 + $0x134] sm:$0xff]
    %v1921 = vld [vmem:[#allocation14 + $0x13c] sm:$0xf]
    %v1922 = vld [vmem:[#allocation14 + $0x140] sm:$0xff]
    %v1923 = vld [vmem:[#allocation14 + $0x148] sm:$0xff]
    %v1924 = vld [vmem:[#allocation14 + $0x150] sm:$0xf]
    %v1925 = vld [vmem:[#allocation14 + $0x154] sm:$0xff]
    %v1926 = vld [vmem:[#allocation14 + $0x15c] sm:$0xff]
    %v1927 = vld [vmem:[#allocation14 + $0x164] sm:$0xf]
    %v1928 = vld [vmem:[#allocation14 + $0x168] sm:$0xff]
    %v1929 = vld [vmem:[#allocation14 + $0x170] sm:$0xff]
    %v1930 = vld [vmem:[#allocation14 + $0x178] sm:$0xf]
    %v1931 = vld [vmem:[#allocation14 + $0x17c] sm:$0xff]
    %v1932 = vld [vmem:[#allocation14 + $0x184] sm:$0xff]
    %v1933 = vld [vmem:[#allocation14 + $0x18c] sm:$0xf]
    %v1934 = vld [vmem:[#allocation14 + $0x190] sm:$0xff]
    %v1935 = vld [vmem:[#allocation14 + $0x198] sm:$0xff]
    %v1936 = vld [vmem:[#allocation14 + $0x1a0] sm:$0xf]
    %v1937 = vld [vmem:[#allocation14 + $0x1a4] sm:$0xff]
    %v1938 = vld [vmem:[#allocation14 + $0x1ac] sm:$0xff]
    %v1939 = vld [vmem:[#allocation14 + $0x1b4] sm:$0xf]
    %v1940 = vld [vmem:[#allocation14 + $0x1b8] sm:$0xff]
    %v1941 = vld [vmem:[#allocation14 + $0x1c0] sm:$0xff]
    %v1942 = vld [vmem:[#allocation14 + $0x1c8] sm:$0xf]
    %v1943 = vld [vmem:[#allocation14 + $0x1cc] sm:$0xff]
    %v1944 = vld [vmem:[#allocation14 + $0x1d4] sm:$0xff]
    %v1945 = vld [vmem:[#allocation14 + $0x1dc] sm:$0xf]
    %v1946 = vld [vmem:[#allocation14 + $0x1e0] sm:$0xff]
    %v1947 = vld [vmem:[#allocation14 + $0x1e8] sm:$0xff]
    %v1948 = vld [vmem:[#allocation14 + $0x1f0] sm:$0xf]
    %v1949 = vld [vmem:[#allocation14 + $0x1f4] sm:$0xff]
    %v1950 = vld [vmem:[#allocation14 + $0x1fc] sm:$0xff]
    %v1951 = vld [vmem:[#allocation14 + $0x204] sm:$0xf]
    %v1952 = vld [vmem:[#allocation14 + $0x208] sm:$0xff]
    %v1953 = vld [vmem:[#allocation14 + $0x210] sm:$0xff]
    %v1954 = vld [vmem:[#allocation14 + $0x218] sm:$0xf]
    %v1955 = vld [vmem:[#allocation14 + $0x21c] sm:$0xff]
    %v1956 = vld [vmem:[#allocation14 + $0x224] sm:$0xff]
    %v1957 = vld [vmem:[#allocation14 + $0x22c] sm:$0xf]
    %v1958 = vld [vmem:[#allocation14 + $0x230] sm:$0xff]
    %v1959 = vld [vmem:[#allocation14 + $0x238] sm:$0xff]
    %v1960 = vld [vmem:[#allocation14 + $0x240] sm:$0xf]
    %v1961 = vld [vmem:[#allocation14 + $0x244] sm:$0xff]
    %v1962 = vld [vmem:[#allocation14 + $0x24c] sm:$0xff]
    %v1963 = vld [vmem:[#allocation14 + $0x254] sm:$0xf]
    %v1964 = vld [vmem:[#allocation14 + $0x258] sm:$0xff]
    %v1965 = vld [vmem:[#allocation14 + $0x260] sm:$0xff]
    %v1966 = vld [vmem:[#allocation14 + $0x268] sm:$0xf]
    %v1967 = vld [vmem:[#allocation14 + $0x26c] sm:$0xff]
    %v1968 = vld [vmem:[#allocation14 + $0x274] sm:$0xff]
    %v1969 = vld [vmem:[#allocation14 + $0x27c] sm:$0xf]
    %v1970 = vld [vmem:[#allocation14 + $0x280] sm:$0xff]
    %v1971 = vld [vmem:[#allocation14 + $0x288] sm:$0xff]
    %v1972 = vld [vmem:[#allocation14 + $0x290] sm:$0xf]
    %v1973 = vld [vmem:[#allocation14 + $0x294] sm:$0xff]
    %v1974 = vld [vmem:[#allocation14 + $0x29c] sm:$0xff]
    %v1975 = vld [vmem:[#allocation14 + $0x2a4] sm:$0xf]
    %v1976 = vld [vmem:[#allocation14 + $0x2a8] sm:$0xff]
    %v1977 = vld [vmem:[#allocation14 + $0x2b0] sm:$0xff]
    %v1978 = vld [vmem:[#allocation14 + $0x2b8] sm:$0xf]
    %v1979 = vld [vmem:[#allocation14 + $0x2bc] sm:$0xff]
    %v1980 = vld [vmem:[#allocation14 + $0x2c4] sm:$0xff]
    %v1981 = vld [vmem:[#allocation14 + $0x2cc] sm:$0xf]
    %v1982 = vld [vmem:[#allocation14 + $0x2d0] sm:$0xff]
    %v1983 = vld [vmem:[#allocation14 + $0x2d8] sm:$0xff]
    %v1984 = vld [vmem:[#allocation14 + $0x2e0] sm:$0xf]
    %v1985 = vld [vmem:[#allocation14 + $0x2e4] sm:$0xff]
    %v1986 = vld [vmem:[#allocation14 + $0x2ec] sm:$0xff]
    %v1987 = vld [vmem:[#allocation14 + $0x2f4] sm:$0xf]
    %v1988 = vld [vmem:[#allocation14 + $0x2f8] sm:$0xff]
    %v1989 = vld [vmem:[#allocation14 + $0x300] sm:$0xff]
    %v1990 = vld [vmem:[#allocation14 + $0x308] sm:$0xf]
    %v1991 = vld [vmem:[#allocation14 + $0x30c] sm:$0xff]
    %v1992 = vld [vmem:[#allocation14 + $0x314] sm:$0xff]
    %v1993 = vld [vmem:[#allocation14 + $0x31c] sm:$0xf]
    %v1994 = vld [vmem:[#allocation14 + $0x320] sm:$0xff]
    %v1995 = vld [vmem:[#allocation14 + $0x328] sm:$0xff]
    %v1996 = vld [vmem:[#allocation14 + $0x330] sm:$0xf]
    %v1997 = vld [vmem:[#allocation14 + $0x334] sm:$0xff]
    %v1998 = vld [vmem:[#allocation14 + $0x33c] sm:$0xff]
    %v1999 = vld [vmem:[#allocation14 + $0x344] sm:$0xf]
    %v2000 = vld [vmem:[#allocation14 + $0x348] sm:$0xff]
    %v2001 = vld [vmem:[#allocation14 + $0x350] sm:$0xff]
    %v2002 = vld [vmem:[#allocation14 + $0x358] sm:$0xf]
    %v2003 = vld [vmem:[#allocation14 + $0x35c] sm:$0xff]
    %v2004 = vld [vmem:[#allocation14 + $0x364] sm:$0xff]
    %v2005 = vld [vmem:[#allocation14 + $0x36c] sm:$0xf]
    %v2006 = vld [vmem:[#allocation14 + $0x370] sm:$0xff]
    %v2007 = vld [vmem:[#allocation14 + $0x378] sm:$0xff]
    %v2008 = vld [vmem:[#allocation14 + $0x380] sm:$0xf]
    %v2009 = vld [vmem:[#allocation14 + $0x384] sm:$0xff]
    %v2010 = vld [vmem:[#allocation14 + $0x38c] sm:$0xff]
    %v2011 = vld [vmem:[#allocation14 + $0x394] sm:$0xf]
    %v2012 = vld [vmem:[#allocation14 + $0x398] sm:$0xff]
    %v2013 = vld [vmem:[#allocation14 + $0x3a0] sm:$0xff]
    %v2014 = vld [vmem:[#allocation14 + $0x3a8] sm:$0xf]
    %v2015 = vld [vmem:[#allocation14 + $0x3ac] sm:$0xff]
    %v2016 = vld [vmem:[#allocation14 + $0x3b4] sm:$0xff]
    %v2017 = vld [vmem:[#allocation14 + $0x3bc] sm:$0xf]
    %v2018 = vld [vmem:[#allocation14 + $0x3c0] sm:$0xff]
    %v2019 = vld [vmem:[#allocation14 + $0x3c8] sm:$0xff]
    %v2020 = vld [vmem:[#allocation14 + $0x3d0] sm:$0xf]
    %v2021 = vld [vmem:[#allocation14 + $0x3d4] sm:$0xff]
    %v2022 = vld [vmem:[#allocation14 + $0x3dc] sm:$0xff]
    %v2023 = vld [vmem:[#allocation14 + $0x3e4] sm:$0xf]
    %v2024 = vld [vmem:[#allocation14 + $0x3e8] sm:$0xff]
    %v2025 = vld [vmem:[#allocation14 + $0x3f0] sm:$0xff]
    %v2026 = vld [vmem:[#allocation14 + $0x3f8] sm:$0xf]
    %v2027 = vld [vmem:[#allocation14 + $0x3fc] sm:$0xff]
    %v2028 = vld [vmem:[#allocation14 + $0x404] sm:$0xff]
    %v2029 = vld [vmem:[#allocation14 + $0x40c] sm:$0xf]
    %v2030 = vld [vmem:[#allocation14 + $0x410] sm:$0xff]
    %v2031 = vld [vmem:[#allocation14 + $0x418] sm:$0xff]
    %v2032 = vld [vmem:[#allocation14 + $0x420] sm:$0xf]
    %v2033 = vld [vmem:[#allocation14 + $0x424] sm:$0xff]
    %v2034 = vld [vmem:[#allocation14 + $0x42c] sm:$0xff]
    %v2035 = vld [vmem:[#allocation14 + $0x434] sm:$0xf]
    %v2036 = vld [vmem:[#allocation14 + $0x438] sm:$0xff]
    %v2037 = vld [vmem:[#allocation14 + $0x440] sm:$0xff]
    %v2038 = vld [vmem:[#allocation14 + $0x448] sm:$0xf]
    %v2039 = vld [vmem:[#allocation14 + $0x44c] sm:$0xff]
    %v2040 = vld [vmem:[#allocation14 + $0x454] sm:$0xff]
    %v2041 = vld [vmem:[#allocation14 + $0x45c] sm:$0xf]
    %v2042 = vld [vmem:[#allocation14 + $0x460] sm:$0xff]
    %v2043 = vld [vmem:[#allocation14 + $0x468] sm:$0xff]
    %v2044 = vld [vmem:[#allocation14 + $0x470] sm:$0xf]
    %v2045 = vld [vmem:[#allocation14 + $0x474] sm:$0xff]
    %v2046 = vld [vmem:[#allocation14 + $0x47c] sm:$0xff]
    %v2047 = vld [vmem:[#allocation14 + $0x484] sm:$0xf]
    %v2048 = vld [vmem:[#allocation14 + $0x488] sm:$0xff]
    %v2049 = vld [vmem:[#allocation14 + $0x490] sm:$0xff]
    %v2050 = vld [vmem:[#allocation14 + $0x498] sm:$0xf]
    %v2051 = vld [vmem:[#allocation14 + $0x49c] sm:$0xff]
    %v2052 = vld [vmem:[#allocation14 + $0x4a4] sm:$0xff]
    %v2053 = vld [vmem:[#allocation14 + $0x4ac] sm:$0xf]
    %v2054 = vld [vmem:[#allocation14 + $0x4b0] sm:$0xff]
    %v2055 = vld [vmem:[#allocation14 + $0x4b8] sm:$0xff]
    %v2056 = vld [vmem:[#allocation14 + $0x4c0] sm:$0xf]
    %v2057 = vld [vmem:[#allocation14 + $0x4c4] sm:$0xff]
    %v2058 = vld [vmem:[#allocation14 + $0x4cc] sm:$0xff]
    %v2059 = vld [vmem:[#allocation14 + $0x4d4] sm:$0xf]
    %v2060 = vld [vmem:[#allocation14 + $0x4d8] sm:$0xff]
    %v2061 = vld [vmem:[#allocation14 + $0x4e0] sm:$0xff]
    %v2062 = vld [vmem:[#allocation14 + $0x4e8] sm:$0xf]
    %v2063 = vld [vmem:[#allocation14 + $0x4ec] sm:$0xff]
    %v2064 = vld [vmem:[#allocation14 + $0x4f4] sm:$0xff]
    %v2065 = vld [vmem:[#allocation14 + $0x4fc] sm:$0xf]
    %v2066 = vld [vmem:[#allocation14 + $0x500] sm:$0xff]
    %v2067 = vld [vmem:[#allocation14 + $0x508] sm:$0xff]
    %v2068 = vld [vmem:[#allocation14 + $0x510] sm:$0xf]
    %v2069 = vld [vmem:[#allocation14 + $0x514] sm:$0xff]
    %v2070 = vld [vmem:[#allocation14 + $0x51c] sm:$0xff]
    %v2071 = vld [vmem:[#allocation14 + $0x524] sm:$0xf]
    %v2072 = vld [vmem:[#allocation14 + $0x528] sm:$0xff]
    %v2073 = vld [vmem:[#allocation14 + $0x530] sm:$0xff]
    %v2074 = vld [vmem:[#allocation14 + $0x538] sm:$0xf]
    %v2075 = vld [vmem:[#allocation14 + $0x53c] sm:$0xff]
    %v2076 = vld [vmem:[#allocation14 + $0x544] sm:$0xff]
    %v2077 = vld [vmem:[#allocation14 + $0x54c] sm:$0xf]
    %v2078 = vld [vmem:[#allocation14 + $0x550] sm:$0xff]
    %v2079 = vld [vmem:[#allocation14 + $0x558] sm:$0xff]
    %v2080 = vld [vmem:[#allocation14 + $0x560] sm:$0xf]
    %v2081 = vld [vmem:[#allocation14 + $0x564] sm:$0xff]
    %v2082 = vld [vmem:[#allocation14 + $0x56c] sm:$0xff]
    %v2083 = vld [vmem:[#allocation14 + $0x574] sm:$0xf]
    %v2084 = vld [vmem:[#allocation14 + $0x578] sm:$0xff]
    %v2085 = vld [vmem:[#allocation14 + $0x580] sm:$0xff]
    %v2086 = vld [vmem:[#allocation14 + $0x588] sm:$0xf]
    %v2087 = vld [vmem:[#allocation14 + $0x58c] sm:$0xff]
    %v2088 = vld [vmem:[#allocation14 + $0x594] sm:$0xff]
    %v2089 = vld [vmem:[#allocation14 + $0x59c] sm:$0xf]
    %v2090 = vld [vmem:[#allocation14 + $0x5a0] sm:$0xff]
    %v2091 = vld [vmem:[#allocation14 + $0x5a8] sm:$0xff]
    %v2092 = vld [vmem:[#allocation14 + $0x5b0] sm:$0xf]
    %v2093 = vld [vmem:[#allocation14 + $0x5b4] sm:$0xff]
    %v2094 = vld [vmem:[#allocation14 + $0x5bc] sm:$0xff]
    %v2095 = vld [vmem:[#allocation14 + $0x5c4] sm:$0xf]
    %v2096 = vld [vmem:[#allocation14 + $0x5c8] sm:$0xff]
    %v2097 = vld [vmem:[#allocation14 + $0x5d0] sm:$0xff]
    %v2098 = vld [vmem:[#allocation14 + $0x5d8] sm:$0xf]
    %v2099 = vld [vmem:[#allocation14 + $0x5dc] sm:$0xff]
    %v2100 = vld [vmem:[#allocation14 + $0x5e4] sm:$0xff]
    %v2101 = vld [vmem:[#allocation14 + $0x5ec] sm:$0xf]
    %v2102 = vld [vmem:[#allocation14 + $0x5f0] sm:$0xff]
    %v2103 = vld [vmem:[#allocation14 + $0x5f8] sm:$0xff]
    %v2104 = vld [vmem:[#allocation14 + $0x600] sm:$0xf]
    %v2105 = vld [vmem:[#allocation14 + $0x604] sm:$0xff]
    %v2106 = vld [vmem:[#allocation14 + $0x60c] sm:$0xff]
    %v2107 = vld [vmem:[#allocation14 + $0x614] sm:$0xf]
    %v2108 = vld [vmem:[#allocation14 + $0x618] sm:$0xff]
    %v2109 = vld [vmem:[#allocation14 + $0x620] sm:$0xff]
    %v2110 = vld [vmem:[#allocation14 + $0x628] sm:$0xf]
    %v2111 = vld [vmem:[#allocation14 + $0x62c] sm:$0xff]
    %v2112 = vld [vmem:[#allocation14 + $0x634] sm:$0xff]
    %v2113 = vld [vmem:[#allocation14 + $0x63c] sm:$0xf]
    %v2114 = vld [vmem:[%s12] sm:$0x1f]
    %v2116 = vperm.slane %v2114, 0
    %v2117 = vperm.slane %v2114, 1
    %v2118 = vperm.slane %v2114, 2
    %v2119 = vperm.slane %v2114, 3
    %v2120 = vperm.slane %v2114, 4
    %v2366 = vunpack.c.l.b16 %v1874
    %v2367 = vunpack.c.h.b16 %v1874
    %v2368 = vunpack.c.l.b16 %v1875
    %v2369 = vunpack.c.h.b16 %v1875
    %v2370 = vunpack.c.l.b16 %v1876
    %v2371 = vunpack.c.l.b16 %v1877
    %v2372 = vunpack.c.h.b16 %v1877
    %v2373 = vunpack.c.l.b16 %v1878
    %v2374 = vunpack.c.h.b16 %v1878
    %v2375 = vunpack.c.l.b16 %v1879
    %v2376 = vunpack.c.l.b16 %v1880
    %v2377 = vunpack.c.h.b16 %v1880
    %v2378 = vunpack.c.l.b16 %v1881
    %v2379 = vunpack.c.h.b16 %v1881
    %v2380 = vunpack.c.l.b16 %v1882
    %v2381 = vunpack.c.l.b16 %v1883
    %v2382 = vunpack.c.h.b16 %v1883
    %v2383 = vunpack.c.l.b16 %v1884
    %v2384 = vunpack.c.h.b16 %v1884
    %v2385 = vunpack.c.l.b16 %v1885
    %v2386 = vunpack.c.l.b16 %v1886
    %v2387 = vunpack.c.h.b16 %v1886
    %v2388 = vunpack.c.l.b16 %v1887
    %v2389 = vunpack.c.h.b16 %v1887
    %v2390 = vunpack.c.l.b16 %v1888
    %v2391 = vunpack.c.l.b16 %v1889
    %v2392 = vunpack.c.h.b16 %v1889
    %v2393 = vunpack.c.l.b16 %v1890
    %v2394 = vunpack.c.h.b16 %v1890
    %v2395 = vunpack.c.l.b16 %v1891
    %v2396 = vunpack.c.l.b16 %v1892
    %v2397 = vunpack.c.h.b16 %v1892
    %v2398 = vunpack.c.l.b16 %v1893
    %v2399 = vunpack.c.h.b16 %v1893
    %v2400 = vunpack.c.l.b16 %v1894
    %v2401 = vunpack.c.l.b16 %v1895
    %v2402 = vunpack.c.h.b16 %v1895
    %v2403 = vunpack.c.l.b16 %v1896
    %v2404 = vunpack.c.h.b16 %v1896
    %v2405 = vunpack.c.l.b16 %v1897
    %v2406 = vunpack.c.l.b16 %v1898
    %v2407 = vunpack.c.h.b16 %v1898
    %v2408 = vunpack.c.l.b16 %v1899
    %v2409 = vunpack.c.h.b16 %v1899
    %v2410 = vunpack.c.l.b16 %v1900
    %v2411 = vunpack.c.l.b16 %v1901
    %v2412 = vunpack.c.h.b16 %v1901
    %v2413 = vunpack.c.l.b16 %v1902
    %v2414 = vunpack.c.h.b16 %v1902
    %v2415 = vunpack.c.l.b16 %v1903
    %v2416 = vunpack.c.l.b16 %v1904
    %v2417 = vunpack.c.h.b16 %v1904
    %v2418 = vunpack.c.l.b16 %v1905
    %v2419 = vunpack.c.h.b16 %v1905
    %v2420 = vunpack.c.l.b16 %v1906
    %v2421 = vunpack.c.l.b16 %v1907
    %v2422 = vunpack.c.h.b16 %v1907
    %v2423 = vunpack.c.l.b16 %v1908
    %v2424 = vunpack.c.h.b16 %v1908
    %v2425 = vunpack.c.l.b16 %v1909
    %v2426 = vunpack.c.l.b16 %v1910
    %v2427 = vunpack.c.h.b16 %v1910
    %v2428 = vunpack.c.l.b16 %v1911
    %v2429 = vunpack.c.h.b16 %v1911
    %v2430 = vunpack.c.l.b16 %v1912
    %v2431 = vunpack.c.l.b16 %v1913
    %v2432 = vunpack.c.h.b16 %v1913
    %v2433 = vunpack.c.l.b16 %v1914
    %v2434 = vunpack.c.h.b16 %v1914
    %v2435 = vunpack.c.l.b16 %v1915
    %v2436 = vunpack.c.l.b16 %v1916
    %v2437 = vunpack.c.h.b16 %v1916
    %v2438 = vunpack.c.l.b16 %v1917
    %v2439 = vunpack.c.h.b16 %v1917
    %v2440 = vunpack.c.l.b16 %v1918
    %v2441 = vunpack.c.l.b16 %v1919
    %v2442 = vunpack.c.h.b16 %v1919
    %v2443 = vunpack.c.l.b16 %v1920
    %v2444 = vunpack.c.h.b16 %v1920
    %v2445 = vunpack.c.l.b16 %v1921
    %v2446 = vunpack.c.l.b16 %v1922
    %v2447 = vunpack.c.h.b16 %v1922
    %v2448 = vunpack.c.l.b16 %v1923
    %v2449 = vunpack.c.h.b16 %v1923
    %v2450 = vunpack.c.l.b16 %v1924
    %v2451 = vunpack.c.l.b16 %v1925
    %v2452 = vunpack.c.h.b16 %v1925
    %v2453 = vunpack.c.l.b16 %v1926
    %v2454 = vunpack.c.h.b16 %v1926
    %v2455 = vunpack.c.l.b16 %v1927
    %v2456 = vunpack.c.l.b16 %v1928
    %v2457 = vunpack.c.h.b16 %v1928
    %v2458 = vunpack.c.l.b16 %v1929
    %v2459 = vunpack.c.h.b16 %v1929
    %v2460 = vunpack.c.l.b16 %v1930
    %v2461 = vunpack.c.l.b16 %v1931
    %v2462 = vunpack.c.h.b16 %v1931
    %v2463 = vunpack.c.l.b16 %v1932
    %v2464 = vunpack.c.h.b16 %v1932
    %v2465 = vunpack.c.l.b16 %v1933
    %v2466 = vunpack.c.l.b16 %v1934
    %v2467 = vunpack.c.h.b16 %v1934
    %v2468 = vunpack.c.l.b16 %v1935
    %v2469 = vunpack.c.h.b16 %v1935
    %v2470 = vunpack.c.l.b16 %v1936
    %v2471 = vunpack.c.l.b16 %v1937
    %v2472 = vunpack.c.h.b16 %v1937
    %v2473 = vunpack.c.l.b16 %v1938
    %v2474 = vunpack.c.h.b16 %v1938
    %v2475 = vunpack.c.l.b16 %v1939
    %v2476 = vunpack.c.l.b16 %v1940
    %v2477 = vunpack.c.h.b16 %v1940
    %v2478 = vunpack.c.l.b16 %v1941
    %v2479 = vunpack.c.h.b16 %v1941
    %v2480 = vunpack.c.l.b16 %v1942
    %v2481 = vunpack.c.l.b16 %v1943
    %v2482 = vunpack.c.h.b16 %v1943
    %v2483 = vunpack.c.l.b16 %v1944
    %v2484 = vunpack.c.h.b16 %v1944
    %v2485 = vunpack.c.l.b16 %v1945
    %v2486 = vunpack.c.l.b16 %v1946
    %v2487 = vunpack.c.h.b16 %v1946
    %v2488 = vunpack.c.l.b16 %v1947
    %v2489 = vunpack.c.h.b16 %v1947
    %v2490 = vunpack.c.l.b16 %v1948
    %v2491 = vunpack.c.l.b16 %v1949
    %v2492 = vunpack.c.h.b16 %v1949
    %v2493 = vunpack.c.l.b16 %v1950
    %v2494 = vunpack.c.h.b16 %v1950
    %v2495 = vunpack.c.l.b16 %v1951
    %v2496 = vunpack.c.l.b16 %v1952
    %v2497 = vunpack.c.h.b16 %v1952
    %v2498 = vunpack.c.l.b16 %v1953
    %v2499 = vunpack.c.h.b16 %v1953
    %v2500 = vunpack.c.l.b16 %v1954
    %v2501 = vunpack.c.l.b16 %v1955
    %v2502 = vunpack.c.h.b16 %v1955
    %v2503 = vunpack.c.l.b16 %v1956
    %v2504 = vunpack.c.h.b16 %v1956
    %v2505 = vunpack.c.l.b16 %v1957
    %v2506 = vunpack.c.l.b16 %v1958
    %v2507 = vunpack.c.h.b16 %v1958
    %v2508 = vunpack.c.l.b16 %v1959
    %v2509 = vunpack.c.h.b16 %v1959
    %v2510 = vunpack.c.l.b16 %v1960
    %v2511 = vunpack.c.l.b16 %v1961
    %v2512 = vunpack.c.h.b16 %v1961
    %v2513 = vunpack.c.l.b16 %v1962
    %v2514 = vunpack.c.h.b16 %v1962
    %v2515 = vunpack.c.l.b16 %v1963
    %v2516 = vunpack.c.l.b16 %v1964
    %v2517 = vunpack.c.h.b16 %v1964
    %v2518 = vunpack.c.l.b16 %v1965
    %v2519 = vunpack.c.h.b16 %v1965
    %v2520 = vunpack.c.l.b16 %v1966
    %v2521 = vunpack.c.l.b16 %v1967
    %v2522 = vunpack.c.h.b16 %v1967
    %v2523 = vunpack.c.l.b16 %v1968
    %v2524 = vunpack.c.h.b16 %v1968
    %v2525 = vunpack.c.l.b16 %v1969
    %v2526 = vunpack.c.l.b16 %v1970
    %v2527 = vunpack.c.h.b16 %v1970
    %v2528 = vunpack.c.l.b16 %v1971
    %v2529 = vunpack.c.h.b16 %v1971
    %v2530 = vunpack.c.l.b16 %v1972
    %v2531 = vunpack.c.l.b16 %v1973
    %v2532 = vunpack.c.h.b16 %v1973
    %v2533 = vunpack.c.l.b16 %v1974
    %v2534 = vunpack.c.h.b16 %v1974
    %v2535 = vunpack.c.l.b16 %v1975
    %v2536 = vunpack.c.l.b16 %v1976
    %v2537 = vunpack.c.h.b16 %v1976
    %v2538 = vunpack.c.l.b16 %v1977
    %v2539 = vunpack.c.h.b16 %v1977
    %v2540 = vunpack.c.l.b16 %v1978
    %v2541 = vunpack.c.l.b16 %v1979
    %v2542 = vunpack.c.h.b16 %v1979
    %v2543 = vunpack.c.l.b16 %v1980
    %v2544 = vunpack.c.h.b16 %v1980
    %v2545 = vunpack.c.l.b16 %v1981
    %v2546 = vunpack.c.l.b16 %v1982
    %v2547 = vunpack.c.h.b16 %v1982
    %v2548 = vunpack.c.l.b16 %v1983
    %v2549 = vunpack.c.h.b16 %v1983
    %v2550 = vunpack.c.l.b16 %v1984
    %v2551 = vunpack.c.l.b16 %v1985
    %v2552 = vunpack.c.h.b16 %v1985
    %v2553 = vunpack.c.l.b16 %v1986
    %v2554 = vunpack.c.h.b16 %v1986
    %v2555 = vunpack.c.l.b16 %v1987
    %v2556 = vunpack.c.l.b16 %v1988
    %v2557 = vunpack.c.h.b16 %v1988
    %v2558 = vunpack.c.l.b16 %v1989
    %v2559 = vunpack.c.h.b16 %v1989
    %v2560 = vunpack.c.l.b16 %v1990
    %v2561 = vunpack.c.l.b16 %v1991
    %v2562 = vunpack.c.h.b16 %v1991
    %v2563 = vunpack.c.l.b16 %v1992
    %v2564 = vunpack.c.h.b16 %v1992
    %v2565 = vunpack.c.l.b16 %v1993
    %v2566 = vunpack.c.l.b16 %v1994
    %v2567 = vunpack.c.h.b16 %v1994
    %v2568 = vunpack.c.l.b16 %v1995
    %v2569 = vunpack.c.h.b16 %v1995
    %v2570 = vunpack.c.l.b16 %v1996
    %v2571 = vunpack.c.l.b16 %v1997
    %v2572 = vunpack.c.h.b16 %v1997
    %v2573 = vunpack.c.l.b16 %v1998
    %v2574 = vunpack.c.h.b16 %v1998
    %v2575 = vunpack.c.l.b16 %v1999
    %v2576 = vunpack.c.l.b16 %v2000
    %v2577 = vunpack.c.h.b16 %v2000
    %v2578 = vunpack.c.l.b16 %v2001
    %v2579 = vunpack.c.h.b16 %v2001
    %v2580 = vunpack.c.l.b16 %v2002
    %v2581 = vunpack.c.l.b16 %v2003
    %v2582 = vunpack.c.h.b16 %v2003
    %v2583 = vunpack.c.l.b16 %v2004
    %v2584 = vunpack.c.h.b16 %v2004
    %v2585 = vunpack.c.l.b16 %v2005
    %v2586 = vunpack.c.l.b16 %v2006
    %v2587 = vunpack.c.h.b16 %v2006
    %v2588 = vunpack.c.l.b16 %v2007
    %v2589 = vunpack.c.h.b16 %v2007
    %v2590 = vunpack.c.l.b16 %v2008
    %v2591 = vunpack.c.l.b16 %v2009
    %v2592 = vunpack.c.h.b16 %v2009
    %v2593 = vunpack.c.l.b16 %v2010
    %v2594 = vunpack.c.h.b16 %v2010
    %v2595 = vunpack.c.l.b16 %v2011
    %v2596 = vunpack.c.l.b16 %v2012
    %v2597 = vunpack.c.h.b16 %v2012
    %v2598 = vunpack.c.l.b16 %v2013
    %v2599 = vunpack.c.h.b16 %v2013
    %v2600 = vunpack.c.l.b16 %v2014
    %v2601 = vunpack.c.l.b16 %v2015
    %v2602 = vunpack.c.h.b16 %v2015
    %v2603 = vunpack.c.l.b16 %v2016
    %v2604 = vunpack.c.h.b16 %v2016
    %v2605 = vunpack.c.l.b16 %v2017
    %v2606 = vunpack.c.l.b16 %v2018
    %v2607 = vunpack.c.h.b16 %v2018
    %v2608 = vunpack.c.l.b16 %v2019
    %v2609 = vunpack.c.h.b16 %v2019
    %v2610 = vunpack.c.l.b16 %v2020
    %v2611 = vunpack.c.l.b16 %v2021
    %v2612 = vunpack.c.h.b16 %v2021
    %v2613 = vunpack.c.l.b16 %v2022
    %v2614 = vunpack.c.h.b16 %v2022
    %v2615 = vunpack.c.l.b16 %v2023
    %v2616 = vunpack.c.l.b16 %v2024
    %v2617 = vunpack.c.h.b16 %v2024
    %v2618 = vunpack.c.l.b16 %v2025
    %v2619 = vunpack.c.h.b16 %v2025
    %v2620 = vunpack.c.l.b16 %v2026
    %v2621 = vunpack.c.l.b16 %v2027
    %v2622 = vunpack.c.h.b16 %v2027
    %v2623 = vunpack.c.l.b16 %v2028
    %v2624 = vunpack.c.h.b16 %v2028
    %v2625 = vunpack.c.l.b16 %v2029
    %v2626 = vunpack.c.l.b16 %v2030
    %v2627 = vunpack.c.h.b16 %v2030
    %v2628 = vunpack.c.l.b16 %v2031
    %v2629 = vunpack.c.h.b16 %v2031
    %v2630 = vunpack.c.l.b16 %v2032
    %v2631 = vunpack.c.l.b16 %v2033
    %v2632 = vunpack.c.h.b16 %v2033
    %v2633 = vunpack.c.l.b16 %v2034
    %v2634 = vunpack.c.h.b16 %v2034
    %v2635 = vunpack.c.l.b16 %v2035
    %v2636 = vunpack.c.l.b16 %v2036
    %v2637 = vunpack.c.h.b16 %v2036
    %v2638 = vunpack.c.l.b16 %v2037
    %v2639 = vunpack.c.h.b16 %v2037
    %v2640 = vunpack.c.l.b16 %v2038
    %v2641 = vunpack.c.l.b16 %v2039
    %v2642 = vunpack.c.h.b16 %v2039
    %v2643 = vunpack.c.l.b16 %v2040
    %v2644 = vunpack.c.h.b16 %v2040
    %v2645 = vunpack.c.l.b16 %v2041
    %v2646 = vunpack.c.l.b16 %v2042
    %v2647 = vunpack.c.h.b16 %v2042
    %v2648 = vunpack.c.l.b16 %v2043
    %v2649 = vunpack.c.h.b16 %v2043
    %v2650 = vunpack.c.l.b16 %v2044
    %v2651 = vunpack.c.l.b16 %v2045
    %v2652 = vunpack.c.h.b16 %v2045
    %v2653 = vunpack.c.l.b16 %v2046
    %v2654 = vunpack.c.h.b16 %v2046
    %v2655 = vunpack.c.l.b16 %v2047
    %v2656 = vunpack.c.l.b16 %v2048
    %v2657 = vunpack.c.h.b16 %v2048
    %v2658 = vunpack.c.l.b16 %v2049
    %v2659 = vunpack.c.h.b16 %v2049
    %v2660 = vunpack.c.l.b16 %v2050
    %v2661 = vunpack.c.l.b16 %v2051
    %v2662 = vunpack.c.h.b16 %v2051
    %v2663 = vunpack.c.l.b16 %v2052
    %v2664 = vunpack.c.h.b16 %v2052
    %v2665 = vunpack.c.l.b16 %v2053
    %v2666 = vunpack.c.l.b16 %v2054
    %v2667 = vunpack.c.h.b16 %v2054
    %v2668 = vunpack.c.l.b16 %v2055
    %v2669 = vunpack.c.h.b16 %v2055
    %v2670 = vunpack.c.l.b16 %v2056
    %v2671 = vunpack.c.l.b16 %v2057
    %v2672 = vunpack.c.h.b16 %v2057
    %v2673 = vunpack.c.l.b16 %v2058
    %v2674 = vunpack.c.h.b16 %v2058
    %v2675 = vunpack.c.l.b16 %v2059
    %v2676 = vunpack.c.l.b16 %v2060
    %v2677 = vunpack.c.h.b16 %v2060
    %v2678 = vunpack.c.l.b16 %v2061
    %v2679 = vunpack.c.h.b16 %v2061
    %v2680 = vunpack.c.l.b16 %v2062
    %v2681 = vunpack.c.l.b16 %v2063
    %v2682 = vunpack.c.h.b16 %v2063
    %v2683 = vunpack.c.l.b16 %v2064
    %v2684 = vunpack.c.h.b16 %v2064
    %v2685 = vunpack.c.l.b16 %v2065
    %v2686 = vunpack.c.l.b16 %v2066
    %v2687 = vunpack.c.h.b16 %v2066
    %v2688 = vunpack.c.l.b16 %v2067
    %v2689 = vunpack.c.h.b16 %v2067
    %v2690 = vunpack.c.l.b16 %v2068
    %v2691 = vunpack.c.l.b16 %v2069
    %v2692 = vunpack.c.h.b16 %v2069
    %v2693 = vunpack.c.l.b16 %v2070
    %v2694 = vunpack.c.h.b16 %v2070
    %v2695 = vunpack.c.l.b16 %v2071
    %v2696 = vunpack.c.l.b16 %v2072
    %v2697 = vunpack.c.h.b16 %v2072
    %v2698 = vunpack.c.l.b16 %v2073
    %v2699 = vunpack.c.h.b16 %v2073
    %v2700 = vunpack.c.l.b16 %v2074
    %v2701 = vunpack.c.l.b16 %v2075
    %v2702 = vunpack.c.h.b16 %v2075
    %v2703 = vunpack.c.l.b16 %v2076
    %v2704 = vunpack.c.h.b16 %v2076
    %v2705 = vunpack.c.l.b16 %v2077
    %v2706 = vunpack.c.l.b16 %v2078
    %v2707 = vunpack.c.h.b16 %v2078
    %v2708 = vunpack.c.l.b16 %v2079
    %v2709 = vunpack.c.h.b16 %v2079
    %v2710 = vunpack.c.l.b16 %v2080
    %v2711 = vunpack.c.l.b16 %v2081
    %v2712 = vunpack.c.h.b16 %v2081
    %v2713 = vunpack.c.l.b16 %v2082
    %v2714 = vunpack.c.h.b16 %v2082
    %v2715 = vunpack.c.l.b16 %v2083
    %v2716 = vunpack.c.l.b16 %v2084
    %v2717 = vunpack.c.h.b16 %v2084
    %v2718 = vunpack.c.l.b16 %v2085
    %v2719 = vunpack.c.h.b16 %v2085
    %v2720 = vunpack.c.l.b16 %v2086
    %v2721 = vunpack.c.l.b16 %v2087
    %v2722 = vunpack.c.h.b16 %v2087
    %v2723 = vunpack.c.l.b16 %v2088
    %v2724 = vunpack.c.h.b16 %v2088
    %v2725 = vunpack.c.l.b16 %v2089
    %v2726 = vunpack.c.l.b16 %v2090
    %v2727 = vunpack.c.h.b16 %v2090
    %v2728 = vunpack.c.l.b16 %v2091
    %v2729 = vunpack.c.h.b16 %v2091
    %v2730 = vunpack.c.l.b16 %v2092
    %v2731 = vunpack.c.l.b16 %v2093
    %v2732 = vunpack.c.h.b16 %v2093
    %v2733 = vunpack.c.l.b16 %v2094
    %v2734 = vunpack.c.h.b16 %v2094
    %v2735 = vunpack.c.l.b16 %v2095
    %v2736 = vunpack.c.l.b16 %v2096
    %v2737 = vunpack.c.h.b16 %v2096
    %v2738 = vunpack.c.l.b16 %v2097
    %v2739 = vunpack.c.h.b16 %v2097
    %v2740 = vunpack.c.l.b16 %v2098
    %v2741 = vunpack.c.l.b16 %v2099
    %v2742 = vunpack.c.h.b16 %v2099
    %v2743 = vunpack.c.l.b16 %v2100
    %v2744 = vunpack.c.h.b16 %v2100
    %v2745 = vunpack.c.l.b16 %v2101
    %v2746 = vunpack.c.l.b16 %v2102
    %v2747 = vunpack.c.h.b16 %v2102
    %v2748 = vunpack.c.l.b16 %v2103
    %v2749 = vunpack.c.h.b16 %v2103
    %v2750 = vunpack.c.l.b16 %v2104
    %v2751 = vunpack.c.l.b16 %v2105
    %v2752 = vunpack.c.h.b16 %v2105
    %v2753 = vunpack.c.l.b16 %v2106
    %v2754 = vunpack.c.h.b16 %v2106
    %v2755 = vunpack.c.l.b16 %v2107
    %v2756 = vunpack.c.l.b16 %v2108
    %v2757 = vunpack.c.h.b16 %v2108
    %v2758 = vunpack.c.l.b16 %v2109
    %v2759 = vunpack.c.h.b16 %v2109
    %v2760 = vunpack.c.l.b16 %v2110
    %v2761 = vunpack.c.l.b16 %v2111
    %v2762 = vunpack.c.h.b16 %v2111
    %v2763 = vunpack.c.l.b16 %v2112
    %v2764 = vunpack.c.h.b16 %v2112
    %v2765 = vunpack.c.l.b16 %v2113
    %v2766 = vpack.c.b16 %v2371, %v2366
    %v2767 = vpack.c.b16 %v2372, %v2367
    %v2768 = vpack.c.b16 %v2373, %v2368
    %v2769 = vpack.c.b16 %v2374, %v2369
    %v2770 = vpack.c.b16 %v2375, %v2370
    %v2771 = vpack.c.b16 %v2381, %v2376
    %v2772 = vpack.c.b16 %v2382, %v2377
    %v2773 = vpack.c.b16 %v2383, %v2378
    %v2774 = vpack.c.b16 %v2384, %v2379
    %v2775 = vpack.c.b16 %v2385, %v2380
    %v2776 = vpack.c.b16 %v2391, %v2386
    %v2777 = vpack.c.b16 %v2392, %v2387
    %v2778 = vpack.c.b16 %v2393, %v2388
    %v2779 = vpack.c.b16 %v2394, %v2389
    %v2780 = vpack.c.b16 %v2395, %v2390
    %v2781 = vpack.c.b16 %v2401, %v2396
    %v2782 = vpack.c.b16 %v2402, %v2397
    %v2783 = vpack.c.b16 %v2403, %v2398
    %v2784 = vpack.c.b16 %v2404, %v2399
    %v2785 = vpack.c.b16 %v2405, %v2400
    %v2786 = vpack.c.b16 %v2411, %v2406
    %v2787 = vpack.c.b16 %v2412, %v2407
    %v2788 = vpack.c.b16 %v2413, %v2408
    %v2789 = vpack.c.b16 %v2414, %v2409
    %v2790 = vpack.c.b16 %v2415, %v2410
    %v2791 = vpack.c.b16 %v2421, %v2416
    %v2792 = vpack.c.b16 %v2422, %v2417
    %v2793 = vpack.c.b16 %v2423, %v2418
    %v2794 = vpack.c.b16 %v2424, %v2419
    %v2795 = vpack.c.b16 %v2425, %v2420
    %v2796 = vpack.c.b16 %v2431, %v2426
    %v2797 = vpack.c.b16 %v2432, %v2427
    %v2798 = vpack.c.b16 %v2433, %v2428
    %v2799 = vpack.c.b16 %v2434, %v2429
    %v2800 = vpack.c.b16 %v2435, %v2430
    %v2801 = vpack.c.b16 %v2441, %v2436
    %v2802 = vpack.c.b16 %v2442, %v2437
    %v2803 = vpack.c.b16 %v2443, %v2438
    %v2804 = vpack.c.b16 %v2444, %v2439
    %v2805 = vpack.c.b16 %v2445, %v2440
    %v2806 = vpack.c.b16 %v2451, %v2446
    %v2807 = vpack.c.b16 %v2452, %v2447
    %v2808 = vpack.c.b16 %v2453, %v2448
    %v2809 = vpack.c.b16 %v2454, %v2449
    %v2810 = vpack.c.b16 %v2455, %v2450
    %v2811 = vpack.c.b16 %v2461, %v2456
    %v2812 = vpack.c.b16 %v2462, %v2457
    %v2813 = vpack.c.b16 %v2463, %v2458
    %v2814 = vpack.c.b16 %v2464, %v2459
    %v2815 = vpack.c.b16 %v2465, %v2460
    %v2816 = vpack.c.b16 %v2471, %v2466
    %v2817 = vpack.c.b16 %v2472, %v2467
    %v2818 = vpack.c.b16 %v2473, %v2468
    %v2819 = vpack.c.b16 %v2474, %v2469
    %v2820 = vpack.c.b16 %v2475, %v2470
    %v2821 = vpack.c.b16 %v2481, %v2476
    %v2822 = vpack.c.b16 %v2482, %v2477
    %v2823 = vpack.c.b16 %v2483, %v2478
    %v2824 = vpack.c.b16 %v2484, %v2479
    %v2825 = vpack.c.b16 %v2485, %v2480
    %v2826 = vpack.c.b16 %v2491, %v2486
    %v2827 = vpack.c.b16 %v2492, %v2487
    %v2828 = vpack.c.b16 %v2493, %v2488
    %v2829 = vpack.c.b16 %v2494, %v2489
    %v2830 = vpack.c.b16 %v2495, %v2490
    %v2831 = vpack.c.b16 %v2501, %v2496
    %v2832 = vpack.c.b16 %v2502, %v2497
    %v2833 = vpack.c.b16 %v2503, %v2498
    %v2834 = vpack.c.b16 %v2504, %v2499
    %v2835 = vpack.c.b16 %v2505, %v2500
    %v2836 = vpack.c.b16 %v2511, %v2506
    %v2837 = vpack.c.b16 %v2512, %v2507
    %v2838 = vpack.c.b16 %v2513, %v2508
    %v2839 = vpack.c.b16 %v2514, %v2509
    %v2840 = vpack.c.b16 %v2515, %v2510
    %v2841 = vpack.c.b16 %v2521, %v2516
    %v2842 = vpack.c.b16 %v2522, %v2517
    %v2843 = vpack.c.b16 %v2523, %v2518
    %v2844 = vpack.c.b16 %v2524, %v2519
    %v2845 = vpack.c.b16 %v2525, %v2520
    %v2846 = vpack.c.b16 %v2531, %v2526
    %v2847 = vpack.c.b16 %v2532, %v2527
    %v2848 = vpack.c.b16 %v2533, %v2528
    %v2849 = vpack.c.b16 %v2534, %v2529
    %v2850 = vpack.c.b16 %v2535, %v2530
    %v2851 = vpack.c.b16 %v2541, %v2536
    %v2852 = vpack.c.b16 %v2542, %v2537
    %v2853 = vpack.c.b16 %v2543, %v2538
    %v2854 = vpack.c.b16 %v2544, %v2539
    %v2855 = vpack.c.b16 %v2545, %v2540
    %v2856 = vpack.c.b16 %v2551, %v2546
    %v2857 = vpack.c.b16 %v2552, %v2547
    %v2858 = vpack.c.b16 %v2553, %v2548
    %v2859 = vpack.c.b16 %v2554, %v2549
    %v2860 = vpack.c.b16 %v2555, %v2550
    %v2861 = vpack.c.b16 %v2561, %v2556
    %v2862 = vpack.c.b16 %v2562, %v2557
    %v2863 = vpack.c.b16 %v2563, %v2558
    %v2864 = vpack.c.b16 %v2564, %v2559
    %v2865 = vpack.c.b16 %v2565, %v2560
    %v2866 = vpack.c.b16 %v2571, %v2566
    %v2867 = vpack.c.b16 %v2572, %v2567
    %v2868 = vpack.c.b16 %v2573, %v2568
    %v2869 = vpack.c.b16 %v2574, %v2569
    %v2870 = vpack.c.b16 %v2575, %v2570
    %v2871 = vpack.c.b16 %v2581, %v2576
    %v2872 = vpack.c.b16 %v2582, %v2577
    %v2873 = vpack.c.b16 %v2583, %v2578
    %v2874 = vpack.c.b16 %v2584, %v2579
    %v2875 = vpack.c.b16 %v2585, %v2580
    %v2876 = vpack.c.b16 %v2591, %v2586
    %v2877 = vpack.c.b16 %v2592, %v2587
    %v2878 = vpack.c.b16 %v2593, %v2588
    %v2879 = vpack.c.b16 %v2594, %v2589
    %v2880 = vpack.c.b16 %v2595, %v2590
    %v2881 = vpack.c.b16 %v2601, %v2596
    %v2882 = vpack.c.b16 %v2602, %v2597
    %v2883 = vpack.c.b16 %v2603, %v2598
    %v2884 = vpack.c.b16 %v2604, %v2599
    %v2885 = vpack.c.b16 %v2605, %v2600
    %v2886 = vpack.c.b16 %v2611, %v2606
    %v2887 = vpack.c.b16 %v2612, %v2607
    %v2888 = vpack.c.b16 %v2613, %v2608
    %v2889 = vpack.c.b16 %v2614, %v2609
    %v2890 = vpack.c.b16 %v2615, %v2610
    %v2891 = vpack.c.b16 %v2621, %v2616
    %v2892 = vpack.c.b16 %v2622, %v2617
    %v2893 = vpack.c.b16 %v2623, %v2618
    %v2894 = vpack.c.b16 %v2624, %v2619
    %v2895 = vpack.c.b16 %v2625, %v2620
    %v2896 = vpack.c.b16 %v2631, %v2626
    %v2897 = vpack.c.b16 %v2632, %v2627
    %v2898 = vpack.c.b16 %v2633, %v2628
    %v2899 = vpack.c.b16 %v2634, %v2629
    %v2900 = vpack.c.b16 %v2635, %v2630
    %v2901 = vpack.c.b16 %v2641, %v2636
    %v2902 = vpack.c.b16 %v2642, %v2637
    %v2903 = vpack.c.b16 %v2643, %v2638
    %v2904 = vpack.c.b16 %v2644, %v2639
    %v2905 = vpack.c.b16 %v2645, %v2640
    %v2906 = vpack.c.b16 %v2651, %v2646
    %v2907 = vpack.c.b16 %v2652, %v2647
    %v2908 = vpack.c.b16 %v2653, %v2648
    %v2909 = vpack.c.b16 %v2654, %v2649
    %v2910 = vpack.c.b16 %v2655, %v2650
    %v2911 = vpack.c.b16 %v2661, %v2656
    %v2912 = vpack.c.b16 %v2662, %v2657
    %v2913 = vpack.c.b16 %v2663, %v2658
    %v2914 = vpack.c.b16 %v2664, %v2659
    %v2915 = vpack.c.b16 %v2665, %v2660
    %v2916 = vpack.c.b16 %v2671, %v2666
    %v2917 = vpack.c.b16 %v2672, %v2667
    %v2918 = vpack.c.b16 %v2673, %v2668
    %v2919 = vpack.c.b16 %v2674, %v2669
    %v2920 = vpack.c.b16 %v2675, %v2670
    %v2921 = vpack.c.b16 %v2681, %v2676
    %v2922 = vpack.c.b16 %v2682, %v2677
    %v2923 = vpack.c.b16 %v2683, %v2678
    %v2924 = vpack.c.b16 %v2684, %v2679
    %v2925 = vpack.c.b16 %v2685, %v2680
    %v2926 = vpack.c.b16 %v2691, %v2686
    %v2927 = vpack.c.b16 %v2692, %v2687
    %v2928 = vpack.c.b16 %v2693, %v2688
    %v2929 = vpack.c.b16 %v2694, %v2689
    %v2930 = vpack.c.b16 %v2695, %v2690
    %v2931 = vpack.c.b16 %v2701, %v2696
    %v2932 = vpack.c.b16 %v2702, %v2697
    %v2933 = vpack.c.b16 %v2703, %v2698
    %v2934 = vpack.c.b16 %v2704, %v2699
    %v2935 = vpack.c.b16 %v2705, %v2700
    %v2936 = vpack.c.b16 %v2711, %v2706
    %v2937 = vpack.c.b16 %v2712, %v2707
    %v2938 = vpack.c.b16 %v2713, %v2708
    %v2939 = vpack.c.b16 %v2714, %v2709
    %v2940 = vpack.c.b16 %v2715, %v2710
    %v2941 = vpack.c.b16 %v2721, %v2716
    %v2942 = vpack.c.b16 %v2722, %v2717
    %v2943 = vpack.c.b16 %v2723, %v2718
    %v2944 = vpack.c.b16 %v2724, %v2719
    %v2945 = vpack.c.b16 %v2725, %v2720
    %v2946 = vpack.c.b16 %v2731, %v2726
    %v2947 = vpack.c.b16 %v2732, %v2727
    %v2948 = vpack.c.b16 %v2733, %v2728
    %v2949 = vpack.c.b16 %v2734, %v2729
    %v2950 = vpack.c.b16 %v2735, %v2730
    %v2951 = vpack.c.b16 %v2741, %v2736
    %v2952 = vpack.c.b16 %v2742, %v2737
    %v2953 = vpack.c.b16 %v2743, %v2738
    %v2954 = vpack.c.b16 %v2744, %v2739
    %v2955 = vpack.c.b16 %v2745, %v2740
    %v2956 = vpack.c.b16 %v2751, %v2746
    %v2957 = vpack.c.b16 %v2752, %v2747
    %v2958 = vpack.c.b16 %v2753, %v2748
    %v2959 = vpack.c.b16 %v2754, %v2749
    %v2960 = vpack.c.b16 %v2755, %v2750
    %v2961 = vpack.c.b16 %v2761, %v2756
    %v2962 = vpack.c.b16 %v2762, %v2757
    %v2963 = vpack.c.b16 %v2763, %v2758
    %v2964 = vpack.c.b16 %v2764, %v2759
    %v2965 = vpack.c.b16 %v2765, %v2760
    %3166 = vmatpush.bf16.msra.mxu0 %v2801
    %3167 = vmatpush.bf16.msra.mxu0 %v2796
    %3168 = vmatpush.bf16.msra.mxu0 %v2791
    %3169 = vmatpush.bf16.msra.mxu0 %v2786
    %3170 = vmatpush.bf16.msra.mxu0 %v2781
    %3171 = vmatpush.bf16.msra.mxu0 %v2776
    %3172 = vmatpush.bf16.msra.mxu0 %v2771
    %3173 = vmatpush.bf16.msra.mxu0 %v2766
    %3174 = vmatmul.bf16.gmra.mxu0 %v1869
    %v3175 = vpop.f32.mrf.mxu0
    %v3176 = vadd.f32 %v2116, %v3175
    %v3177 = vpop.f32.mrf.mxu0
    %3178 = vdwg.mxu0
    %3179 = vmatpush.bf16.msra.mxu0 %v2841
    %3180 = vmatpush.bf16.msra.mxu0 %v2836
    %3181 = vmatpush.bf16.msra.mxu0 %v2831
    %3182 = vmatpush.bf16.msra.mxu0 %v2826
    %3183 = vmatpush.bf16.msra.mxu0 %v2821
    %3184 = vmatpush.bf16.msra.mxu0 %v2816
    %3185 = vmatpush.bf16.msra.mxu0 %v2811
    %3186 = vmatpush.bf16.msra.mxu0 %v2806
    %3187 = vmatmul.bf16.gmra.mxu0 %v1870
    %v3188 = vpop.f32.mrf.mxu0
    %v3189 = vadd.f32 %v3176, %v3188
    %v3190 = vpop.f32.mrf.mxu0
    %3191 = vdwg.mxu0
    %3192 = vmatpush.bf16.msra.mxu0 %v2881
    %3193 = vmatpush.bf16.msra.mxu0 %v2876
    %3194 = vmatpush.bf16.msra.mxu0 %v2871
    %3195 = vmatpush.bf16.msra.mxu0 %v2866
    %3196 = vmatpush.bf16.msra.mxu0 %v2861
    %3197 = vmatpush.bf16.msra.mxu0 %v2856
    %3198 = vmatpush.bf16.msra.mxu0 %v2851
    %3199 = vmatpush.bf16.msra.mxu0 %v2846
    %3200 = vmatmul.bf16.gmra.mxu0 %v1871
    %v3201 = vpop.f32.mrf.mxu0
    %v3202 = vadd.f32 %v3189, %v3201
    %v3203 = vpop.f32.mrf.mxu0
    %3204 = vdwg.mxu0
    %3205 = vmatpush.bf16.msra.mxu0 %v2921
    %3206 = vmatpush.bf16.msra.mxu0 %v2916
    %3207 = vmatpush.bf16.msra.mxu0 %v2911
    %3208 = vmatpush.bf16.msra.mxu0 %v2906
    %3209 = vmatpush.bf16.msra.mxu0 %v2901
    %3210 = vmatpush.bf16.msra.mxu0 %v2896
    %3211 = vmatpush.bf16.msra.mxu0 %v2891
    %3212 = vmatpush.bf16.msra.mxu0 %v2886
    %3213 = vmatmul.bf16.gmra.mxu0 %v1872
    %v3214 = vpop.f32.mrf.mxu0
    %v3215 = vadd.f32 %v3202, %v3214
    %v3216 = vpop.f32.mrf.mxu0
    %3217 = vdwg.mxu0
    %3218 = vmatpush.bf16.msra.mxu0 %v2961
    %3219 = vmatpush.bf16.msra.mxu0 %v2956
    %3220 = vmatpush.bf16.msra.mxu0 %v2951
    %3221 = vmatpush.bf16.msra.mxu0 %v2946
    %3222 = vmatpush.bf16.msra.mxu0 %v2941
    %3223 = vmatpush.bf16.msra.mxu0 %v2936
    %3224 = vmatpush.bf16.msra.mxu0 %v2931
    %3225 = vmatpush.bf16.msra.mxu0 %v2926
    %3226 = vmatmul.bf16.gmra.mxu0 %v1873
    %v3227 = vpop.f32.mrf.mxu0
    %v3228 = vadd.f32 %v3215, %v3227
    %v3229 = vpop.f32.mrf.mxu0
    %3230 = vdwg.mxu0
    %3231 = vmatpush.bf16.msra.mxu0 %v2802
    %3232 = vmatpush.bf16.msra.mxu0 %v2797
    %3233 = vmatpush.bf16.msra.mxu0 %v2792
    %3234 = vmatpush.bf16.msra.mxu0 %v2787
    %3235 = vmatpush.bf16.msra.mxu0 %v2782
    %3236 = vmatpush.bf16.msra.mxu0 %v2777
    %3237 = vmatpush.bf16.msra.mxu0 %v2772
    %3238 = vmatpush.bf16.msra.mxu0 %v2767
    %3239 = vmatmul.bf16.gmra.mxu0 %v1869
    %v3240 = vpop.f32.mrf.mxu0
    %v3241 = vadd.f32 %v2117, %v3240
    %v3242 = vpop.f32.mrf.mxu0
    %3243 = vdwg.mxu0
    %3244 = vmatpush.bf16.msra.mxu0 %v2842
    %3245 = vmatpush.bf16.msra.mxu0 %v2837
    %3246 = vmatpush.bf16.msra.mxu0 %v2832
    %3247 = vmatpush.bf16.msra.mxu0 %v2827
    %3248 = vmatpush.bf16.msra.mxu0 %v2822
    %3249 = vmatpush.bf16.msra.mxu0 %v2817
    %3250 = vmatpush.bf16.msra.mxu0 %v2812
    %3251 = vmatpush.bf16.msra.mxu0 %v2807
    %3252 = vmatmul.bf16.gmra.mxu0 %v1870
    %v3253 = vpop.f32.mrf.mxu0
    %v3254 = vadd.f32 %v3241, %v3253
    %v3255 = vpop.f32.mrf.mxu0
    %3256 = vdwg.mxu0
    %3257 = vmatpush.bf16.msra.mxu0 %v2882
    %3258 = vmatpush.bf16.msra.mxu0 %v2877
    %3259 = vmatpush.bf16.msra.mxu0 %v2872
    %3260 = vmatpush.bf16.msra.mxu0 %v2867
    %3261 = vmatpush.bf16.msra.mxu0 %v2862
    %3262 = vmatpush.bf16.msra.mxu0 %v2857
    %3263 = vmatpush.bf16.msra.mxu0 %v2852
    %3264 = vmatpush.bf16.msra.mxu0 %v2847
    %3265 = vmatmul.bf16.gmra.mxu0 %v1871
    %v3266 = vpop.f32.mrf.mxu0
    %v3267 = vadd.f32 %v3254, %v3266
    %v3268 = vpop.f32.mrf.mxu0
    %3269 = vdwg.mxu0
    %3270 = vmatpush.bf16.msra.mxu0 %v2922
    %3271 = vmatpush.bf16.msra.mxu0 %v2917
    %3272 = vmatpush.bf16.msra.mxu0 %v2912
    %3273 = vmatpush.bf16.msra.mxu0 %v2907
    %3274 = vmatpush.bf16.msra.mxu0 %v2902
    %3275 = vmatpush.bf16.msra.mxu0 %v2897
    %3276 = vmatpush.bf16.msra.mxu0 %v2892
    %3277 = vmatpush.bf16.msra.mxu0 %v2887
    %3278 = vmatmul.bf16.gmra.mxu0 %v1872
    %v3279 = vpop.f32.mrf.mxu0
    %v3280 = vadd.f32 %v3267, %v3279
    %v3281 = vpop.f32.mrf.mxu0
    %3282 = vdwg.mxu0
    %3283 = vmatpush.bf16.msra.mxu0 %v2962
    %3284 = vmatpush.bf16.msra.mxu0 %v2957
    %3285 = vmatpush.bf16.msra.mxu0 %v2952
    %3286 = vmatpush.bf16.msra.mxu0 %v2947
    %3287 = vmatpush.bf16.msra.mxu0 %v2942
    %3288 = vmatpush.bf16.msra.mxu0 %v2937
    %3289 = vmatpush.bf16.msra.mxu0 %v2932
    %3290 = vmatpush.bf16.msra.mxu0 %v2927
    %3291 = vmatmul.bf16.gmra.mxu0 %v1873
    %v3292 = vpop.f32.mrf.mxu0
    %v3293 = vadd.f32 %v3280, %v3292
    %v3294 = vpop.f32.mrf.mxu0
    %3295 = vdwg.mxu0
    %3296 = vmatpush.bf16.msra.mxu0 %v2803
    %3297 = vmatpush.bf16.msra.mxu0 %v2798
    %3298 = vmatpush.bf16.msra.mxu0 %v2793
    %3299 = vmatpush.bf16.msra.mxu0 %v2788
    %3300 = vmatpush.bf16.msra.mxu0 %v2783
    %3301 = vmatpush.bf16.msra.mxu0 %v2778
    %3302 = vmatpush.bf16.msra.mxu0 %v2773
    %3303 = vmatpush.bf16.msra.mxu0 %v2768
    %3304 = vmatmul.bf16.gmra.mxu0 %v1869
    %v3305 = vpop.f32.mrf.mxu0
    %v3306 = vadd.f32 %v2118, %v3305
    %v3307 = vpop.f32.mrf.mxu0
    %3308 = vdwg.mxu0
    %3309 = vmatpush.bf16.msra.mxu0 %v2843
    %3310 = vmatpush.bf16.msra.mxu0 %v2838
    %3311 = vmatpush.bf16.msra.mxu0 %v2833
    %3312 = vmatpush.bf16.msra.mxu0 %v2828
    %3313 = vmatpush.bf16.msra.mxu0 %v2823
    %3314 = vmatpush.bf16.msra.mxu0 %v2818
    %3315 = vmatpush.bf16.msra.mxu0 %v2813
    %3316 = vmatpush.bf16.msra.mxu0 %v2808
    %3317 = vmatmul.bf16.gmra.mxu0 %v1870
    %v3318 = vpop.f32.mrf.mxu0
    %v3319 = vadd.f32 %v3306, %v3318
    %v3320 = vpop.f32.mrf.mxu0
    %3321 = vdwg.mxu0
    %3322 = vmatpush.bf16.msra.mxu0 %v2883
    %3323 = vmatpush.bf16.msra.mxu0 %v2878
    %3324 = vmatpush.bf16.msra.mxu0 %v2873
    %3325 = vmatpush.bf16.msra.mxu0 %v2868
    %3326 = vmatpush.bf16.msra.mxu0 %v2863
    %3327 = vmatpush.bf16.msra.mxu0 %v2858
    %3328 = vmatpush.bf16.msra.mxu0 %v2853
    %3329 = vmatpush.bf16.msra.mxu0 %v2848
    %3330 = vmatmul.bf16.gmra.mxu0 %v1871
    %v3331 = vpop.f32.mrf.mxu0
    %v3332 = vadd.f32 %v3319, %v3331
    %v3333 = vpop.f32.mrf.mxu0
    %3334 = vdwg.mxu0
    %3335 = vmatpush.bf16.msra.mxu0 %v2923
    %3336 = vmatpush.bf16.msra.mxu0 %v2918
    %3337 = vmatpush.bf16.msra.mxu0 %v2913
    %3338 = vmatpush.bf16.msra.mxu0 %v2908
    %3339 = vmatpush.bf16.msra.mxu0 %v2903
    %3340 = vmatpush.bf16.msra.mxu0 %v2898
    %3341 = vmatpush.bf16.msra.mxu0 %v2893
    %3342 = vmatpush.bf16.msra.mxu0 %v2888
    %3343 = vmatmul.bf16.gmra.mxu0 %v1872
    %v3344 = vpop.f32.mrf.mxu0
    %v3345 = vadd.f32 %v3332, %v3344
    %v3346 = vpop.f32.mrf.mxu0
    %3347 = vdwg.mxu0
    %3348 = vmatpush.bf16.msra.mxu0 %v2963
    %3349 = vmatpush.bf16.msra.mxu0 %v2958
    %3350 = vmatpush.bf16.msra.mxu0 %v2953
    %3351 = vmatpush.bf16.msra.mxu0 %v2948
    %3352 = vmatpush.bf16.msra.mxu0 %v2943
    %3353 = vmatpush.bf16.msra.mxu0 %v2938
    %3354 = vmatpush.bf16.msra.mxu0 %v2933
    %3355 = vmatpush.bf16.msra.mxu0 %v2928
    %3356 = vmatmul.bf16.gmra.mxu0 %v1873
    %v3357 = vpop.f32.mrf.mxu0
    %v3358 = vadd.f32 %v3345, %v3357
    %v3359 = vpop.f32.mrf.mxu0
    %3360 = vdwg.mxu0
    %3361 = vmatpush.bf16.msra.mxu0 %v2804
    %3362 = vmatpush.bf16.msra.mxu0 %v2799
    %3363 = vmatpush.bf16.msra.mxu0 %v2794
    %3364 = vmatpush.bf16.msra.mxu0 %v2789
    %3365 = vmatpush.bf16.msra.mxu0 %v2784
    %3366 = vmatpush.bf16.msra.mxu0 %v2779
    %3367 = vmatpush.bf16.msra.mxu0 %v2774
    %3368 = vmatpush.bf16.msra.mxu0 %v2769
    %3369 = vmatmul.bf16.gmra.mxu0 %v1869
    %v3370 = vpop.f32.mrf.mxu0
    %v3371 = vadd.f32 %v2119, %v3370
    %v3372 = vpop.f32.mrf.mxu0
    %3373 = vdwg.mxu0
    %3374 = vmatpush.bf16.msra.mxu0 %v2844
    %3375 = vmatpush.bf16.msra.mxu0 %v2839
    %3376 = vmatpush.bf16.msra.mxu0 %v2834
    %3377 = vmatpush.bf16.msra.mxu0 %v2829
    %3378 = vmatpush.bf16.msra.mxu0 %v2824
    %3379 = vmatpush.bf16.msra.mxu0 %v2819
    %3380 = vmatpush.bf16.msra.mxu0 %v2814
    %3381 = vmatpush.bf16.msra.mxu0 %v2809
    %3382 = vmatmul.bf16.gmra.mxu0 %v1870
    %v3383 = vpop.f32.mrf.mxu0
    %v3384 = vadd.f32 %v3371, %v3383
    %v3385 = vpop.f32.mrf.mxu0
    %3386 = vdwg.mxu0
    %3387 = vmatpush.bf16.msra.mxu0 %v2884
    %3388 = vmatpush.bf16.msra.mxu0 %v2879
    %3389 = vmatpush.bf16.msra.mxu0 %v2874
    %3390 = vmatpush.bf16.msra.mxu0 %v2869
    %3391 = vmatpush.bf16.msra.mxu0 %v2864
    %3392 = vmatpush.bf16.msra.mxu0 %v2859
    %3393 = vmatpush.bf16.msra.mxu0 %v2854
    %3394 = vmatpush.bf16.msra.mxu0 %v2849
    %3395 = vmatmul.bf16.gmra.mxu0 %v1871
    %v3396 = vpop.f32.mrf.mxu0
    %v3397 = vadd.f32 %v3384, %v3396
    %v3398 = vpop.f32.mrf.mxu0
    %3399 = vdwg.mxu0
    %3400 = vmatpush.bf16.msra.mxu0 %v2924
    %3401 = vmatpush.bf16.msra.mxu0 %v2919
    %3402 = vmatpush.bf16.msra.mxu0 %v2914
    %3403 = vmatpush.bf16.msra.mxu0 %v2909
    %3404 = vmatpush.bf16.msra.mxu0 %v2904
    %3405 = vmatpush.bf16.msra.mxu0 %v2899
    %3406 = vmatpush.bf16.msra.mxu0 %v2894
    %3407 = vmatpush.bf16.msra.mxu0 %v2889
    %3408 = vmatmul.bf16.gmra.mxu0 %v1872
    %v3409 = vpop.f32.mrf.mxu0
    %v3410 = vadd.f32 %v3397, %v3409
    %v3411 = vpop.f32.mrf.mxu0
    %3412 = vdwg.mxu0
    %3413 = vmatpush.bf16.msra.mxu0 %v2964
    %3414 = vmatpush.bf16.msra.mxu0 %v2959
    %3415 = vmatpush.bf16.msra.mxu0 %v2954
    %3416 = vmatpush.bf16.msra.mxu0 %v2949
    %3417 = vmatpush.bf16.msra.mxu0 %v2944
    %3418 = vmatpush.bf16.msra.mxu0 %v2939
    %3419 = vmatpush.bf16.msra.mxu0 %v2934
    %3420 = vmatpush.bf16.msra.mxu0 %v2929
    %3421 = vmatmul.bf16.gmra.mxu0 %v1873
    %v3422 = vpop.f32.mrf.mxu0
    %v3423 = vadd.f32 %v3410, %v3422
    %v3424 = vpop.f32.mrf.mxu0
    %3425 = vdwg.mxu0
    %3426 = vmatpush.bf16.msra.mxu0 %v2805
    %3427 = vmatpush.bf16.msra.mxu0 %v2800
    %3428 = vmatpush.bf16.msra.mxu0 %v2795
    %3429 = vmatpush.bf16.msra.mxu0 %v2790
    %3430 = vmatpush.bf16.msra.mxu0 %v2785
    %3431 = vmatpush.bf16.msra.mxu0 %v2780
    %3432 = vmatpush.bf16.msra.mxu0 %v2775
    %3433 = vmatpush.bf16.msra.mxu0 %v2770
    %3434 = vmatmul.bf16.gmra.mxu0 %v1869
    %v3435 = vpop.f32.mrf.mxu0
    %v3436 = vadd.f32 %v2120, %v3435
    %v3437 = vpop.f32.mrf.mxu0
    %3438 = vdwg.mxu0
    %3439 = vmatpush.bf16.msra.mxu0 %v2845
    %3440 = vmatpush.bf16.msra.mxu0 %v2840
    %3441 = vmatpush.bf16.msra.mxu0 %v2835
    %3442 = vmatpush.bf16.msra.mxu0 %v2830
    %3443 = vmatpush.bf16.msra.mxu0 %v2825
    %3444 = vmatpush.bf16.msra.mxu0 %v2820
    %3445 = vmatpush.bf16.msra.mxu0 %v2815
    %3446 = vmatpush.bf16.msra.mxu0 %v2810
    %3447 = vmatmul.bf16.gmra.mxu0 %v1870
    %v3448 = vpop.f32.mrf.mxu0
    %v3449 = vadd.f32 %v3436, %v3448
    %v3450 = vpop.f32.mrf.mxu0
    %3451 = vdwg.mxu0
    %3452 = vmatpush.bf16.msra.mxu0 %v2885
    %3453 = vmatpush.bf16.msra.mxu0 %v2880
    %3454 = vmatpush.bf16.msra.mxu0 %v2875
    %3455 = vmatpush.bf16.msra.mxu0 %v2870
    %3456 = vmatpush.bf16.msra.mxu0 %v2865
    %3457 = vmatpush.bf16.msra.mxu0 %v2860
    %3458 = vmatpush.bf16.msra.mxu0 %v2855
    %3459 = vmatpush.bf16.msra.mxu0 %v2850
    %3460 = vmatmul.bf16.gmra.mxu0 %v1871
    %v3461 = vpop.f32.mrf.mxu0
    %v3462 = vadd.f32 %v3449, %v3461
    %v3463 = vpop.f32.mrf.mxu0
    %3464 = vdwg.mxu0
    %3465 = vmatpush.bf16.msra.mxu0 %v2925
    %3466 = vmatpush.bf16.msra.mxu0 %v2920
    %3467 = vmatpush.bf16.msra.mxu0 %v2915
    %3468 = vmatpush.bf16.msra.mxu0 %v2910
    %3469 = vmatpush.bf16.msra.mxu0 %v2905
    %3470 = vmatpush.bf16.msra.mxu0 %v2900
    %3471 = vmatpush.bf16.msra.mxu0 %v2895
    %3472 = vmatpush.bf16.msra.mxu0 %v2890
    %3473 = vmatmul.bf16.gmra.mxu0 %v1872
    %v3474 = vpop.f32.mrf.mxu0
    %v3475 = vadd.f32 %v3462, %v3474
    %v3476 = vpop.f32.mrf.mxu0
    %3477 = vdwg.mxu0
    %3478 = vmatpush.bf16.msra.mxu0 %v2965
    %3479 = vmatpush.bf16.msra.mxu0 %v2960
    %3480 = vmatpush.bf16.msra.mxu0 %v2955
    %3481 = vmatpush.bf16.msra.mxu0 %v2950
    %3482 = vmatpush.bf16.msra.mxu0 %v2945
    %3483 = vmatpush.bf16.msra.mxu0 %v2940
    %3484 = vmatpush.bf16.msra.mxu0 %v2935
    %3485 = vmatpush.bf16.msra.mxu0 %v2930
    %3486 = vmatmul.bf16.gmra.mxu0 %v1873
    %v3487 = vpop.f32.mrf.mxu0
    %v3488 = vadd.f32 %v3475, %v3487
    %v3489 = vpop.f32.mrf.mxu0
    %3490 = vdwg.mxu0
    %v3491 = vmax.f32 %v3228, 0.0
    %v3492 = vmax.f32 %v3293, 0.0
    %v3493 = vmax.f32 %v3358, 0.0
    %v3494 = vmax.f32 %v3423, 0.0
    %v3495 = vmax.f32 %v3488, 0.0
    %v3496 = vpack.c.bf16 %v3491, %v3491
    %v3497 = vpack.c.bf16 %v3492, %v3492
    %v3498 = vpack.c.bf16 %v3493, %v3493
    %v3499 = vpack.c.bf16 %v3494, %v3494
    %v3500 = vpack.c.bf16 %v3495, %v3495
    %v3501 = vld [vmem:[#allocation16] sm:$0xff]
    %v3502 = vld [vmem:[#allocation16 + $0x8] sm:$0xff]
    %v3503 = vld [vmem:[#allocation16 + $0x10] sm:$0xff]
    %v3504 = vld [vmem:[#allocation16 + $0x18] sm:$0xff]
    %v3505 = vld [vmem:[#allocation16 + $0x20] sm:$0xff]
    %v3506 = vld [vmem:[#allocation16 + $0x28] sm:$0xff]
    %v3507 = vld [vmem:[#allocation16 + $0x30] sm:$0xff]
    %v3508 = vld [vmem:[#allocation16 + $0x38] sm:$0xff]
    %v3509 = vld [vmem:[#allocation16 + $0x40] sm:$0xff]
    %v3510 = vld [vmem:[#allocation16 + $0x48] sm:$0xff]
    %v3511 = vld [vmem:[#allocation16 + $0x50] sm:$0xff]
    %v3512 = vld [vmem:[#allocation16 + $0x58] sm:$0xff]
    %v3513 = vld [vmem:[#allocation16 + $0x60] sm:$0xff]
    %v3514 = vld [vmem:[#allocation16 + $0x68] sm:$0xff]
    %v3515 = vld [vmem:[#allocation16 + $0x70] sm:$0xff]
    %v3516 = vld [vmem:[#allocation16 + $0x78] sm:$0xff]
    %v3517 = vld [vmem:[#allocation16 + $0x80] sm:$0xff]
    %v3518 = vld [vmem:[#allocation16 + $0x88] sm:$0xff]
    %v3519 = vld [vmem:[#allocation16 + $0x90] sm:$0xff]
    %v3520 = vld [vmem:[#allocation16 + $0x98] sm:$0xff]
    %v3521 = vld [vmem:[#allocation16 + $0xa0] sm:$0xff]
    %v3522 = vld [vmem:[#allocation16 + $0xa8] sm:$0xff]
    %v3523 = vld [vmem:[#allocation16 + $0xb0] sm:$0xff]
    %v3524 = vld [vmem:[#allocation16 + $0xb8] sm:$0xff]
    %v3525 = vld [vmem:[#allocation16 + $0xc0] sm:$0xff]
    %v3526 = vld [vmem:[#allocation16 + $0xc8] sm:$0xff]
    %v3527 = vld [vmem:[#allocation16 + $0xd0] sm:$0xff]
    %v3528 = vld [vmem:[#allocation16 + $0xd8] sm:$0xff]
    %v3529 = vld [vmem:[#allocation16 + $0xe0] sm:$0xff]
    %v3530 = vld [vmem:[#allocation16 + $0xe8] sm:$0xff]
    %v3531 = vld [vmem:[#allocation16 + $0xf0] sm:$0xff]
    %v3532 = vld [vmem:[#allocation16 + $0xf8] sm:$0xff]
    %v3533 = vld [vmem:[#allocation16 + $0x100] sm:$0xff]
    %v3534 = vld [vmem:[#allocation16 + $0x108] sm:$0xff]
    %v3535 = vld [vmem:[#allocation16 + $0x110] sm:$0xff]
    %v3536 = vld [vmem:[#allocation16 + $0x118] sm:$0xff]
    %v3537 = vld [vmem:[#allocation16 + $0x120] sm:$0xff]
    %v3538 = vld [vmem:[#allocation16 + $0x128] sm:$0xff]
    %v3539 = vld [vmem:[#allocation16 + $0x130] sm:$0xff]
    %v3540 = vld [vmem:[#allocation16 + $0x138] sm:$0xff]
    %v3541 = vld [vmem:[#allocation16 + $0x140] sm:$0xff]
    %v3542 = vld [vmem:[#allocation16 + $0x148] sm:$0xff]
    %v3543 = vld [vmem:[#allocation16 + $0x150] sm:$0xff]
    %v3544 = vld [vmem:[#allocation16 + $0x158] sm:$0xff]
    %v3545 = vld [vmem:[#allocation16 + $0x160] sm:$0xff]
    %v3546 = vld [vmem:[#allocation16 + $0x168] sm:$0xff]
    %v3547 = vld [vmem:[#allocation16 + $0x170] sm:$0xff]
    %v3548 = vld [vmem:[#allocation16 + $0x178] sm:$0xff]
    %v3549 = vld [vmem:[#allocation16 + $0x180] sm:$0xff]
    %v3550 = vld [vmem:[#allocation16 + $0x188] sm:$0xff]
    %v3551 = vld [vmem:[#allocation16 + $0x190] sm:$0xff]
    %v3552 = vld [vmem:[#allocation16 + $0x198] sm:$0xff]
    %v3553 = vld [vmem:[#allocation16 + $0x1a0] sm:$0xff]
    %v3554 = vld [vmem:[#allocation16 + $0x1a8] sm:$0xff]
    %v3555 = vld [vmem:[#allocation16 + $0x1b0] sm:$0xff]
    %v3556 = vld [vmem:[#allocation16 + $0x1b8] sm:$0xff]
    %v3557 = vld [vmem:[#allocation16 + $0x1c0] sm:$0xff]
    %v3558 = vld [vmem:[#allocation16 + $0x1c8] sm:$0xff]
    %v3559 = vld [vmem:[#allocation16 + $0x1d0] sm:$0xff]
    %v3560 = vld [vmem:[#allocation16 + $0x1d8] sm:$0xff]
    %v3561 = vld [vmem:[#allocation16 + $0x1e0] sm:$0xff]
    %v3562 = vld [vmem:[#allocation16 + $0x1e8] sm:$0xff]
    %v3563 = vld [vmem:[#allocation16 + $0x1f0] sm:$0xff]
    %v3564 = vld [vmem:[#allocation16 + $0x1f8] sm:$0xff]
    %v3565 = vld [vmem:[#allocation16 + $0x200] sm:$0xff]
    %v3566 = vld [vmem:[#allocation16 + $0x208] sm:$0xff]
    %v3567 = vld [vmem:[#allocation16 + $0x210] sm:$0xff]
    %v3568 = vld [vmem:[#allocation16 + $0x218] sm:$0xff]
    %v3569 = vld [vmem:[#allocation16 + $0x220] sm:$0xff]
    %v3570 = vld [vmem:[#allocation16 + $0x228] sm:$0xff]
    %v3571 = vld [vmem:[#allocation16 + $0x230] sm:$0xff]
    %v3572 = vld [vmem:[#allocation16 + $0x238] sm:$0xff]
    %v3573 = vld [vmem:[#allocation16 + $0x240] sm:$0xff]
    %v3574 = vld [vmem:[#allocation16 + $0x248] sm:$0xff]
    %v3575 = vld [vmem:[#allocation16 + $0x250] sm:$0xff]
    %v3576 = vld [vmem:[#allocation16 + $0x258] sm:$0xff]
    %v3577 = vld [vmem:[#allocation16 + $0x260] sm:$0xff]
    %v3578 = vld [vmem:[#allocation16 + $0x268] sm:$0xff]
    %v3579 = vld [vmem:[#allocation16 + $0x270] sm:$0xff]
    %v3580 = vld [vmem:[#allocation16 + $0x278] sm:$0xff]
    %v3581 = vld [vmem:[%s14] sm:$0x3]
    %v3583 = vperm.slane %v3581, 0
    %v3584 = vperm.slane %v3581, 1
    %v3667 = vunpack.c.l.b16 %v3501
    %v3668 = vunpack.c.h.b16 %v3501
    %v3669 = vunpack.c.l.b16 %v3502
    %v3670 = vunpack.c.h.b16 %v3502
    %v3671 = vunpack.c.l.b16 %v3503
    %v3672 = vunpack.c.h.b16 %v3503
    %v3673 = vunpack.c.l.b16 %v3504
    %v3674 = vunpack.c.h.b16 %v3504
    %v3675 = vunpack.c.l.b16 %v3505
    %v3676 = vunpack.c.h.b16 %v3505
    %v3677 = vunpack.c.l.b16 %v3506
    %v3678 = vunpack.c.h.b16 %v3506
    %v3679 = vunpack.c.l.b16 %v3507
    %v3680 = vunpack.c.h.b16 %v3507
    %v3681 = vunpack.c.l.b16 %v3508
    %v3682 = vunpack.c.h.b16 %v3508
    %v3683 = vunpack.c.l.b16 %v3509
    %v3684 = vunpack.c.h.b16 %v3509
    %v3685 = vunpack.c.l.b16 %v3510
    %v3686 = vunpack.c.h.b16 %v3510
    %v3687 = vunpack.c.l.b16 %v3511
    %v3688 = vunpack.c.h.b16 %v3511
    %v3689 = vunpack.c.l.b16 %v3512
    %v3690 = vunpack.c.h.b16 %v3512
    %v3691 = vunpack.c.l.b16 %v3513
    %v3692 = vunpack.c.h.b16 %v3513
    %v3693 = vunpack.c.l.b16 %v3514
    %v3694 = vunpack.c.h.b16 %v3514
    %v3695 = vunpack.c.l.b16 %v3515
    %v3696 = vunpack.c.h.b16 %v3515
    %v3697 = vunpack.c.l.b16 %v3516
    %v3698 = vunpack.c.h.b16 %v3516
    %v3699 = vunpack.c.l.b16 %v3517
    %v3700 = vunpack.c.h.b16 %v3517
    %v3701 = vunpack.c.l.b16 %v3518
    %v3702 = vunpack.c.h.b16 %v3518
    %v3703 = vunpack.c.l.b16 %v3519
    %v3704 = vunpack.c.h.b16 %v3519
    %v3705 = vunpack.c.l.b16 %v3520
    %v3706 = vunpack.c.h.b16 %v3520
    %v3707 = vunpack.c.l.b16 %v3521
    %v3708 = vunpack.c.h.b16 %v3521
    %v3709 = vunpack.c.l.b16 %v3522
    %v3710 = vunpack.c.h.b16 %v3522
    %v3711 = vunpack.c.l.b16 %v3523
    %v3712 = vunpack.c.h.b16 %v3523
    %v3713 = vunpack.c.l.b16 %v3524
    %v3714 = vunpack.c.h.b16 %v3524
    %v3715 = vunpack.c.l.b16 %v3525
    %v3716 = vunpack.c.h.b16 %v3525
    %v3717 = vunpack.c.l.b16 %v3526
    %v3718 = vunpack.c.h.b16 %v3526
    %v3719 = vunpack.c.l.b16 %v3527
    %v3720 = vunpack.c.h.b16 %v3527
    %v3721 = vunpack.c.l.b16 %v3528
    %v3722 = vunpack.c.h.b16 %v3528
    %v3723 = vunpack.c.l.b16 %v3529
    %v3724 = vunpack.c.h.b16 %v3529
    %v3725 = vunpack.c.l.b16 %v3530
    %v3726 = vunpack.c.h.b16 %v3530
    %v3727 = vunpack.c.l.b16 %v3531
    %v3728 = vunpack.c.h.b16 %v3531
    %v3729 = vunpack.c.l.b16 %v3532
    %v3730 = vunpack.c.h.b16 %v3532
    %v3731 = vunpack.c.l.b16 %v3533
    %v3732 = vunpack.c.h.b16 %v3533
    %v3733 = vunpack.c.l.b16 %v3534
    %v3734 = vunpack.c.h.b16 %v3534
    %v3735 = vunpack.c.l.b16 %v3535
    %v3736 = vunpack.c.h.b16 %v3535
    %v3737 = vunpack.c.l.b16 %v3536
    %v3738 = vunpack.c.h.b16 %v3536
    %v3739 = vunpack.c.l.b16 %v3537
    %v3740 = vunpack.c.h.b16 %v3537
    %v3741 = vunpack.c.l.b16 %v3538
    %v3742 = vunpack.c.h.b16 %v3538
    %v3743 = vunpack.c.l.b16 %v3539
    %v3744 = vunpack.c.h.b16 %v3539
    %v3745 = vunpack.c.l.b16 %v3540
    %v3746 = vunpack.c.h.b16 %v3540
    %v3747 = vunpack.c.l.b16 %v3541
    %v3748 = vunpack.c.h.b16 %v3541
    %v3749 = vunpack.c.l.b16 %v3542
    %v3750 = vunpack.c.h.b16 %v3542
    %v3751 = vunpack.c.l.b16 %v3543
    %v3752 = vunpack.c.h.b16 %v3543
    %v3753 = vunpack.c.l.b16 %v3544
    %v3754 = vunpack.c.h.b16 %v3544
    %v3755 = vunpack.c.l.b16 %v3545
    %v3756 = vunpack.c.h.b16 %v3545
    %v3757 = vunpack.c.l.b16 %v3546
    %v3758 = vunpack.c.h.b16 %v3546
    %v3759 = vunpack.c.l.b16 %v3547
    %v3760 = vunpack.c.h.b16 %v3547
    %v3761 = vunpack.c.l.b16 %v3548
    %v3762 = vunpack.c.h.b16 %v3548
    %v3763 = vunpack.c.l.b16 %v3549
    %v3764 = vunpack.c.h.b16 %v3549
    %v3765 = vunpack.c.l.b16 %v3550
    %v3766 = vunpack.c.h.b16 %v3550
    %v3767 = vunpack.c.l.b16 %v3551
    %v3768 = vunpack.c.h.b16 %v3551
    %v3769 = vunpack.c.l.b16 %v3552
    %v3770 = vunpack.c.h.b16 %v3552
    %v3771 = vunpack.c.l.b16 %v3553
    %v3772 = vunpack.c.h.b16 %v3553
    %v3773 = vunpack.c.l.b16 %v3554
    %v3774 = vunpack.c.h.b16 %v3554
    %v3775 = vunpack.c.l.b16 %v3555
    %v3776 = vunpack.c.h.b16 %v3555
    %v3777 = vunpack.c.l.b16 %v3556
    %v3778 = vunpack.c.h.b16 %v3556
    %v3779 = vunpack.c.l.b16 %v3557
    %v3780 = vunpack.c.h.b16 %v3557
    %v3781 = vunpack.c.l.b16 %v3558
    %v3782 = vunpack.c.h.b16 %v3558
    %v3783 = vunpack.c.l.b16 %v3559
    %v3784 = vunpack.c.h.b16 %v3559
    %v3785 = vunpack.c.l.b16 %v3560
    %v3786 = vunpack.c.h.b16 %v3560
    %v3787 = vunpack.c.l.b16 %v3561
    %v3788 = vunpack.c.h.b16 %v3561
    %v3789 = vunpack.c.l.b16 %v3562
    %v3790 = vunpack.c.h.b16 %v3562
    %v3791 = vunpack.c.l.b16 %v3563
    %v3792 = vunpack.c.h.b16 %v3563
    %v3793 = vunpack.c.l.b16 %v3564
    %v3794 = vunpack.c.h.b16 %v3564
    %v3795 = vunpack.c.l.b16 %v3565
    %v3796 = vunpack.c.h.b16 %v3565
    %v3797 = vunpack.c.l.b16 %v3566
    %v3798 = vunpack.c.h.b16 %v3566
    %v3799 = vunpack.c.l.b16 %v3567
    %v3800 = vunpack.c.h.b16 %v3567
    %v3801 = vunpack.c.l.b16 %v3568
    %v3802 = vunpack.c.h.b16 %v3568
    %v3803 = vunpack.c.l.b16 %v3569
    %v3804 = vunpack.c.h.b16 %v3569
    %v3805 = vunpack.c.l.b16 %v3570
    %v3806 = vunpack.c.h.b16 %v3570
    %v3807 = vunpack.c.l.b16 %v3571
    %v3808 = vunpack.c.h.b16 %v3571
    %v3809 = vunpack.c.l.b16 %v3572
    %v3810 = vunpack.c.h.b16 %v3572
    %v3811 = vunpack.c.l.b16 %v3573
    %v3812 = vunpack.c.h.b16 %v3573
    %v3813 = vunpack.c.l.b16 %v3574
    %v3814 = vunpack.c.h.b16 %v3574
    %v3815 = vunpack.c.l.b16 %v3575
    %v3816 = vunpack.c.h.b16 %v3575
    %v3817 = vunpack.c.l.b16 %v3576
    %v3818 = vunpack.c.h.b16 %v3576
    %v3819 = vunpack.c.l.b16 %v3577
    %v3820 = vunpack.c.h.b16 %v3577
    %v3821 = vunpack.c.l.b16 %v3578
    %v3822 = vunpack.c.h.b16 %v3578
    %v3823 = vunpack.c.l.b16 %v3579
    %v3824 = vunpack.c.h.b16 %v3579
    %v3825 = vunpack.c.l.b16 %v3580
    %v3826 = vunpack.c.h.b16 %v3580
    %v3827 = vpack.c.b16 %v3669, %v3667
    %v3828 = vpack.c.b16 %v3670, %v3668
    %v3829 = vpack.c.b16 %v3673, %v3671
    %v3830 = vpack.c.b16 %v3674, %v3672
    %v3831 = vpack.c.b16 %v3677, %v3675
    %v3832 = vpack.c.b16 %v3678, %v3676
    %v3833 = vpack.c.b16 %v3681, %v3679
    %v3834 = vpack.c.b16 %v3682, %v3680
    %v3835 = vpack.c.b16 %v3685, %v3683
    %v3836 = vpack.c.b16 %v3686, %v3684
    %v3837 = vpack.c.b16 %v3689, %v3687
    %v3838 = vpack.c.b16 %v3690, %v3688
    %v3839 = vpack.c.b16 %v3693, %v3691
    %v3840 = vpack.c.b16 %v3694, %v3692
    %v3841 = vpack.c.b16 %v3697, %v3695
    %v3842 = vpack.c.b16 %v3698, %v3696
    %v3843 = vpack.c.b16 %v3701, %v3699
    %v3844 = vpack.c.b16 %v3702, %v3700
    %v3845 = vpack.c.b16 %v3705, %v3703
    %v3846 = vpack.c.b16 %v3706, %v3704
    %v3847 = vpack.c.b16 %v3709, %v3707
    %v3848 = vpack.c.b16 %v3710, %v3708
    %v3849 = vpack.c.b16 %v3713, %v3711
    %v3850 = vpack.c.b16 %v3714, %v3712
    %v3851 = vpack.c.b16 %v3717, %v3715
    %v3852 = vpack.c.b16 %v3718, %v3716
    %v3853 = vpack.c.b16 %v3721, %v3719
    %v3854 = vpack.c.b16 %v3722, %v3720
    %v3855 = vpack.c.b16 %v3725, %v3723
    %v3856 = vpack.c.b16 %v3726, %v3724
    %v3857 = vpack.c.b16 %v3729, %v3727
    %v3858 = vpack.c.b16 %v3730, %v3728
    %v3859 = vpack.c.b16 %v3733, %v3731
    %v3860 = vpack.c.b16 %v3734, %v3732
    %v3861 = vpack.c.b16 %v3737, %v3735
    %v3862 = vpack.c.b16 %v3738, %v3736
    %v3863 = vpack.c.b16 %v3741, %v3739
    %v3864 = vpack.c.b16 %v3742, %v3740
    %v3865 = vpack.c.b16 %v3745, %v3743
    %v3866 = vpack.c.b16 %v3746, %v3744
    %v3867 = vpack.c.b16 %v3749, %v3747
    %v3868 = vpack.c.b16 %v3750, %v3748
    %v3869 = vpack.c.b16 %v3753, %v3751
    %v3870 = vpack.c.b16 %v3754, %v3752
    %v3871 = vpack.c.b16 %v3757, %v3755
    %v3872 = vpack.c.b16 %v3758, %v3756
    %v3873 = vpack.c.b16 %v3761, %v3759
    %v3874 = vpack.c.b16 %v3762, %v3760
    %v3875 = vpack.c.b16 %v3765, %v3763
    %v3876 = vpack.c.b16 %v3766, %v3764
    %v3877 = vpack.c.b16 %v3769, %v3767
    %v3878 = vpack.c.b16 %v3770, %v3768
    %v3879 = vpack.c.b16 %v3773, %v3771
    %v3880 = vpack.c.b16 %v3774, %v3772
    %v3881 = vpack.c.b16 %v3777, %v3775
    %v3882 = vpack.c.b16 %v3778, %v3776
    %v3883 = vpack.c.b16 %v3781, %v3779
    %v3884 = vpack.c.b16 %v3782, %v3780
    %v3885 = vpack.c.b16 %v3785, %v3783
    %v3886 = vpack.c.b16 %v3786, %v3784
    %v3887 = vpack.c.b16 %v3789, %v3787
    %v3888 = vpack.c.b16 %v3790, %v3788
    %v3889 = vpack.c.b16 %v3793, %v3791
    %v3890 = vpack.c.b16 %v3794, %v3792
    %v3891 = vpack.c.b16 %v3797, %v3795
    %v3892 = vpack.c.b16 %v3798, %v3796
    %v3893 = vpack.c.b16 %v3801, %v3799
    %v3894 = vpack.c.b16 %v3802, %v3800
    %v3895 = vpack.c.b16 %v3805, %v3803
    %v3896 = vpack.c.b16 %v3806, %v3804
    %v3897 = vpack.c.b16 %v3809, %v3807
    %v3898 = vpack.c.b16 %v3810, %v3808
    %v3899 = vpack.c.b16 %v3813, %v3811
    %v3900 = vpack.c.b16 %v3814, %v3812
    %v3901 = vpack.c.b16 %v3817, %v3815
    %v3902 = vpack.c.b16 %v3818, %v3816
    %v3903 = vpack.c.b16 %v3821, %v3819
    %v3904 = vpack.c.b16 %v3822, %v3820
    %v3905 = vpack.c.b16 %v3825, %v3823
    %v3906 = vpack.c.b16 %v3826, %v3824
    %3987 = vmatpush.bf16.msra.mxu0 %v3841
    %3988 = vmatpush.bf16.msra.mxu0 %v3839
    %3989 = vmatpush.bf16.msra.mxu0 %v3837
    %3990 = vmatpush.bf16.msra.mxu0 %v3835
    %3991 = vmatpush.bf16.msra.mxu0 %v3833
    %3992 = vmatpush.bf16.msra.mxu0 %v3831
    %3993 = vmatpush.bf16.msra.mxu0 %v3829
    %3994 = vmatpush.bf16.msra.mxu0 %v3827
    %3995 = vmatmul.bf16.gmra.mxu0 %v3496
    %v3996 = vpop.f32.mrf.mxu0
    %v3997 = vadd.f32 %v3583, %v3996
    %v3998 = vpop.f32.mrf.mxu0
    %3999 = vdwg.mxu0
    %4000 = vmatpush.bf16.msra.mxu0 %v3857
    %4001 = vmatpush.bf16.msra.mxu0 %v3855
    %4002 = vmatpush.bf16.msra.mxu0 %v3853
    %4003 = vmatpush.bf16.msra.mxu0 %v3851
    %4004 = vmatpush.bf16.msra.mxu0 %v3849
    %4005 = vmatpush.bf16.msra.mxu0 %v3847
    %4006 = vmatpush.bf16.msra.mxu0 %v3845
    %4007 = vmatpush.bf16.msra.mxu0 %v3843
    %4008 = vmatmul.bf16.gmra.mxu0 %v3497
    %v4009 = vpop.f32.mrf.mxu0
    %v4010 = vadd.f32 %v3997, %v4009
    %v4011 = vpop.f32.mrf.mxu0
    %4012 = vdwg.mxu0
    %4013 = vmatpush.bf16.msra.mxu0 %v3873
    %4014 = vmatpush.bf16.msra.mxu0 %v3871
    %4015 = vmatpush.bf16.msra.mxu0 %v3869
    %4016 = vmatpush.bf16.msra.mxu0 %v3867
    %4017 = vmatpush.bf16.msra.mxu0 %v3865
    %4018 = vmatpush.bf16.msra.mxu0 %v3863
    %4019 = vmatpush.bf16.msra.mxu0 %v3861
    %4020 = vmatpush.bf16.msra.mxu0 %v3859
    %4021 = vmatmul.bf16.gmra.mxu0 %v3498
    %v4022 = vpop.f32.mrf.mxu0
    %v4023 = vadd.f32 %v4010, %v4022
    %v4024 = vpop.f32.mrf.mxu0
    %4025 = vdwg.mxu0
    %4026 = vmatpush.bf16.msra.mxu0 %v3889
    %4027 = vmatpush.bf16.msra.mxu0 %v3887
    %4028 = vmatpush.bf16.msra.mxu0 %v3885
    %4029 = vmatpush.bf16.msra.mxu0 %v3883
    %4030 = vmatpush.bf16.msra.mxu0 %v3881
    %4031 = vmatpush.bf16.msra.mxu0 %v3879
    %4032 = vmatpush.bf16.msra.mxu0 %v3877
    %4033 = vmatpush.bf16.msra.mxu0 %v3875
    %4034 = vmatmul.bf16.gmra.mxu0 %v3499
    %v4035 = vpop.f32.mrf.mxu0
    %v4036 = vadd.f32 %v4023, %v4035
    %v4037 = vpop.f32.mrf.mxu0
    %4038 = vdwg.mxu0
    %4039 = vmatpush.bf16.msra.mxu0 %v3905
    %4040 = vmatpush.bf16.msra.mxu0 %v3903
    %4041 = vmatpush.bf16.msra.mxu0 %v3901
    %4042 = vmatpush.bf16.msra.mxu0 %v3899
    %4043 = vmatpush.bf16.msra.mxu0 %v3897
    %4044 = vmatpush.bf16.msra.mxu0 %v3895
    %4045 = vmatpush.bf16.msra.mxu0 %v3893
    %4046 = vmatpush.bf16.msra.mxu0 %v3891
    %4047 = vmatmul.bf16.gmra.mxu0 %v3500
    %v4048 = vpop.f32.mrf.mxu0
    %v4049 = vadd.f32 %v4036, %v4048
    %v4050 = vpop.f32.mrf.mxu0
    %4051 = vdwg.mxu0
    %4052 = vmatpush.bf16.msra.mxu0 %v3842
    %4053 = vmatpush.bf16.msra.mxu0 %v3840
    %4054 = vmatpush.bf16.msra.mxu0 %v3838
    %4055 = vmatpush.bf16.msra.mxu0 %v3836
    %4056 = vmatpush.bf16.msra.mxu0 %v3834
    %4057 = vmatpush.bf16.msra.mxu0 %v3832
    %4058 = vmatpush.bf16.msra.mxu0 %v3830
    %4059 = vmatpush.bf16.msra.mxu0 %v3828
    %4060 = vmatmul.bf16.gmra.mxu0 %v3496
    %v4061 = vpop.f32.mrf.mxu0
    %v4062 = vadd.f32 %v3584, %v4061
    %v4063 = vpop.f32.mrf.mxu0
    %4064 = vdwg.mxu0
    %4065 = vmatpush.bf16.msra.mxu0 %v3858
    %4066 = vmatpush.bf16.msra.mxu0 %v3856
    %4067 = vmatpush.bf16.msra.mxu0 %v3854
    %4068 = vmatpush.bf16.msra.mxu0 %v3852
    %4069 = vmatpush.bf16.msra.mxu0 %v3850
    %4070 = vmatpush.bf16.msra.mxu0 %v3848
    %4071 = vmatpush.bf16.msra.mxu0 %v3846
    %4072 = vmatpush.bf16.msra.mxu0 %v3844
    %4073 = vmatmul.bf16.gmra.mxu0 %v3497
    %v4074 = vpop.f32.mrf.mxu0
    %v4075 = vadd.f32 %v4062, %v4074
    %v4076 = vpop.f32.mrf.mxu0
    %4077 = vdwg.mxu0
    %4078 = vmatpush.bf16.msra.mxu0 %v3874
    %4079 = vmatpush.bf16.msra.mxu0 %v3872
    %4080 = vmatpush.bf16.msra.mxu0 %v3870
    %4081 = vmatpush.bf16.msra.mxu0 %v3868
    %4082 = vmatpush.bf16.msra.mxu0 %v3866
    %4083 = vmatpush.bf16.msra.mxu0 %v3864
    %4084 = vmatpush.bf16.msra.mxu0 %v3862
    %4085 = vmatpush.bf16.msra.mxu0 %v3860
    %4086 = vmatmul.bf16.gmra.mxu0 %v3498
    %v4087 = vpop.f32.mrf.mxu0
    %v4088 = vadd.f32 %v4075, %v4087
    %v4089 = vpop.f32.mrf.mxu0
    %4090 = vdwg.mxu0
    %4091 = vmatpush.bf16.msra.mxu0 %v3890
    %4092 = vmatpush.bf16.msra.mxu0 %v3888
    %4093 = vmatpush.bf16.msra.mxu0 %v3886
    %4094 = vmatpush.bf16.msra.mxu0 %v3884
    %4095 = vmatpush.bf16.msra.mxu0 %v3882
    %4096 = vmatpush.bf16.msra.mxu0 %v3880
    %4097 = vmatpush.bf16.msra.mxu0 %v3878
    %4098 = vmatpush.bf16.msra.mxu0 %v3876
    %4099 = vmatmul.bf16.gmra.mxu0 %v3499
    %v4100 = vpop.f32.mrf.mxu0
    %v4101 = vadd.f32 %v4088, %v4100
    %v4102 = vpop.f32.mrf.mxu0
    %4103 = vdwg.mxu0
    %4104 = vmatpush.bf16.msra.mxu0 %v3906
    %4105 = vmatpush.bf16.msra.mxu0 %v3904
    %4106 = vmatpush.bf16.msra.mxu0 %v3902
    %4107 = vmatpush.bf16.msra.mxu0 %v3900
    %4108 = vmatpush.bf16.msra.mxu0 %v3898
    %4109 = vmatpush.bf16.msra.mxu0 %v3896
    %4110 = vmatpush.bf16.msra.mxu0 %v3894
    %4111 = vmatpush.bf16.msra.mxu0 %v3892
    %4112 = vmatmul.bf16.gmra.mxu0 %v3500
    %v4113 = vpop.f32.mrf.mxu0
    %v4114 = vadd.f32 %v4101, %v4113
    %v4115 = vpop.f32.mrf.mxu0
    %4116 = vdwg.mxu0
    %v4117 = vmax.f32 %v4049, 0.0
    %v4118 = vmax.f32 %v4114, 0.0
    %v4119 = vpack.c.bf16 %v4117, %v4117
    %v4120 = vpack.c.bf16 %v4118, %v4118
    %v4121 = vld [vmem:[#allocation17] sm:$0xf]
    %v4122 = vld [vmem:[#allocation17 + $0x4] sm:$0xf]
    %v4123 = vld [vmem:[#allocation17 + $0x8] sm:$0xf]
    %v4124 = vld [vmem:[#allocation17 + $0xc] sm:$0xf]
    %v4125 = vld [vmem:[#allocation17 + $0x10] sm:$0xf]
    %v4126 = vld [vmem:[#allocation17 + $0x14] sm:$0xf]
    %v4127 = vld [vmem:[#allocation17 + $0x18] sm:$0xf]
    %v4128 = vld [vmem:[#allocation17 + $0x1c] sm:$0xf]
    %v4129 = vld [vmem:[#allocation17 + $0x20] sm:$0xf]
    %v4130 = vld [vmem:[#allocation17 + $0x24] sm:$0xf]
    %v4131 = vld [vmem:[#allocation17 + $0x28] sm:$0xf]
    %v4132 = vld [vmem:[#allocation17 + $0x2c] sm:$0xf]
    %v4133 = vld [vmem:[#allocation17 + $0x30] sm:$0xf]
    %v4134 = vld [vmem:[#allocation17 + $0x34] sm:$0xf]
    %v4135 = vld [vmem:[#allocation17 + $0x38] sm:$0xf]
    %v4136 = vld [vmem:[#allocation17 + $0x3c] sm:$0xf]
    %v4137 = vld [vmem:[#allocation17 + $0x40] sm:$0xf]
    %v4138 = vld [vmem:[#allocation17 + $0x44] sm:$0xf]
    %v4139 = vld [vmem:[#allocation17 + $0x48] sm:$0xf]
    %v4140 = vld [vmem:[#allocation17 + $0x4c] sm:$0xf]
    %v4141 = vld [vmem:[#allocation17 + $0x50] sm:$0xf]
    %v4142 = vld [vmem:[#allocation17 + $0x54] sm:$0xf]
    %v4143 = vld [vmem:[#allocation17 + $0x58] sm:$0xf]
    %v4144 = vld [vmem:[#allocation17 + $0x5c] sm:$0xf]
    %v4145 = vld [vmem:[#allocation17 + $0x60] sm:$0xf]
    %v4146 = vld [vmem:[#allocation17 + $0x64] sm:$0xf]
    %v4147 = vld [vmem:[#allocation17 + $0x68] sm:$0xf]
    %v4148 = vld [vmem:[#allocation17 + $0x6c] sm:$0xf]
    %v4149 = vld [vmem:[#allocation17 + $0x70] sm:$0xf]
    %v4150 = vld [vmem:[#allocation17 + $0x74] sm:$0xf]
    %v4151 = vld [vmem:[#allocation17 + $0x78] sm:$0xf]
    %v4152 = vld [vmem:[#allocation17 + $0x7c] sm:$0xf]
    %v4153 = vld [vmem:[%s16] sm:$0x1]
    %v4155 = vperm.slane %v4153, 0
    %v4189 = vunpack.c.l.b16 %v4121
    %v4190 = vunpack.c.l.b16 %v4122
    %v4191 = vunpack.c.l.b16 %v4123
    %v4192 = vunpack.c.l.b16 %v4124
    %v4193 = vunpack.c.l.b16 %v4125
    %v4194 = vunpack.c.l.b16 %v4126
    %v4195 = vunpack.c.l.b16 %v4127
    %v4196 = vunpack.c.l.b16 %v4128
    %v4197 = vunpack.c.l.b16 %v4129
    %v4198 = vunpack.c.l.b16 %v4130
    %v4199 = vunpack.c.l.b16 %v4131
    %v4200 = vunpack.c.l.b16 %v4132
    %v4201 = vunpack.c.l.b16 %v4133
    %v4202 = vunpack.c.l.b16 %v4134
    %v4203 = vunpack.c.l.b16 %v4135
    %v4204 = vunpack.c.l.b16 %v4136
    %v4205 = vunpack.c.l.b16 %v4137
    %v4206 = vunpack.c.l.b16 %v4138
    %v4207 = vunpack.c.l.b16 %v4139
    %v4208 = vunpack.c.l.b16 %v4140
    %v4209 = vunpack.c.l.b16 %v4141
    %v4210 = vunpack.c.l.b16 %v4142
    %v4211 = vunpack.c.l.b16 %v4143
    %v4212 = vunpack.c.l.b16 %v4144
    %v4213 = vunpack.c.l.b16 %v4145
    %v4214 = vunpack.c.l.b16 %v4146
    %v4215 = vunpack.c.l.b16 %v4147
    %v4216 = vunpack.c.l.b16 %v4148
    %v4217 = vunpack.c.l.b16 %v4149
    %v4218 = vunpack.c.l.b16 %v4150
    %v4219 = vunpack.c.l.b16 %v4151
    %v4220 = vunpack.c.l.b16 %v4152
    %v4221 = vpack.c.b16 %v4190, %v4189
    %v4222 = vpack.c.b16 %v4192, %v4191
    %v4223 = vpack.c.b16 %v4194, %v4193
    %v4224 = vpack.c.b16 %v4196, %v4195
    %v4225 = vpack.c.b16 %v4198, %v4197
    %v4226 = vpack.c.b16 %v4200, %v4199
    %v4227 = vpack.c.b16 %v4202, %v4201
    %v4228 = vpack.c.b16 %v4204, %v4203
    %v4229 = vpack.c.b16 %v4206, %v4205
    %v4230 = vpack.c.b16 %v4208, %v4207
    %v4231 = vpack.c.b16 %v4210, %v4209
    %v4232 = vpack.c.b16 %v4212, %v4211
    %v4233 = vpack.c.b16 %v4214, %v4213
    %v4234 = vpack.c.b16 %v4216, %v4215
    %v4235 = vpack.c.b16 %v4218, %v4217
    %v4236 = vpack.c.b16 %v4220, %v4219
    %4253 = vmatpush.bf16.msra.mxu0 %v4228
    %4254 = vmatpush.bf16.msra.mxu0 %v4227
    %4255 = vmatpush.bf16.msra.mxu0 %v4226
    %4256 = vmatpush.bf16.msra.mxu0 %v4225
    %4257 = vmatpush.bf16.msra.mxu0 %v4224
    %4258 = vmatpush.bf16.msra.mxu0 %v4223
    %4259 = vmatpush.bf16.msra.mxu0 %v4222
    %4260 = vmatpush.bf16.msra.mxu0 %v4221
    %4261 = vmatmul.bf16.gmra.mxu0 %v4119
    %v4262 = vpop.f32.mrf.mxu0
    %v4263 = vadd.f32 %v4155, %v4262
    %v4264 = vpop.f32.mrf.mxu0
    %4265 = vdwg.mxu0
    %4266 = vmatpush.bf16.msra.mxu0 %v4236
    %4267 = vmatpush.bf16.msra.mxu0 %v4235
    %4268 = vmatpush.bf16.msra.mxu0 %v4234
    %4269 = vmatpush.bf16.msra.mxu0 %v4233
    %4270 = vmatpush.bf16.msra.mxu0 %v4232
    %4271 = vmatpush.bf16.msra.mxu0 %v4231
    %4272 = vmatpush.bf16.msra.mxu0 %v4230
    %4273 = vmatpush.bf16.msra.mxu0 %v4229
    %4274 = vmatmul.bf16.gmra.mxu0 %v4120
    %v4275 = vpop.f32.mrf.mxu0
    %v4276 = vadd.f32 %v4263, %v4275
    %v4277 = vpop.f32.mrf.mxu0
    %4278 = vdwg.mxu0
    %4279 = vst [vmem:[#allocation19] sm:$0xff] %v4276
    // Predicated region
    $region110: #{tpu_custom_call.1} parent=1 // pred_check
      _
    $region111: #{tpu_custom_call.1} parent=1 // pred_check_branch
      %4281 = sbr.rel (0) target = $region113
    $region112: #{tpu_custom_call.1} parent=1 // pred_region
      %4283 = vsyncadd [#allocation4], 0
      %s4285 = sshll.u32 [#allocation19], 4
      %s4286 = int_to_ptr.vmem [resolvable:$true] %s4285
      %s4287 = sshll.u32 %s17, 4
      %s4288 = int_to_ptr.hbm [resolvable:$true] %s4287
      %4290 = dma.vmem_to_hbm [thread:$0]  %s4286, 128, %s4288, [#allocation4]
    $region113: #{tpu_custom_call.1} parent=1 // pred_fallthru
      _
    // Predicated region
    $region114: #{tpu_custom_call.1} parent=1 // pred_check
      _
    $region115: #{tpu_custom_call.1} parent=1 // pred_check_branch
      %4292 = sbr.rel (0) target = $region117
    $region116: #{tpu_custom_call.1} parent=1 // pred_region
      %4294 = dma.done [#allocation4], 128
    $region117: #{tpu_custom_call.1} parent=1 // pred_fallthru
      _
    %4295 = vsyncpa [#allocation3], 1
    %4296 = vsyncpa [#allocation6], 1
    %4297 = vsyncpa [#allocation9], 1
    %4298 = vsyncpa [#allocation12], 1
    %4299 = vsyncpa [#allocation15], 1
    %4300 = vsyncpa [#allocation18], 1
    %4301 = vsyncpa [#allocation4], 1

</llo_original>
